<compile_context>
chip_gen: v5e
topology: v5e:2x2
jax: 0.10.0
libtpu: 0.0.40
codegen_flags: <defaults>
</compile_context>

<pallas_src>
import functools
import math

import jax
import jax.numpy as jnp
from jax.experimental import pallas as pl
from jax.experimental.pallas import tpu as pltpu

_MIB = 1024 * 1024


# ----------------------------------------------------------------------------
# Helpers
# ----------------------------------------------------------------------------
def _cparams(semantics, vmem_bytes):
    """CompilerParams with an explicit scoped-VMEM limit (>= defaults, <= 48 MiB)."""
    limit = int(min(max(int(vmem_bytes), 32 * _MIB), 48 * _MIB))
    return pltpu.CompilerParams(dimension_semantics=semantics,
                                vmem_limit_bytes=limit)


def _resident_spec(shape, index_map):
    """Constant-index block: stays resident in VMEM, single-buffered."""
    try:
        return pl.BlockSpec(shape, index_map, pipeline_mode=pl.Buffered(1))
    except (TypeError, ValueError, AttributeError):
        # Fallback for JAX versions without pipeline_mode / Buffered(1).
        return pl.BlockSpec(shape, index_map)


def _row_tiling(M, max_tile=512):
    """Pick (row_tile, padded_M).  Never collapses a large M into one block."""
    if M <= max_tile:
        return M, M                      # single block == full array dim (legal)
    for t in (max_tile, 256, 128):
        if M % t == 0:
            return t, M
    t = 128
    return t, int(pl.cdiv(M, t)) * t     # pad rows to a 128 multiple


def _pad_rows(x, padded_m):
    m = x.shape[0]
    if padded_m == m:
        return x
    return jnp.pad(x, ((0, padded_m - m), (0, 0)))


def _q_tile(sq, max_tile=256):
    for t in (max_tile, 128):
        if sq % t == 0:
            return t
    # TODO(synk): pad/mask the query axis for long, non-128-divisible Sq.
    return sq


# ----------------------------------------------------------------------------
# Plain fused linear (cross-attn Q and KV projections)
# ----------------------------------------------------------------------------
def _linear_kernel(x_ref, w_ref, b_ref, o_ref):
    x = x_ref[...].astype(jnp.bfloat16)
    acc = jnp.dot(x, w_ref[...], preferred_element_type=jnp.float32) + b_ref[...]
    o_ref[...] = acc.astype(o_ref.dtype)


def linear(x, w, b, out_dtype=jnp.bfloat16, max_tile=512):
    M, K = x.shape
    N = w.shape[1]
    tm, Mp = _row_tiling(M, max_tile)
    xp = _pad_rows(x, Mp)
    w_bytes = K * N * w.dtype.itemsize + N * 4
    tile_bytes = tm * (K * x.dtype.itemsize + N * jnp.dtype(out_dtype).itemsize)
    out = pl.pallas_call(
        _linear_kernel,
        grid=(Mp // tm,),
        out_shape=jax.ShapeDtypeStruct((Mp, N), out_dtype),
        in_specs=[
            pl.BlockSpec((tm, K), lambda i: (i, 0)),
            _resident_spec((K, N), lambda i: (0, 0)),
            _resident_spec((1, N), lambda i: (0, 0)),
        ],
        out_specs=pl.BlockSpec((tm, N), lambda i: (i, 0)),
        compiler_params=_cparams(("parallel",), w_bytes + 2 * tile_bytes + 2 * _MIB),
    )(xp, w, b.reshape(1, N))
    return out[:M] if Mp != M else out


# ----------------------------------------------------------------------------
# Fused QKV projection emitting separate Q and KV bf16 arrays
# ----------------------------------------------------------------------------
def _qkv_split_kernel(x_ref, w_ref, b_ref, q_ref, kv_ref, *, d_model):
    x = x_ref[...].astype(jnp.bfloat16)
    y = jnp.dot(x, w_ref[...], preferred_element_type=jnp.float32) + b_ref[...]
    q_ref[...] = y[:, :d_model].astype(q_ref.dtype)
    kv_ref[...] = y[:, d_model:].astype(kv_ref.dtype)


def qkv_project(x, w_qkv, b_qkv, d_model, max_tile=512):
    M, K = x.shape
    N = w_qkv.shape[1]                       # 3 * d_model
    tm, Mp = _row_tiling(M, max_tile)
    xp = _pad_rows(x, Mp)
    w_bytes = K * N * w_qkv.dtype.itemsize + N * 4
    tile_bytes = tm * (K * x.dtype.itemsize + N * 2 + N * 4)
    q, kv = pl.pallas_call(
        functools.partial(_qkv_split_kernel, d_model=d_model),
        grid=(Mp // tm,),
        out_shape=(
            jax.ShapeDtypeStruct((Mp, d_model), jnp.bfloat16),
            jax.ShapeDtypeStruct((Mp, N - d_model), jnp.bfloat16),
        ),
        in_specs=[
            pl.BlockSpec((tm, K), lambda i: (i, 0)),
            _resident_spec((K, N), lambda i: (0, 0)),
            _resident_spec((1, N), lambda i: (0, 0)),
        ],
        out_specs=(
            pl.BlockSpec((tm, d_model), lambda i: (i, 0)),
            pl.BlockSpec((tm, N - d_model), lambda i: (i, 0)),
        ),
        compiler_params=_cparams(("parallel",), w_bytes + 2 * tile_bytes + 2 * _MIB),
    )(xp, w_qkv, b_qkv.reshape(1, N))
    if Mp != M:
        q, kv = q[:M], kv[:M]
    return q, kv


# ----------------------------------------------------------------------------
# Fused: multi-head attention + output projection + residual + LayerNorm
# ----------------------------------------------------------------------------
def _attn_proj_res_ln_kernel(q_ref, kv_ref, r_ref, wo_ref, bo_ref, g_ref, beta_ref,
                             o_ref, *, num_heads, head_dim, scale, causal, eps):
    d_model = num_heads * head_dim
    qb = q_ref[0]                    # (tq, D)  bf16
    kvb = kv_ref[0]                  # (Sk, 2D) bf16
    tq = qb.shape[0]
    sk = kvb.shape[0]

    # Causal mask hoisted out of the per-head loop (row index is global).
    mask = None
    if causal:
        q_start = pl.program_id(1) * tq
        row = q_start + jax.lax.broadcasted_iota(jnp.int32, (tq, sk), 0)
        col = jax.lax.broadcasted_iota(jnp.int32, (tq, sk), 1)
        mask = col <= row

    acc = jnp.zeros((tq, d_model), jnp.float32)
    for h in range(num_heads):
        off = h * head_dim
        qh = qb[:, off:off + head_dim]
        kh = kvb[:, off:off + head_dim]
        vh = kvb[:, d_model + off:d_model + off + head_dim]
        # (tq, Sk) scores: contract Dh directly (no k.T), accumulate in f32.
        s = jax.lax.dot_general(
            qh, kh, dimension_numbers=(((1,), (1,)), ((), ())),
            preferred_element_type=jnp.float32) * scale
        if mask is not None:
            s = jnp.where(mask, s, -1e30)
        m = jnp.max(s, axis=-1, keepdims=True)
        p = jnp.exp(s - m)
        denom = jnp.sum(p, axis=-1, keepdims=True)
        oh = jnp.dot(p.astype(jnp.bfloat16), vh, preferred_element_type=jnp.float32)
        oh = oh / denom              # exact division for PyTorch parity
        # Fused output projection: accumulate into the full-width (tq, D) result.
        acc = acc + jnp.dot(oh.astype(jnp.bfloat16),
                            wo_ref[off:off + head_dim, :],
                            preferred_element_type=jnp.float32)

    # Residual + LayerNorm (all f32).
    y = r_ref[0].astype(jnp.float32) + acc + bo_ref[...]
    mu = jnp.mean(y, axis=-1, keepdims=True)
    c = y - mu
    var = jnp.mean(c * c, axis=-1, keepdims=True)
    norm = c * jax.lax.rsqrt(var + eps)
    o_ref[0] = (norm * g_ref[...] + beta_ref[...]).astype(o_ref.dtype)


def attention_block(q, kv, residual, wo, bo, gamma, beta, num_heads, causal,
                    eps=1e-5):
    """q: (B,Sq,D) bf16, kv: (B,Sk,2D) bf16, residual: (B,Sq,D) f32 -> (B,Sq,D) f32."""
    B, Sq, D = q.shape
    Sk = kv.shape[1]
    Dh = D // num_heads
    tq = _q_tile(Sq)
    nq = Sq // tq

    kv_bytes = Sk * 2 * D * kv.dtype.itemsize
    tile_bytes = tq * D * (q.dtype.itemsize + 2 * residual.dtype.itemsize)
    score_bytes = tq * Sk * 4
    w_bytes = D * D * wo.dtype.itemsize + 3 * D * 4
    need = 2 * kv_bytes + 2 * tile_bytes + score_bytes + w_bytes + tq * D * 4 + 2 * _MIB

    return pl.pallas_call(
        functools.partial(_attn_proj_res_ln_kernel, num_heads=num_heads,
                          head_dim=Dh, scale=1.0 / math.sqrt(Dh),
                          causal=causal, eps=eps),
        grid=(B, nq),
        out_shape=jax.ShapeDtypeStruct((B, Sq, D), residual.dtype),
        in_specs=[
            pl.BlockSpec((1, tq, D), lambda b, i: (b, i, 0)),
            pl.BlockSpec((1, Sk, 2 * D), lambda b, i: (b, 0, 0)),   # resident per batch
            pl.BlockSpec((1, tq, D), lambda b, i: (b, i, 0)),
            _resident_spec((D, D), lambda b, i: (0, 0)),
            _resident_spec((1, D), lambda b, i: (0, 0)),
            _resident_spec((1, D), lambda b, i: (0, 0)),
            _resident_spec((1, D), lambda b, i: (0, 0)),
        ],
        out_specs=pl.BlockSpec((1, tq, D), lambda b, i: (b, i, 0)),
        compiler_params=_cparams(("parallel", "parallel"), need),
    )(q, kv, residual, wo, bo.reshape(1, D), gamma.reshape(1, D), beta.reshape(1, D))


# ----------------------------------------------------------------------------
# Fused: FFN (two matmuls + ReLU) + residual + LayerNorm
# ----------------------------------------------------------------------------
def _ffn_res_ln_kernel(x_ref, w1_ref, b1_ref, w2_ref, b2_ref, g_ref, beta_ref,
                       o_ref, *, eps):
    x_f32 = x_ref[...].astype(jnp.float32)
    x_bf = x_ref[...].astype(jnp.bfloat16)
    h = jnp.dot(x_bf, w1_ref[...], preferred_element_type=jnp.float32) + b1_ref[...]
    h = jnp.maximum(h, 0.0).astype(jnp.bfloat16)
    ff = jnp.dot(h, w2_ref[...], preferred_element_type=jnp.float32) + b2_ref[...]
    y = x_f32 + ff
    mu = jnp.mean(y, axis=-1, keepdims=True)
    c = y - mu
    var = jnp.mean(c * c, axis=-1, keepdims=True)
    norm = c * jax.lax.rsqrt(var + eps)
    o_ref[...] = (norm * g_ref[...] + beta_ref[...]).astype(o_ref.dtype)


def ffn_residual_layernorm(x, w1, b1, w2, b2, gamma, beta, eps=1e-5):
    M, D = x.shape
    F = w1.shape[1]
    # tm capped at 256: keeps the (tm, F) f32 intermediate + resident bf16
    # weights within v7x's smaller VMEM.
    tm, Mp = _row_tiling(M, max_tile=256)
    xp = _pad_rows(x, Mp)
    w_bytes = (D * F + F * D) * w1.dtype.itemsize + (F + 3 * D) * 4
    tile_bytes = tm * (2 * D * 4 + F * 4 + F * 2)
    out = pl.pallas_call(
        functools.partial(_ffn_res_ln_kernel, eps=eps),
        grid=(Mp // tm,),
        out_shape=jax.ShapeDtypeStruct((Mp, D), x.dtype),
        in_specs=[
            pl.BlockSpec((tm, D), lambda i: (i, 0)),
            _resident_spec((D, F), lambda i: (0, 0)),
            _resident_spec((1, F), lambda i: (0, 0)),
            _resident_spec((F, D), lambda i: (0, 0)),
            _resident_spec((1, D), lambda i: (0, 0)),
            _resident_spec((1, D), lambda i: (0, 0)),
            _resident_spec((1, D), lambda i: (0, 0)),
        ],
        out_specs=pl.BlockSpec((tm, D), lambda i: (i, 0)),
        compiler_params=_cparams(("parallel",), w_bytes + 2 * tile_bytes + 2 * _MIB),
    )(xp, w1, b1.reshape(1, F), w2, b2.reshape(1, D),
      gamma.reshape(1, D), beta.reshape(1, D))
    return out[:M] if Mp != M else out


# ----------------------------------------------------------------------------
# Decoder layer / decoder stack
# ----------------------------------------------------------------------------
def decoder_layer(x, mem, p, num_heads, tgt_is_causal, mem_is_causal, eps=1e-5):
    B, S, D = x.shape
    Sm = mem.shape[1]
    M = B * S
    Mm = B * Sm

    # ---- self-attention block ---------------------------------------------
    sa = p["self_attn"]
    q, kv = qkv_project(x.reshape(M, D), sa["w_qkv"], sa["b_qkv"], D)
    x = attention_block(q.reshape(B, S, D), kv.reshape(B, S, 2 * D), x,
                        sa["wo"], sa["bo"], p["ln1_g"], p["ln1_b"],
                        num_heads, tgt_is_causal, eps)

    # ---- cross-attention block ---------------------------------------------
    # Note: mem_is_causal uses a top-left-aligned (col <= row) mask on the
    # rectangular (Sq, Sk) scores, matching F.scaled_dot_product_attention.
    ca = p["cross_attn"]
    q = linear(x.reshape(M, D), ca["wq"], ca["bq"])
    kv = linear(mem.reshape(Mm, D), ca["w_kv"], ca["b_kv"])
    x = attention_block(q.reshape(B, S, D), kv.reshape(B, Sm, 2 * D), x,
                        ca["wo"], ca["bo"], p["ln2_g"], p["ln2_b"],
                        num_heads, mem_is_causal, eps)

    # ---- feed-forward block --------------------------------------------------
    x = ffn_residual_layernorm(x.reshape(M, D), p["w1"], p["b1"], p["w2"], p["b2"],
                               p["ln3_g"], p["ln3_b"], eps).reshape(B, S, D)
    return x


@functools.partial(jax.jit, static_argnums=(3, 4, 5))
def transformer_decoder(tgt, mem, layers_params, num_heads,
                        tgt_is_causal=False, mem_is_causal=False):
    out = tgt
    for lp in layers_params:
        out = decoder_layer(out, mem, lp, num_heads, tgt_is_causal, mem_is_causal)
    return out


# ----------------------------------------------------------------------------
# Deterministic parameter initialization (fused layouts, bf16 MXU weights)
# ----------------------------------------------------------------------------
def init_self_attn_params(key, d_model):
    kq, kk, kv, ko = jax.random.split(key, 4)
    s = 1.0 / math.sqrt(d_model)
    wq = jax.random.normal(kq, (d_model, d_model), jnp.float32) * s
    wk = jax.random.normal(kk, (d_model, d_model), jnp.float32) * s
    wv = jax.random.normal(kv, (d_model, d_model), jnp.float32) * s
    wo = jax.random.normal(ko, (d_model, d_model), jnp.float32) * s
    return {
        "w_qkv": jnp.concatenate([wq, wk, wv], axis=1).astype(jnp.bfloat16),  # (D,3D)
        "b_qkv": jnp.zeros((3 * d_model,), jnp.float32),
        "wo": wo.astype(jnp.bfloat16),
        "bo": jnp.zeros((d_model,), jnp.float32),
    }


def init_cross_attn_params(key, d_model):
    kq, kk, kv, ko = jax.random.split(key, 4)
    s = 1.0 / math.sqrt(d_model)
    wq = jax.random.normal(kq, (d_model, d_model), jnp.float32) * s
    wk = jax.random.normal(kk, (d_model, d_model), jnp.float32) * s
    wv = jax.random.normal(kv, (d_model, d_model), jnp.float32) * s
    wo = jax.random.normal(ko, (d_model, d_model), jnp.float32) * s
    return {
        "wq": wq.astype(jnp.bfloat16),
        "bq": jnp.zeros((d_model,), jnp.float32),
        "w_kv": jnp.concatenate([wk, wv], axis=1).astype(jnp.bfloat16),       # (D,2D)
        "b_kv": jnp.zeros((2 * d_model,), jnp.float32),
        "wo": wo.astype(jnp.bfloat16),
        "bo": jnp.zeros((d_model,), jnp.float32),
    }


def init_layer_params(key, d_model, d_ff):
    k1, k2, k3, k4 = jax.random.split(key, 4)
    return {
        "self_attn": init_self_attn_params(k1, d_model),
        "cross_attn": init_cross_attn_params(k2, d_model),
        "w1": (jax.random.normal(k3, (d_model, d_ff), jnp.float32)
               / math.sqrt(d_model)).astype(jnp.bfloat16),
        "b1": jnp.zeros((d_ff,), jnp.float32),
        "w2": (jax.random.normal(k4, (d_ff, d_model), jnp.float32)
               / math.sqrt(d_ff)).astype(jnp.bfloat16),
        "b2": jnp.zeros((d_model,), jnp.float32),
        "ln1_g": jnp.ones((d_model,), jnp.float32),
        "ln1_b": jnp.zeros((d_model,), jnp.float32),
        "ln2_g": jnp.ones((d_model,), jnp.float32),
        "ln2_b": jnp.zeros((d_model,), jnp.float32),
        "ln3_g": jnp.ones((d_model,), jnp.float32),
        "ln3_b": jnp.zeros((d_model,), jnp.float32),
    }


if __name__ == "__main__":
    B, S_TGT, S_MEM = 2, 8, 8
    D_MODEL, N_HEADS, D_FF, N_LAYERS = 32, 4, 64, 2

    root = jax.random.PRNGKey(0)
    k_tgt, k_mem, k_params = jax.random.split(root, 3)

    tgt = jax.random.normal(k_tgt, (B, S_TGT, D_MODEL), jnp.float32)
    mem = jax.random.normal(k_mem, (B, S_MEM, D_MODEL), jnp.float32)

    layer_keys = jax.random.split(k_params, N_LAYERS)
    layers = [init_layer_params(k, D_MODEL, D_FF) for k in layer_keys]

    out = transformer_decoder(tgt, mem, layers, N_HEADS,
                              tgt_is_causal=True, mem_is_causal=False)
    out = jax.block_until_ready(out)

    assert out.shape == (B, S_TGT, D_MODEL)
    assert bool(jnp.all(jnp.isfinite(out)))
    print("KERNEL_OK")
</pallas_src>

<mosaic_0001>
module attributes {stable_mosaic.version = 11 : i64} {
  func.func @_linear_kernel(%arg0: i32, %arg1: memref<16x32xf32, #tpu.memory_space<vmem>>, %arg2: memref<32x64xbf16, #tpu.memory_space<vmem>>, %arg3: memref<1x64xf32, #tpu.memory_space<vmem>>, %arg4: memref<16x64xbf16, #tpu.memory_space<vmem>>) attributes {dimension_semantics = [#tpu.dimension_semantics<parallel>], iteration_bounds = array<i64: 1>, scalar_prefetch = 0 : i64, scratch_operands = 0 : i64, tpu.core_type = #tpu.core_type<tc>, window_params = [{transform_indices = @transform_0, window_bounds = array<i64: 16, 32>}, {pipeline_mode = #tpu.pipeline_mode<synchronous>, transform_indices = @transform_1, window_bounds = array<i64: 32, 64>}, {pipeline_mode = #tpu.pipeline_mode<synchronous>, transform_indices = @transform_2, window_bounds = array<i64: 1, 64>}, {transform_indices = @transform_3, window_bounds = array<i64: 16, 64>}]} {
    %c0 = arith.constant 0 : index
    %c0_0 = arith.constant 0 : index
    %0 = vector.load %arg1[%c0, %c0_0] : memref<16x32xf32, #tpu.memory_space<vmem>>, vector<16x32xf32>
    %1 = arith.truncf %0 : vector<16x32xf32> to vector<16x32xbf16>
    %c0_1 = arith.constant 0 : index
    %c0_2 = arith.constant 0 : index
    %2 = vector.load %arg2[%c0_1, %c0_2] : memref<32x64xbf16, #tpu.memory_space<vmem>>, vector<32x64xbf16>
    %cst = arith.constant dense<0.000000e+00> : vector<16x64xf32>
    %3 = tpu.matmul %1, %2, %cst {dimension_numbers = #tpu.dot_dimension_numbers<[1], [0], [0], [1], [0, 0, 1, 1], [], []>} : vector<16x32xbf16>, vector<32x64xbf16>, vector<16x64xf32> -> vector<16x64xf32>
    %c0_3 = arith.constant 0 : index
    %c0_4 = arith.constant 0 : index
    %4 = vector.load %arg3[%c0_3, %c0_4] : memref<1x64xf32, #tpu.memory_space<vmem>>, vector<1x64xf32>
    %5 = vector.broadcast %4 : vector<1x64xf32> to vector<16x64xf32>
    %6 = arith.addf %3, %5 : vector<16x64xf32>
    %7 = arith.truncf %6 : vector<16x64xf32> to vector<16x64xbf16>
    %c0_5 = arith.constant 0 : index
    %c0_6 = arith.constant 0 : index
    %8 = vector.load %arg4[%c0_5, %c0_6] : memref<16x64xbf16, #tpu.memory_space<vmem>>, vector<16x64xbf16>
    tpu.vector_store %arg4[%c0_5, %c0_6], %7 {strides = array<i32>} : memref<16x64xbf16, #tpu.memory_space<vmem>>, vector<16x64xbf16>,
    return
  }
  func.func @transform_0(%arg0: i32) -> (i32, i32) {
    %c0_i32 = arith.constant 0 : i32
    %c0_i32_0 = arith.constant 0 : i32
    return %arg0, %c0_i32 : i32, i32
  }
  func.func @transform_1(%arg0: i32) -> (i32, i32) {
    %c0_i32 = arith.constant 0 : i32
    %c0_i32_0 = arith.constant 0 : i32
    %c0_i32_1 = arith.constant 0 : i32
    return %c0_i32, %c0_i32_0 : i32, i32
  }
  func.func @transform_2(%arg0: i32) -> (i32, i32) {
    %c0_i32 = arith.constant 0 : i32
    %c0_i32_0 = arith.constant 0 : i32
    %c0_i32_1 = arith.constant 0 : i32
    return %c0_i32, %c0_i32_0 : i32, i32
  }
  func.func @transform_3(%arg0: i32) -> (i32, i32) {
    %c0_i32 = arith.constant 0 : i32
    %c0_i32_0 = arith.constant 0 : i32
    return %arg0, %c0_i32 : i32, i32
  }
}

module attributes {stable_mosaic.version = 11 : i64} {
  func.func @_linear_kernel(%arg0: i32, %arg1: memref<16x32xf32, #tpu.memory_space<vmem>>, %arg2: memref<32x32xbf16, #tpu.memory_space<vmem>>, %arg3: memref<1x32xf32, #tpu.memory_space<vmem>>, %arg4: memref<16x32xbf16, #tpu.memory_space<vmem>>) attributes {dimension_semantics = [#tpu.dimension_semantics<parallel>], iteration_bounds = array<i64: 1>, scalar_prefetch = 0 : i64, scratch_operands = 0 : i64, tpu.core_type = #tpu.core_type<tc>, window_params = [{transform_indices = @transform_0, window_bounds = array<i64: 16, 32>}, {pipeline_mode = #tpu.pipeline_mode<synchronous>, transform_indices = @transform_1, window_bounds = array<i64: 32, 32>}, {pipeline_mode = #tpu.pipeline_mode<synchronous>, transform_indices = @transform_2, window_bounds = array<i64: 1, 32>}, {transform_indices = @transform_3, window_bounds = array<i64: 16, 32>}]} {
    %c0 = arith.constant 0 : index
    %c0_0 = arith.constant 0 : index
    %0 = vector.load %arg1[%c0, %c0_0] : memref<16x32xf32, #tpu.memory_space<vmem>>, vector<16x32xf32>
    %1 = arith.truncf %0 : vector<16x32xf32> to vector<16x32xbf16>
    %c0_1 = arith.constant 0 : index
    %c0_2 = arith.constant 0 : index
    %2 = vector.load %arg2[%c0_1, %c0_2] : memref<32x32xbf16, #tpu.memory_space<vmem>>, vector<32x32xbf16>
    %cst = arith.constant dense<0.000000e+00> : vector<16x32xf32>
    %3 = tpu.matmul %1, %2, %cst {dimension_numbers = #tpu.dot_dimension_numbers<[1], [0], [0], [1], [0, 0, 1, 1], [], []>} : vector<16x32xbf16>, vector<32x32xbf16>, vector<16x32xf32> -> vector<16x32xf32>
    %c0_3 = arith.constant 0 : index
    %c0_4 = arith.constant 0 : index
    %4 = vector.load %arg3[%c0_3, %c0_4] : memref<1x32xf32, #tpu.memory_space<vmem>>, vector<1x32xf32>
    %5 = vector.broadcast %4 : vector<1x32xf32> to vector<16x32xf32>
    %6 = arith.addf %3, %5 : vector<16x32xf32>
    %7 = arith.truncf %6 : vector<16x32xf32> to vector<16x32xbf16>
    %c0_5 = arith.constant 0 : index
    %c0_6 = arith.constant 0 : index
    %8 = vector.load %arg4[%c0_5, %c0_6] : memref<16x32xbf16, #tpu.memory_space<vmem>>, vector<16x32xbf16>
    tpu.vector_store %arg4[%c0_5, %c0_6], %7 {strides = array<i32>} : memref<16x32xbf16, #tpu.memory_space<vmem>>, vector<16x32xbf16>,
    return
  }
  func.func @transform_0(%arg0: i32) -> (i32, i32) {
    %c0_i32 = arith.constant 0 : i32
    %c0_i32_0 = arith.constant 0 : i32
    return %arg0, %c0_i32 : i32, i32
  }
  func.func @transform_1(%arg0: i32) -> (i32, i32) {
    %c0_i32 = arith.constant 0 : i32
    %c0_i32_0 = arith.constant 0 : i32
    %c0_i32_1 = arith.constant 0 : i32
    return %c0_i32, %c0_i32_0 : i32, i32
  }
  func.func @transform_2(%arg0: i32) -> (i32, i32) {
    %c0_i32 = arith.constant 0 : i32
    %c0_i32_0 = arith.constant 0 : i32
    %c0_i32_1 = arith.constant 0 : i32
    return %c0_i32, %c0_i32_0 : i32, i32
  }
  func.func @transform_3(%arg0: i32) -> (i32, i32) {
    %c0_i32 = arith.constant 0 : i32
    %c0_i32_0 = arith.constant 0 : i32
    return %arg0, %c0_i32 : i32, i32
  }
}

module attributes {stable_mosaic.version = 11 : i64} {
  func.func @_qkv_split_kernel(%arg0: i32, %arg1: memref<16x32xf32, #tpu.memory_space<vmem>>, %arg2: memref<32x96xbf16, #tpu.memory_space<vmem>>, %arg3: memref<1x96xf32, #tpu.memory_space<vmem>>, %arg4: memref<16x32xbf16, #tpu.memory_space<vmem>>, %arg5: memref<16x64xbf16, #tpu.memory_space<vmem>>) attributes {dimension_semantics = [#tpu.dimension_semantics<parallel>], iteration_bounds = array<i64: 1>, scalar_prefetch = 0 : i64, scratch_operands = 0 : i64, tpu.core_type = #tpu.core_type<tc>, window_params = [{transform_indices = @transform_0, window_bounds = array<i64: 16, 32>}, {pipeline_mode = #tpu.pipeline_mode<synchronous>, transform_indices = @transform_1, window_bounds = array<i64: 32, 96>}, {pipeline_mode = #tpu.pipeline_mode<synchronous>, transform_indices = @transform_2, window_bounds = array<i64: 1, 96>}, {transform_indices = @transform_3, window_bounds = array<i64: 16, 32>}, {transform_indices = @transform_4, window_bounds = array<i64: 16, 64>}]} {
    %c0 = arith.constant 0 : index
    %c0_0 = arith.constant 0 : index
    %0 = vector.load %arg1[%c0, %c0_0] : memref<16x32xf32, #tpu.memory_space<vmem>>, vector<16x32xf32>
    %1 = arith.truncf %0 : vector<16x32xf32> to vector<16x32xbf16>
    %c0_1 = arith.constant 0 : index
    %c0_2 = arith.constant 0 : index
    %2 = vector.load %arg2[%c0_1, %c0_2] : memref<32x96xbf16, #tpu.memory_space<vmem>>, vector<32x96xbf16>
    %cst = arith.constant dense<0.000000e+00> : vector<16x96xf32>
    %3 = tpu.matmul %1, %2, %cst {dimension_numbers = #tpu.dot_dimension_numbers<[1], [0], [0], [1], [0, 0, 1, 1], [], []>} : vector<16x32xbf16>, vector<32x96xbf16>, vector<16x96xf32> -> vector<16x96xf32>
    %c0_3 = arith.constant 0 : index
    %c0_4 = arith.constant 0 : index
    %4 = vector.load %arg3[%c0_3, %c0_4] : memref<1x96xf32, #tpu.memory_space<vmem>>, vector<1x96xf32>
    %5 = vector.broadcast %4 : vector<1x96xf32> to vector<16x96xf32>
    %6 = arith.addf %3, %5 : vector<16x96xf32>
    %7 = vector.extract_strided_slice %6 {offsets = [0, 0], sizes = [16, 32], strides = [1, 1]} : vector<16x96xf32> to vector<16x32xf32>
    %8 = arith.truncf %7 : vector<16x32xf32> to vector<16x32xbf16>
    %c0_5 = arith.constant 0 : index
    %c0_6 = arith.constant 0 : index
    %9 = vector.load %arg4[%c0_5, %c0_6] : memref<16x32xbf16, #tpu.memory_space<vmem>>, vector<16x32xbf16>
    tpu.vector_store %arg4[%c0_5, %c0_6], %8 {strides = array<i32>} : memref<16x32xbf16, #tpu.memory_space<vmem>>, vector<16x32xbf16>,
    %10 = vector.extract_strided_slice %6 {offsets = [0, 32], sizes = [16, 64], strides = [1, 1]} : vector<16x96xf32> to vector<16x64xf32>
    %11 = arith.truncf %10 : vector<16x64xf32> to vector<16x64xbf16>
    %c0_7 = arith.constant 0 : index
    %c0_8 = arith.constant 0 : index
    %12 = vector.load %arg5[%c0_7, %c0_8] : memref<16x64xbf16, #tpu.memory_space<vmem>>, vector<16x64xbf16>
    tpu.vector_store %arg5[%c0_7, %c0_8], %11 {strides = array<i32>} : memref<16x64xbf16, #tpu.memory_space<vmem>>, vector<16x64xbf16>,
    return
  }
  func.func @transform_0(%arg0: i32) -> (i32, i32) {
    %c0_i32 = arith.constant 0 : i32
    %c0_i32_0 = arith.constant 0 : i32
    return %arg0, %c0_i32 : i32, i32
  }
  func.func @transform_1(%arg0: i32) -> (i32, i32) {
    %c0_i32 = arith.constant 0 : i32
    %c0_i32_0 = arith.constant 0 : i32
    %c0_i32_1 = arith.constant 0 : i32
    return %c0_i32, %c0_i32_0 : i32, i32
  }
  func.func @transform_2(%arg0: i32) -> (i32, i32) {
    %c0_i32 = arith.constant 0 : i32
    %c0_i32_0 = arith.constant 0 : i32
    %c0_i32_1 = arith.constant 0 : i32
    return %c0_i32, %c0_i32_0 : i32, i32
  }
  func.func @transform_3(%arg0: i32) -> (i32, i32) {
    %c0_i32 = arith.constant 0 : i32
    %c0_i32_0 = arith.constant 0 : i32
    return %arg0, %c0_i32 : i32, i32
  }
  func.func @transform_4(%arg0: i32) -> (i32, i32) {
    %c0_i32 = arith.constant 0 : i32
    %c0_i32_0 = arith.constant 0 : i32
    return %arg0, %c0_i32 : i32, i32
  }
}

module attributes {stable_mosaic.version = 11 : i64} {
  func.func @_attn_proj_res_ln_kernel(%arg0: i32, %arg1: i32, %arg2: memref<1x8x32xbf16, #tpu.memory_space<vmem>>, %arg3: memref<1x8x64xbf16, #tpu.memory_space<vmem>>, %arg4: memref<1x8x32xf32, #tpu.memory_space<vmem>>, %arg5: memref<32x32xbf16, #tpu.memory_space<vmem>>, %arg6: memref<1x32xf32, #tpu.memory_space<vmem>>, %arg7: memref<1x32xf32, #tpu.memory_space<vmem>>, %arg8: memref<1x32xf32, #tpu.memory_space<vmem>>, %arg9: memref<1x8x32xf32, #tpu.memory_space<vmem>>) attributes {dimension_semantics = [#tpu.dimension_semantics<parallel>, #tpu.dimension_semantics<parallel>], iteration_bounds = array<i64: 2, 1>, scalar_prefetch = 0 : i64, scratch_operands = 0 : i64, tpu.core_type = #tpu.core_type<tc>, window_params = [{transform_indices = @transform_0, window_bounds = array<i64: 1, 8, 32>}, {transform_indices = @transform_1, window_bounds = array<i64: 1, 8, 64>}, {transform_indices = @transform_2, window_bounds = array<i64: 1, 8, 32>}, {pipeline_mode = #tpu.pipeline_mode<synchronous>, transform_indices = @transform_3, window_bounds = array<i64: 32, 32>}, {pipeline_mode = #tpu.pipeline_mode<synchronous>, transform_indices = @transform_4, window_bounds = array<i64: 1, 32>}, {pipeline_mode = #tpu.pipeline_mode<synchronous>, transform_indices = @transform_5, window_bounds = array<i64: 1, 32>}, {pipeline_mode = #tpu.pipeline_mode<synchronous>, transform_indices = @transform_6, window_bounds = array<i64: 1, 32>}, {transform_indices = @transform_7, window_bounds = array<i64: 1, 8, 32>}]} {
    %c0 = arith.constant 0 : index
    %c0_0 = arith.constant 0 : index
    %c0_1 = arith.constant 0 : index
    %0 = vector.load %arg2[%c0, %c0_0, %c0_1] : memref<1x8x32xbf16, #tpu.memory_space<vmem>>, vector<1x8x32xbf16>
    %1 = vector.shape_cast %0 : vector<1x8x32xbf16> to vector<8x32xbf16>
    %c0_2 = arith.constant 0 : index
    %c0_3 = arith.constant 0 : index
    %c0_4 = arith.constant 0 : index
    %2 = vector.load %arg3[%c0_2, %c0_3, %c0_4] : memref<1x8x64xbf16, #tpu.memory_space<vmem>>, vector<1x8x64xbf16>
    %3 = vector.shape_cast %2 : vector<1x8x64xbf16> to vector<8x64xbf16>
    %c8_i32 = arith.constant 8 : i32
    %4 = arith.muli %arg1, %c8_i32 : i32
    %5 = tpu.iota {dimensions = array<i32: 0>} : vector<8x8xi32>
    %6 = vector.broadcast %4 : i32 to vector<8x8xi32>
    %7 = arith.addi %6, %5 : vector<8x8xi32>
    %8 = tpu.iota {dimensions = array<i32: 1>} : vector<8x8xi32>
    %9 = arith.cmpi sle, %8, %7 : vector<8x8xi32>
    %cst = arith.constant 0.000000e+00 : f32
    %10 = vector.broadcast %cst : f32 to vector<8x32xf32>
    %11 = vector.extract_strided_slice %1 {offsets = [0, 0], sizes = [8, 8], strides = [1, 1]} : vector<8x32xbf16> to vector<8x8xbf16>
    %12 = vector.extract_strided_slice %3 {offsets = [0, 0], sizes = [8, 8], strides = [1, 1]} : vector<8x64xbf16> to vector<8x8xbf16>
    %13 = vector.extract_strided_slice %3 {offsets = [0, 32], sizes = [8, 8], strides = [1, 1]} : vector<8x64xbf16> to vector<8x8xbf16>
    %cst_5 = arith.constant dense<0.000000e+00> : vector<8x8xf32>
    %14 = tpu.matmul %11, %12, %cst_5 {dimension_numbers = #tpu.dot_dimension_numbers<[1], [1], [0], [0], [0, 0, 1, 0], [], []>} : vector<8x8xbf16>, vector<8x8xbf16>, vector<8x8xf32> -> vector<8x8xf32>
    %cst_6 = arith.constant 0.353553385 : f32
    %15 = vector.broadcast %cst_6 : f32 to vector<8x8xf32>
    %16 = arith.mulf %14, %15 : vector<8x8xf32>
    %cst_7 = arith.constant -1.000000e+30 : f32
    %17 = vector.broadcast %cst_7 : f32 to vector<8x8xf32>
    %18 = arith.select %9, %16, %17 : vector<8x8xi1>, vector<8x8xf32>
    %cst_8 = arith.constant dense<0xFF800000> : vector<8xf32>
    %19 = vector.multi_reduction <maximumf>, %18, %cst_8 [1] : vector<8x8xf32> to vector<8xf32>
    %20 = vector.shape_cast %19 : vector<8xf32> to vector<8x1xf32>
    %21 = vector.broadcast %20 : vector<8x1xf32> to vector<8x8xf32>
    %22 = arith.subf %18, %21 : vector<8x8xf32>
    %23 = math.exp %22 : vector<8x8xf32>
    %cst_9 = arith.constant dense<0.000000e+00> : vector<8xf32>
    %24 = vector.multi_reduction <add>, %23, %cst_9 [1] : vector<8x8xf32> to vector<8xf32>
    %25 = vector.shape_cast %24 : vector<8xf32> to vector<8x1xf32>
    %26 = arith.truncf %23 : vector<8x8xf32> to vector<8x8xbf16>
    %cst_10 = arith.constant dense<0.000000e+00> : vector<8x8xf32>
    %27 = tpu.matmul %26, %13, %cst_10 {dimension_numbers = #tpu.dot_dimension_numbers<[1], [0], [0], [1], [0, 0, 1, 1], [], []>} : vector<8x8xbf16>, vector<8x8xbf16>, vector<8x8xf32> -> vector<8x8xf32>
    %28 = vector.broadcast %25 : vector<8x1xf32> to vector<8x8xf32>
    %29 = arith.divf %27, %28 : vector<8x8xf32>
    %30 = arith.truncf %29 : vector<8x8xf32> to vector<8x8xbf16>
    %c0_11 = arith.constant 0 : index
    %c0_12 = arith.constant 0 : index
    %31 = vector.load %arg5[%c0_11, %c0_12] : memref<32x32xbf16, #tpu.memory_space<vmem>>, vector<8x32xbf16>
    %cst_13 = arith.constant dense<0.000000e+00> : vector<8x32xf32>
    %32 = tpu.matmul %30, %31, %cst_13 {dimension_numbers = #tpu.dot_dimension_numbers<[1], [0], [0], [1], [0, 0, 1, 1], [], []>} : vector<8x8xbf16>, vector<8x32xbf16>, vector<8x32xf32> -> vector<8x32xf32>
    %33 = arith.addf %10, %32 : vector<8x32xf32>
    %34 = vector.extract_strided_slice %1 {offsets = [0, 8], sizes = [8, 8], strides = [1, 1]} : vector<8x32xbf16> to vector<8x8xbf16>
    %35 = vector.extract_strided_slice %3 {offsets = [0, 8], sizes = [8, 8], strides = [1, 1]} : vector<8x64xbf16> to vector<8x8xbf16>
    %36 = vector.extract_strided_slice %3 {offsets = [0, 40], sizes = [8, 8], strides = [1, 1]} : vector<8x64xbf16> to vector<8x8xbf16>
    %cst_14 = arith.constant dense<0.000000e+00> : vector<8x8xf32>
    %37 = tpu.matmul %34, %35, %cst_14 {dimension_numbers = #tpu.dot_dimension_numbers<[1], [1], [0], [0], [0, 0, 1, 0], [], []>} : vector<8x8xbf16>, vector<8x8xbf16>, vector<8x8xf32> -> vector<8x8xf32>
    %cst_15 = arith.constant 0.353553385 : f32
    %38 = vector.broadcast %cst_15 : f32 to vector<8x8xf32>
    %39 = arith.mulf %37, %38 : vector<8x8xf32>
    %cst_16 = arith.constant -1.000000e+30 : f32
    %40 = vector.broadcast %cst_16 : f32 to vector<8x8xf32>
    %41 = arith.select %9, %39, %40 : vector<8x8xi1>, vector<8x8xf32>
    %cst_17 = arith.constant dense<0xFF800000> : vector<8xf32>
    %42 = vector.multi_reduction <maximumf>, %41, %cst_17 [1] : vector<8x8xf32> to vector<8xf32>
    %43 = vector.shape_cast %42 : vector<8xf32> to vector<8x1xf32>
    %44 = vector.broadcast %43 : vector<8x1xf32> to vector<8x8xf32>
    %45 = arith.subf %41, %44 : vector<8x8xf32>
    %46 = math.exp %45 : vector<8x8xf32>
    %cst_18 = arith.constant dense<0.000000e+00> : vector<8xf32>
    %47 = vector.multi_reduction <add>, %46, %cst_18 [1] : vector<8x8xf32> to vector<8xf32>
    %48 = vector.shape_cast %47 : vector<8xf32> to vector<8x1xf32>
    %49 = arith.truncf %46 : vector<8x8xf32> to vector<8x8xbf16>
    %cst_19 = arith.constant dense<0.000000e+00> : vector<8x8xf32>
    %50 = tpu.matmul %49, %36, %cst_19 {dimension_numbers = #tpu.dot_dimension_numbers<[1], [0], [0], [1], [0, 0, 1, 1], [], []>} : vector<8x8xbf16>, vector<8x8xbf16>, vector<8x8xf32> -> vector<8x8xf32>
    %51 = vector.broadcast %48 : vector<8x1xf32> to vector<8x8xf32>
    %52 = arith.divf %50, %51 : vector<8x8xf32>
    %53 = arith.truncf %52 : vector<8x8xf32> to vector<8x8xbf16>
    %c8 = arith.constant 8 : index
    %c0_20 = arith.constant 0 : index
    %54 = vector.load %arg5[%c8, %c0_20] : memref<32x32xbf16, #tpu.memory_space<vmem>>, vector<8x32xbf16>
    %cst_21 = arith.constant dense<0.000000e+00> : vector<8x32xf32>
    %55 = tpu.matmul %53, %54, %cst_21 {dimension_numbers = #tpu.dot_dimension_numbers<[1], [0], [0], [1], [0, 0, 1, 1], [], []>} : vector<8x8xbf16>, vector<8x32xbf16>, vector<8x32xf32> -> vector<8x32xf32>
    %56 = arith.addf %33, %55 : vector<8x32xf32>
    %57 = vector.extract_strided_slice %1 {offsets = [0, 16], sizes = [8, 8], strides = [1, 1]} : vector<8x32xbf16> to vector<8x8xbf16>
    %58 = vector.extract_strided_slice %3 {offsets = [0, 16], sizes = [8, 8], strides = [1, 1]} : vector<8x64xbf16> to vector<8x8xbf16>
    %59 = vector.extract_strided_slice %3 {offsets = [0, 48], sizes = [8, 8], strides = [1, 1]} : vector<8x64xbf16> to vector<8x8xbf16>
    %cst_22 = arith.constant dense<0.000000e+00> : vector<8x8xf32>
    %60 = tpu.matmul %57, %58, %cst_22 {dimension_numbers = #tpu.dot_dimension_numbers<[1], [1], [0], [0], [0, 0, 1, 0], [], []>} : vector<8x8xbf16>, vector<8x8xbf16>, vector<8x8xf32> -> vector<8x8xf32>
    %cst_23 = arith.constant 0.353553385 : f32
    %61 = vector.broadcast %cst_23 : f32 to vector<8x8xf32>
    %62 = arith.mulf %60, %61 : vector<8x8xf32>
    %cst_24 = arith.constant -1.000000e+30 : f32
    %63 = vector.broadcast %cst_24 : f32 to vector<8x8xf32>
    %64 = arith.select %9, %62, %63 : vector<8x8xi1>, vector<8x8xf32>
    %cst_25 = arith.constant dense<0xFF800000> : vector<8xf32>
    %65 = vector.multi_reduction <maximumf>, %64, %cst_25 [1] : vector<8x8xf32> to vector<8xf32>
    %66 = vector.shape_cast %65 : vector<8xf32> to vector<8x1xf32>
    %67 = vector.broadcast %66 : vector<8x1xf32> to vector<8x8xf32>
    %68 = arith.subf %64, %67 : vector<8x8xf32>
    %69 = math.exp %68 : vector<8x8xf32>
    %cst_26 = arith.constant dense<0.000000e+00> : vector<8xf32>
    %70 = vector.multi_reduction <add>, %69, %cst_26 [1] : vector<8x8xf32> to vector<8xf32>
    %71 = vector.shape_cast %70 : vector<8xf32> to vector<8x1xf32>
    %72 = arith.truncf %69 : vector<8x8xf32> to vector<8x8xbf16>
    %cst_27 = arith.constant dense<0.000000e+00> : vector<8x8xf32>
    %73 = tpu.matmul %72, %59, %cst_27 {dimension_numbers = #tpu.dot_dimension_numbers<[1], [0], [0], [1], [0, 0, 1, 1], [], []>} : vector<8x8xbf16>, vector<8x8xbf16>, vector<8x8xf32> -> vector<8x8xf32>
    %74 = vector.broadcast %71 : vector<8x1xf32> to vector<8x8xf32>
    %75 = arith.divf %73, %74 : vector<8x8xf32>
    %76 = arith.truncf %75 : vector<8x8xf32> to vector<8x8xbf16>
    %c16 = arith.constant 16 : index
    %c0_28 = arith.constant 0 : index
    %77 = vector.load %arg5[%c16, %c0_28] : memref<32x32xbf16, #tpu.memory_space<vmem>>, vector<8x32xbf16>
    %cst_29 = arith.constant dense<0.000000e+00> : vector<8x32xf32>
    %78 = tpu.matmul %76, %77, %cst_29 {dimension_numbers = #tpu.dot_dimension_numbers<[1], [0], [0], [1], [0, 0, 1, 1], [], []>} : vector<8x8xbf16>, vector<8x32xbf16>, vector<8x32xf32> -> vector<8x32xf32>
    %79 = arith.addf %56, %78 : vector<8x32xf32>
    %80 = vector.extract_strided_slice %1 {offsets = [0, 24], sizes = [8, 8], strides = [1, 1]} : vector<8x32xbf16> to vector<8x8xbf16>
    %81 = vector.extract_strided_slice %3 {offsets = [0, 24], sizes = [8, 8], strides = [1, 1]} : vector<8x64xbf16> to vector<8x8xbf16>
    %82 = vector.extract_strided_slice %3 {offsets = [0, 56], sizes = [8, 8], strides = [1, 1]} : vector<8x64xbf16> to vector<8x8xbf16>
    %cst_30 = arith.constant dense<0.000000e+00> : vector<8x8xf32>
    %83 = tpu.matmul %80, %81, %cst_30 {dimension_numbers = #tpu.dot_dimension_numbers<[1], [1], [0], [0], [0, 0, 1, 0], [], []>} : vector<8x8xbf16>, vector<8x8xbf16>, vector<8x8xf32> -> vector<8x8xf32>
    %cst_31 = arith.constant 0.353553385 : f32
    %84 = vector.broadcast %cst_31 : f32 to vector<8x8xf32>
    %85 = arith.mulf %83, %84 : vector<8x8xf32>
    %cst_32 = arith.constant -1.000000e+30 : f32
    %86 = vector.broadcast %cst_32 : f32 to vector<8x8xf32>
    %87 = arith.select %9, %85, %86 : vector<8x8xi1>, vector<8x8xf32>
    %cst_33 = arith.constant dense<0xFF800000> : vector<8xf32>
    %88 = vector.multi_reduction <maximumf>, %87, %cst_33 [1] : vector<8x8xf32> to vector<8xf32>
    %89 = vector.shape_cast %88 : vector<8xf32> to vector<8x1xf32>
    %90 = vector.broadcast %89 : vector<8x1xf32> to vector<8x8xf32>
    %91 = arith.subf %87, %90 : vector<8x8xf32>
    %92 = math.exp %91 : vector<8x8xf32>
    %cst_34 = arith.constant dense<0.000000e+00> : vector<8xf32>
    %93 = vector.multi_reduction <add>, %92, %cst_34 [1] : vector<8x8xf32> to vector<8xf32>
    %94 = vector.shape_cast %93 : vector<8xf32> to vector<8x1xf32>
    %95 = arith.truncf %92 : vector<8x8xf32> to vector<8x8xbf16>
    %cst_35 = arith.constant dense<0.000000e+00> : vector<8x8xf32>
    %96 = tpu.matmul %95, %82, %cst_35 {dimension_numbers = #tpu.dot_dimension_numbers<[1], [0], [0], [1], [0, 0, 1, 1], [], []>} : vector<8x8xbf16>, vector<8x8xbf16>, vector<8x8xf32> -> vector<8x8xf32>
    %97 = vector.broadcast %94 : vector<8x1xf32> to vector<8x8xf32>
    %98 = arith.divf %96, %97 : vector<8x8xf32>
    %99 = arith.truncf %98 : vector<8x8xf32> to vector<8x8xbf16>
    %c24 = arith.constant 24 : index
    %c0_36 = arith.constant 0 : index
    %100 = vector.load %arg5[%c24, %c0_36] : memref<32x32xbf16, #tpu.memory_space<vmem>>, vector<8x32xbf16>
    %cst_37 = arith.constant dense<0.000000e+00> : vector<8x32xf32>
    %101 = tpu.matmul %99, %100, %cst_37 {dimension_numbers = #tpu.dot_dimension_numbers<[1], [0], [0], [1], [0, 0, 1, 1], [], []>} : vector<8x8xbf16>, vector<8x32xbf16>, vector<8x32xf32> -> vector<8x32xf32>
    %102 = arith.addf %79, %101 : vector<8x32xf32>
    %c0_38 = arith.constant 0 : index
    %c0_39 = arith.constant 0 : index
    %c0_40 = arith.constant 0 : index
    %103 = vector.load %arg4[%c0_38, %c0_39, %c0_40] : memref<1x8x32xf32, #tpu.memory_space<vmem>>, vector<1x8x32xf32>
    %104 = vector.shape_cast %103 : vector<1x8x32xf32> to vector<8x32xf32>
    %105 = arith.addf %104, %102 : vector<8x32xf32>
    %c0_41 = arith.constant 0 : index
    %c0_42 = arith.constant 0 : index
    %106 = vector.load %arg6[%c0_41, %c0_42] : memref<1x32xf32, #tpu.memory_space<vmem>>, vector<1x32xf32>
    %107 = vector.broadcast %106 : vector<1x32xf32> to vector<8x32xf32>
    %108 = arith.addf %105, %107 : vector<8x32xf32>
    %cst_43 = arith.constant dense<0.000000e+00> : vector<8xf32>
    %109 = vector.multi_reduction <add>, %108, %cst_43 [1] : vector<8x32xf32> to vector<8xf32>
    %110 = vector.shape_cast %109 : vector<8xf32> to vector<8x1xf32>
    %cst_44 = arith.constant 3.200000e+01 : f32
    %111 = vector.broadcast %cst_44 : f32 to vector<8x1xf32>
    %112 = arith.divf %110, %111 : vector<8x1xf32>
    %113 = vector.broadcast %112 : vector<8x1xf32> to vector<8x32xf32>
    %114 = arith.subf %108, %113 : vector<8x32xf32>
    %115 = arith.mulf %114, %114 : vector<8x32xf32>
    %cst_45 = arith.constant dense<0.000000e+00> : vector<8xf32>
    %116 = vector.multi_reduction <add>, %115, %cst_45 [1] : vector<8x32xf32> to vector<8xf32>
    %117 = vector.shape_cast %116 : vector<8xf32> to vector<8x1xf32>
    %cst_46 = arith.constant 3.200000e+01 : f32
    %118 = vector.broadcast %cst_46 : f32 to vector<8x1xf32>
    %119 = arith.divf %117, %118 : vector<8x1xf32>
    %cst_47 = arith.constant 9.99999974E-6 : f32
    %120 = vector.broadcast %cst_47 : f32 to vector<8x1xf32>
    %121 = arith.addf %119, %120 : vector<8x1xf32>
    %122 = math.rsqrt %121 : vector<8x1xf32>
    %123 = vector.broadcast %122 : vector<8x1xf32> to vector<8x32xf32>
    %124 = arith.mulf %114, %123 : vector<8x32xf32>
    %c0_48 = arith.constant 0 : index
    %c0_49 = arith.constant 0 : index
    %125 = vector.load %arg7[%c0_48, %c0_49] : memref<1x32xf32, #tpu.memory_space<vmem>>, vector<1x32xf32>
    %126 = vector.broadcast %125 : vector<1x32xf32> to vector<8x32xf32>
    %127 = arith.mulf %124, %126 : vector<8x32xf32>
    %c0_50 = arith.constant 0 : index
    %c0_51 = arith.constant 0 : index
    %128 = vector.load %arg8[%c0_50, %c0_51] : memref<1x32xf32, #tpu.memory_space<vmem>>, vector<1x32xf32>
    %129 = vector.broadcast %128 : vector<1x32xf32> to vector<8x32xf32>
    %130 = arith.addf %127, %129 : vector<8x32xf32>
    %c0_52 = arith.constant 0 : index
    %c0_53 = arith.constant 0 : index
    %c0_54 = arith.constant 0 : index
    %131 = vector.load %arg9[%c0_52, %c0_53, %c0_54] : memref<1x8x32xf32, #tpu.memory_space<vmem>>, vector<1x8x32xf32>
    %132 = vector.shape_cast %131 : vector<1x8x32xf32> to vector<8x32xf32>
    %133 = vector.shape_cast %130 : vector<8x32xf32> to vector<1x8x32xf32>
    tpu.vector_store %arg9[%c0_52, %c0_53, %c0_54], %133 {strides = array<i32>} : memref<1x8x32xf32, #tpu.memory_space<vmem>>, vector<1x8x32xf32>,
    return
  }
  func.func @transform_0(%arg0: i32, %arg1: i32) -> (i32, i32, i32) {
    %c0_i32 = arith.constant 0 : i32
    %c0_i32_0 = arith.constant 0 : i32
    return %arg0, %arg1, %c0_i32 : i32, i32, i32
  }
  func.func @transform_1(%arg0: i32, %arg1: i32) -> (i32, i32, i32) {
    %c0_i32 = arith.constant 0 : i32
    %c0_i32_0 = arith.constant 0 : i32
    %c0_i32_1 = arith.constant 0 : i32
    return %arg0, %c0_i32, %c0_i32_0 : i32, i32, i32
  }
  func.func @transform_2(%arg0: i32, %arg1: i32) -> (i32, i32, i32) {
    %c0_i32 = arith.constant 0 : i32
    %c0_i32_0 = arith.constant 0 : i32
    return %arg0, %arg1, %c0_i32 : i32, i32, i32
  }
  func.func @transform_3(%arg0: i32, %arg1: i32) -> (i32, i32) {
    %c0_i32 = arith.constant 0 : i32
    %c0_i32_0 = arith.constant 0 : i32
    %c0_i32_1 = arith.constant 0 : i32
    return %c0_i32, %c0_i32_0 : i32, i32
  }
  func.func @transform_4(%arg0: i32, %arg1: i32) -> (i32, i32) {
    %c0_i32 = arith.constant 0 : i32
    %c0_i32_0 = arith.constant 0 : i32
    %c0_i32_1 = arith.constant 0 : i32
    return %c0_i32, %c0_i32_0 : i32, i32
  }
  func.func @transform_5(%arg0: i32, %arg1: i32) -> (i32, i32) {
    %c0_i32 = arith.constant 0 : i32
    %c0_i32_0 = arith.constant 0 : i32
    %c0_i32_1 = arith.constant 0 : i32
    return %c0_i32, %c0_i32_0 : i32, i32
  }
  func.func @transform_6(%arg0: i32, %arg1: i32) -> (i32, i32) {
    %c0_i32 = arith.constant 0 : i32
    %c0_i32_0 = arith.constant 0 : i32
    %c0_i32_1 = arith.constant 0 : i32
    return %c0_i32, %c0_i32_0 : i32, i32
  }
  func.func @transform_7(%arg0: i32, %arg1: i32) -> (i32, i32, i32) {
    %c0_i32 = arith.constant 0 : i32
    %c0_i32_0 = arith.constant 0 : i32
    return %arg0, %arg1, %c0_i32 : i32, i32, i32
  }
}

module attributes {stable_mosaic.version = 11 : i64} {
  func.func @_ffn_res_ln_kernel(%arg0: i32, %arg1: memref<16x32xf32, #tpu.memory_space<vmem>>, %arg2: memref<32x64xbf16, #tpu.memory_space<vmem>>, %arg3: memref<1x64xf32, #tpu.memory_space<vmem>>, %arg4: memref<64x32xbf16, #tpu.memory_space<vmem>>, %arg5: memref<1x32xf32, #tpu.memory_space<vmem>>, %arg6: memref<1x32xf32, #tpu.memory_space<vmem>>, %arg7: memref<1x32xf32, #tpu.memory_space<vmem>>, %arg8: memref<16x32xf32, #tpu.memory_space<vmem>>) attributes {dimension_semantics = [#tpu.dimension_semantics<parallel>], iteration_bounds = array<i64: 1>, scalar_prefetch = 0 : i64, scratch_operands = 0 : i64, tpu.core_type = #tpu.core_type<tc>, window_params = [{transform_indices = @transform_0, window_bounds = array<i64: 16, 32>}, {pipeline_mode = #tpu.pipeline_mode<synchronous>, transform_indices = @transform_1, window_bounds = array<i64: 32, 64>}, {pipeline_mode = #tpu.pipeline_mode<synchronous>, transform_indices = @transform_2, window_bounds = array<i64: 1, 64>}, {pipeline_mode = #tpu.pipeline_mode<synchronous>, transform_indices = @transform_3, window_bounds = array<i64: 64, 32>}, {pipeline_mode = #tpu.pipeline_mode<synchronous>, transform_indices = @transform_4, window_bounds = array<i64: 1, 32>}, {pipeline_mode = #tpu.pipeline_mode<synchronous>, transform_indices = @transform_5, window_bounds = array<i64: 1, 32>}, {pipeline_mode = #tpu.pipeline_mode<synchronous>, transform_indices = @transform_6, window_bounds = array<i64: 1, 32>}, {transform_indices = @transform_7, window_bounds = array<i64: 16, 32>}]} {
    %c0 = arith.constant 0 : index
    %c0_0 = arith.constant 0 : index
    %0 = vector.load %arg1[%c0, %c0_0] : memref<16x32xf32, #tpu.memory_space<vmem>>, vector<16x32xf32>
    %c0_1 = arith.constant 0 : index
    %c0_2 = arith.constant 0 : index
    %1 = vector.load %arg1[%c0_1, %c0_2] : memref<16x32xf32, #tpu.memory_space<vmem>>, vector<16x32xf32>
    %2 = arith.truncf %1 : vector<16x32xf32> to vector<16x32xbf16>
    %c0_3 = arith.constant 0 : index
    %c0_4 = arith.constant 0 : index
    %3 = vector.load %arg2[%c0_3, %c0_4] : memref<32x64xbf16, #tpu.memory_space<vmem>>, vector<32x64xbf16>
    %cst = arith.constant dense<0.000000e+00> : vector<16x64xf32>
    %4 = tpu.matmul %2, %3, %cst {dimension_numbers = #tpu.dot_dimension_numbers<[1], [0], [0], [1], [0, 0, 1, 1], [], []>} : vector<16x32xbf16>, vector<32x64xbf16>, vector<16x64xf32> -> vector<16x64xf32>
    %c0_5 = arith.constant 0 : index
    %c0_6 = arith.constant 0 : index
    %5 = vector.load %arg3[%c0_5, %c0_6] : memref<1x64xf32, #tpu.memory_space<vmem>>, vector<1x64xf32>
    %6 = vector.broadcast %5 : vector<1x64xf32> to vector<16x64xf32>
    %7 = arith.addf %4, %6 : vector<16x64xf32>
    %cst_7 = arith.constant 0.000000e+00 : f32
    %8 = vector.broadcast %cst_7 : f32 to vector<16x64xf32>
    %9 = arith.maximumf %7, %8 : vector<16x64xf32>
    %10 = arith.truncf %9 : vector<16x64xf32> to vector<16x64xbf16>
    %c0_8 = arith.constant 0 : index
    %c0_9 = arith.constant 0 : index
    %11 = vector.load %arg4[%c0_8, %c0_9] : memref<64x32xbf16, #tpu.memory_space<vmem>>, vector<64x32xbf16>
    %cst_10 = arith.constant dense<0.000000e+00> : vector<16x32xf32>
    %12 = tpu.matmul %10, %11, %cst_10 {dimension_numbers = #tpu.dot_dimension_numbers<[1], [0], [0], [1], [0, 0, 1, 1], [], []>} : vector<16x64xbf16>, vector<64x32xbf16>, vector<16x32xf32> -> vector<16x32xf32>
    %c0_11 = arith.constant 0 : index
    %c0_12 = arith.constant 0 : index
    %13 = vector.load %arg5[%c0_11, %c0_12] : memref<1x32xf32, #tpu.memory_space<vmem>>, vector<1x32xf32>
    %14 = vector.broadcast %13 : vector<1x32xf32> to vector<16x32xf32>
    %15 = arith.addf %12, %14 : vector<16x32xf32>
    %16 = arith.addf %0, %15 : vector<16x32xf32>
    %cst_13 = arith.constant dense<0.000000e+00> : vector<16xf32>
    %17 = vector.multi_reduction <add>, %16, %cst_13 [1] : vector<16x32xf32> to vector<16xf32>
    %18 = vector.shape_cast %17 : vector<16xf32> to vector<16x1xf32>
    %cst_14 = arith.constant 3.200000e+01 : f32
    %19 = vector.broadcast %cst_14 : f32 to vector<16x1xf32>
    %20 = arith.divf %18, %19 : vector<16x1xf32>
    %21 = vector.broadcast %20 : vector<16x1xf32> to vector<16x32xf32>
    %22 = arith.subf %16, %21 : vector<16x32xf32>
    %23 = arith.mulf %22, %22 : vector<16x32xf32>
    %cst_15 = arith.constant dense<0.000000e+00> : vector<16xf32>
    %24 = vector.multi_reduction <add>, %23, %cst_15 [1] : vector<16x32xf32> to vector<16xf32>
    %25 = vector.shape_cast %24 : vector<16xf32> to vector<16x1xf32>
    %cst_16 = arith.constant 3.200000e+01 : f32
    %26 = vector.broadcast %cst_16 : f32 to vector<16x1xf32>
    %27 = arith.divf %25, %26 : vector<16x1xf32>
    %cst_17 = arith.constant 9.99999974E-6 : f32
    %28 = vector.broadcast %cst_17 : f32 to vector<16x1xf32>
    %29 = arith.addf %27, %28 : vector<16x1xf32>
    %30 = math.rsqrt %29 : vector<16x1xf32>
    %31 = vector.broadcast %30 : vector<16x1xf32> to vector<16x32xf32>
    %32 = arith.mulf %22, %31 : vector<16x32xf32>
    %c0_18 = arith.constant 0 : index
    %c0_19 = arith.constant 0 : index
    %33 = vector.load %arg6[%c0_18, %c0_19] : memref<1x32xf32, #tpu.memory_space<vmem>>, vector<1x32xf32>
    %34 = vector.broadcast %33 : vector<1x32xf32> to vector<16x32xf32>
    %35 = arith.mulf %32, %34 : vector<16x32xf32>
    %c0_20 = arith.constant 0 : index
    %c0_21 = arith.constant 0 : index
    %36 = vector.load %arg7[%c0_20, %c0_21] : memref<1x32xf32, #tpu.memory_space<vmem>>, vector<1x32xf32>
    %37 = vector.broadcast %36 : vector<1x32xf32> to vector<16x32xf32>
    %38 = arith.addf %35, %37 : vector<16x32xf32>
    %c0_22 = arith.constant 0 : index
    %c0_23 = arith.constant 0 : index
    %39 = vector.load %arg8[%c0_22, %c0_23] : memref<16x32xf32, #tpu.memory_space<vmem>>, vector<16x32xf32>
    tpu.vector_store %arg8[%c0_22, %c0_23], %38 {strides = array<i32>} : memref<16x32xf32, #tpu.memory_space<vmem>>, vector<16x32xf32>,
    return
  }
  func.func @transform_0(%arg0: i32) -> (i32, i32) {
    %c0_i32 = arith.constant 0 : i32
    %c0_i32_0 = arith.constant 0 : i32
    return %arg0, %c0_i32 : i32, i32
  }
  func.func @transform_1(%arg0: i32) -> (i32, i32) {
    %c0_i32 = arith.constant 0 : i32
    %c0_i32_0 = arith.constant 0 : i32
    %c0_i32_1 = arith.constant 0 : i32
    return %c0_i32, %c0_i32_0 : i32, i32
  }
  func.func @transform_2(%arg0: i32) -> (i32, i32) {
    %c0_i32 = arith.constant 0 : i32
    %c0_i32_0 = arith.constant 0 : i32
    %c0_i32_1 = arith.constant 0 : i32
    return %c0_i32, %c0_i32_0 : i32, i32
  }
  func.func @transform_3(%arg0: i32) -> (i32, i32) {
    %c0_i32 = arith.constant 0 : i32
    %c0_i32_0 = arith.constant 0 : i32
    %c0_i32_1 = arith.constant 0 : i32
    return %c0_i32, %c0_i32_0 : i32, i32
  }
  func.func @transform_4(%arg0: i32) -> (i32, i32) {
    %c0_i32 = arith.constant 0 : i32
    %c0_i32_0 = arith.constant 0 : i32
    %c0_i32_1 = arith.constant 0 : i32
    return %c0_i32, %c0_i32_0 : i32, i32
  }
  func.func @transform_5(%arg0: i32) -> (i32, i32) {
    %c0_i32 = arith.constant 0 : i32
    %c0_i32_0 = arith.constant 0 : i32
    %c0_i32_1 = arith.constant 0 : i32
    return %c0_i32, %c0_i32_0 : i32, i32
  }
  func.func @transform_6(%arg0: i32) -> (i32, i32) {
    %c0_i32 = arith.constant 0 : i32
    %c0_i32_0 = arith.constant 0 : i32
    %c0_i32_1 = arith.constant 0 : i32
    return %c0_i32, %c0_i32_0 : i32, i32
  }
  func.func @transform_7(%arg0: i32) -> (i32, i32) {
    %c0_i32 = arith.constant 0 : i32
    %c0_i32_0 = arith.constant 0 : i32
    return %arg0, %c0_i32 : i32, i32
  }
}

module attributes {stable_mosaic.version = 11 : i64} {
  func.func @_attn_proj_res_ln_kernel(%arg0: i32, %arg1: i32, %arg2: memref<1x8x32xbf16, #tpu.memory_space<vmem>>, %arg3: memref<1x8x64xbf16, #tpu.memory_space<vmem>>, %arg4: memref<1x8x32xf32, #tpu.memory_space<vmem>>, %arg5: memref<32x32xbf16, #tpu.memory_space<vmem>>, %arg6: memref<1x32xf32, #tpu.memory_space<vmem>>, %arg7: memref<1x32xf32, #tpu.memory_space<vmem>>, %arg8: memref<1x32xf32, #tpu.memory_space<vmem>>, %arg9: memref<1x8x32xf32, #tpu.memory_space<vmem>>) attributes {dimension_semantics = [#tpu.dimension_semantics<parallel>, #tpu.dimension_semantics<parallel>], iteration_bounds = array<i64: 2, 1>, scalar_prefetch = 0 : i64, scratch_operands = 0 : i64, tpu.core_type = #tpu.core_type<tc>, window_params = [{transform_indices = @transform_0, window_bounds = array<i64: 1, 8, 32>}, {transform_indices = @transform_1, window_bounds = array<i64: 1, 8, 64>}, {transform_indices = @transform_2, window_bounds = array<i64: 1, 8, 32>}, {pipeline_mode = #tpu.pipeline_mode<synchronous>, transform_indices = @transform_3, window_bounds = array<i64: 32, 32>}, {pipeline_mode = #tpu.pipeline_mode<synchronous>, transform_indices = @transform_4, window_bounds = array<i64: 1, 32>}, {pipeline_mode = #tpu.pipeline_mode<synchronous>, transform_indices = @transform_5, window_bounds = array<i64: 1, 32>}, {pipeline_mode = #tpu.pipeline_mode<synchronous>, transform_indices = @transform_6, window_bounds = array<i64: 1, 32>}, {transform_indices = @transform_7, window_bounds = array<i64: 1, 8, 32>}]} {
    %c0 = arith.constant 0 : index
    %c0_0 = arith.constant 0 : index
    %c0_1 = arith.constant 0 : index
    %0 = vector.load %arg2[%c0, %c0_0, %c0_1] : memref<1x8x32xbf16, #tpu.memory_space<vmem>>, vector<1x8x32xbf16>
    %1 = vector.shape_cast %0 : vector<1x8x32xbf16> to vector<8x32xbf16>
    %c0_2 = arith.constant 0 : index
    %c0_3 = arith.constant 0 : index
    %c0_4 = arith.constant 0 : index
    %2 = vector.load %arg3[%c0_2, %c0_3, %c0_4] : memref<1x8x64xbf16, #tpu.memory_space<vmem>>, vector<1x8x64xbf16>
    %3 = vector.shape_cast %2 : vector<1x8x64xbf16> to vector<8x64xbf16>
    %cst = arith.constant 0.000000e+00 : f32
    %4 = vector.broadcast %cst : f32 to vector<8x32xf32>
    %5 = vector.extract_strided_slice %1 {offsets = [0, 0], sizes = [8, 8], strides = [1, 1]} : vector<8x32xbf16> to vector<8x8xbf16>
    %6 = vector.extract_strided_slice %3 {offsets = [0, 0], sizes = [8, 8], strides = [1, 1]} : vector<8x64xbf16> to vector<8x8xbf16>
    %7 = vector.extract_strided_slice %3 {offsets = [0, 32], sizes = [8, 8], strides = [1, 1]} : vector<8x64xbf16> to vector<8x8xbf16>
    %cst_5 = arith.constant dense<0.000000e+00> : vector<8x8xf32>
    %8 = tpu.matmul %5, %6, %cst_5 {dimension_numbers = #tpu.dot_dimension_numbers<[1], [1], [0], [0], [0, 0, 1, 0], [], []>} : vector<8x8xbf16>, vector<8x8xbf16>, vector<8x8xf32> -> vector<8x8xf32>
    %cst_6 = arith.constant 0.353553385 : f32
    %9 = vector.broadcast %cst_6 : f32 to vector<8x8xf32>
    %10 = arith.mulf %8, %9 : vector<8x8xf32>
    %cst_7 = arith.constant dense<0xFF800000> : vector<8xf32>
    %11 = vector.multi_reduction <maximumf>, %10, %cst_7 [1] : vector<8x8xf32> to vector<8xf32>
    %12 = vector.shape_cast %11 : vector<8xf32> to vector<8x1xf32>
    %13 = vector.broadcast %12 : vector<8x1xf32> to vector<8x8xf32>
    %14 = arith.subf %10, %13 : vector<8x8xf32>
    %15 = math.exp %14 : vector<8x8xf32>
    %cst_8 = arith.constant dense<0.000000e+00> : vector<8xf32>
    %16 = vector.multi_reduction <add>, %15, %cst_8 [1] : vector<8x8xf32> to vector<8xf32>
    %17 = vector.shape_cast %16 : vector<8xf32> to vector<8x1xf32>
    %18 = arith.truncf %15 : vector<8x8xf32> to vector<8x8xbf16>
    %cst_9 = arith.constant dense<0.000000e+00> : vector<8x8xf32>
    %19 = tpu.matmul %18, %7, %cst_9 {dimension_numbers = #tpu.dot_dimension_numbers<[1], [0], [0], [1], [0, 0, 1, 1], [], []>} : vector<8x8xbf16>, vector<8x8xbf16>, vector<8x8xf32> -> vector<8x8xf32>
    %20 = vector.broadcast %17 : vector<8x1xf32> to vector<8x8xf32>
    %21 = arith.divf %19, %20 : vector<8x8xf32>
    %22 = arith.truncf %21 : vector<8x8xf32> to vector<8x8xbf16>
    %c0_10 = arith.constant 0 : index
    %c0_11 = arith.constant 0 : index
    %23 = vector.load %arg5[%c0_10, %c0_11] : memref<32x32xbf16, #tpu.memory_space<vmem>>, vector<8x32xbf16>
    %cst_12 = arith.constant dense<0.000000e+00> : vector<8x32xf32>
    %24 = tpu.matmul %22, %23, %cst_12 {dimension_numbers = #tpu.dot_dimension_numbers<[1], [0], [0], [1], [0, 0, 1, 1], [], []>} : vector<8x8xbf16>, vector<8x32xbf16>, vector<8x32xf32> -> vector<8x32xf32>
    %25 = arith.addf %4, %24 : vector<8x32xf32>
    %26 = vector.extract_strided_slice %1 {offsets = [0, 8], sizes = [8, 8], strides = [1, 1]} : vector<8x32xbf16> to vector<8x8xbf16>
    %27 = vector.extract_strided_slice %3 {offsets = [0, 8], sizes = [8, 8], strides = [1, 1]} : vector<8x64xbf16> to vector<8x8xbf16>
    %28 = vector.extract_strided_slice %3 {offsets = [0, 40], sizes = [8, 8], strides = [1, 1]} : vector<8x64xbf16> to vector<8x8xbf16>
    %cst_13 = arith.constant dense<0.000000e+00> : vector<8x8xf32>
    %29 = tpu.matmul %26, %27, %cst_13 {dimension_numbers = #tpu.dot_dimension_numbers<[1], [1], [0], [0], [0, 0, 1, 0], [], []>} : vector<8x8xbf16>, vector<8x8xbf16>, vector<8x8xf32> -> vector<8x8xf32>
    %cst_14 = arith.constant 0.353553385 : f32
    %30 = vector.broadcast %cst_14 : f32 to vector<8x8xf32>
    %31 = arith.mulf %29, %30 : vector<8x8xf32>
    %cst_15 = arith.constant dense<0xFF800000> : vector<8xf32>
    %32 = vector.multi_reduction <maximumf>, %31, %cst_15 [1] : vector<8x8xf32> to vector<8xf32>
    %33 = vector.shape_cast %32 : vector<8xf32> to vector<8x1xf32>
    %34 = vector.broadcast %33 : vector<8x1xf32> to vector<8x8xf32>
    %35 = arith.subf %31, %34 : vector<8x8xf32>
    %36 = math.exp %35 : vector<8x8xf32>
    %cst_16 = arith.constant dense<0.000000e+00> : vector<8xf32>
    %37 = vector.multi_reduction <add>, %36, %cst_16 [1] : vector<8x8xf32> to vector<8xf32>
    %38 = vector.shape_cast %37 : vector<8xf32> to vector<8x1xf32>
    %39 = arith.truncf %36 : vector<8x8xf32> to vector<8x8xbf16>
    %cst_17 = arith.constant dense<0.000000e+00> : vector<8x8xf32>
    %40 = tpu.matmul %39, %28, %cst_17 {dimension_numbers = #tpu.dot_dimension_numbers<[1], [0], [0], [1], [0, 0, 1, 1], [], []>} : vector<8x8xbf16>, vector<8x8xbf16>, vector<8x8xf32> -> vector<8x8xf32>
    %41 = vector.broadcast %38 : vector<8x1xf32> to vector<8x8xf32>
    %42 = arith.divf %40, %41 : vector<8x8xf32>
    %43 = arith.truncf %42 : vector<8x8xf32> to vector<8x8xbf16>
    %c8 = arith.constant 8 : index
    %c0_18 = arith.constant 0 : index
    %44 = vector.load %arg5[%c8, %c0_18] : memref<32x32xbf16, #tpu.memory_space<vmem>>, vector<8x32xbf16>
    %cst_19 = arith.constant dense<0.000000e+00> : vector<8x32xf32>
    %45 = tpu.matmul %43, %44, %cst_19 {dimension_numbers = #tpu.dot_dimension_numbers<[1], [0], [0], [1], [0, 0, 1, 1], [], []>} : vector<8x8xbf16>, vector<8x32xbf16>, vector<8x32xf32> -> vector<8x32xf32>
    %46 = arith.addf %25, %45 : vector<8x32xf32>
    %47 = vector.extract_strided_slice %1 {offsets = [0, 16], sizes = [8, 8], strides = [1, 1]} : vector<8x32xbf16> to vector<8x8xbf16>
    %48 = vector.extract_strided_slice %3 {offsets = [0, 16], sizes = [8, 8], strides = [1, 1]} : vector<8x64xbf16> to vector<8x8xbf16>
    %49 = vector.extract_strided_slice %3 {offsets = [0, 48], sizes = [8, 8], strides = [1, 1]} : vector<8x64xbf16> to vector<8x8xbf16>
    %cst_20 = arith.constant dense<0.000000e+00> : vector<8x8xf32>
    %50 = tpu.matmul %47, %48, %cst_20 {dimension_numbers = #tpu.dot_dimension_numbers<[1], [1], [0], [0], [0, 0, 1, 0], [], []>} : vector<8x8xbf16>, vector<8x8xbf16>, vector<8x8xf32> -> vector<8x8xf32>
    %cst_21 = arith.constant 0.353553385 : f32
    %51 = vector.broadcast %cst_21 : f32 to vector<8x8xf32>
    %52 = arith.mulf %50, %51 : vector<8x8xf32>
    %cst_22 = arith.constant dense<0xFF800000> : vector<8xf32>
    %53 = vector.multi_reduction <maximumf>, %52, %cst_22 [1] : vector<8x8xf32> to vector<8xf32>
    %54 = vector.shape_cast %53 : vector<8xf32> to vector<8x1xf32>
    %55 = vector.broadcast %54 : vector<8x1xf32> to vector<8x8xf32>
    %56 = arith.subf %52, %55 : vector<8x8xf32>
    %57 = math.exp %56 : vector<8x8xf32>
    %cst_23 = arith.constant dense<0.000000e+00> : vector<8xf32>
    %58 = vector.multi_reduction <add>, %57, %cst_23 [1] : vector<8x8xf32> to vector<8xf32>
    %59 = vector.shape_cast %58 : vector<8xf32> to vector<8x1xf32>
    %60 = arith.truncf %57 : vector<8x8xf32> to vector<8x8xbf16>
    %cst_24 = arith.constant dense<0.000000e+00> : vector<8x8xf32>
    %61 = tpu.matmul %60, %49, %cst_24 {dimension_numbers = #tpu.dot_dimension_numbers<[1], [0], [0], [1], [0, 0, 1, 1], [], []>} : vector<8x8xbf16>, vector<8x8xbf16>, vector<8x8xf32> -> vector<8x8xf32>
    %62 = vector.broadcast %59 : vector<8x1xf32> to vector<8x8xf32>
    %63 = arith.divf %61, %62 : vector<8x8xf32>
    %64 = arith.truncf %63 : vector<8x8xf32> to vector<8x8xbf16>
    %c16 = arith.constant 16 : index
    %c0_25 = arith.constant 0 : index
    %65 = vector.load %arg5[%c16, %c0_25] : memref<32x32xbf16, #tpu.memory_space<vmem>>, vector<8x32xbf16>
    %cst_26 = arith.constant dense<0.000000e+00> : vector<8x32xf32>
    %66 = tpu.matmul %64, %65, %cst_26 {dimension_numbers = #tpu.dot_dimension_numbers<[1], [0], [0], [1], [0, 0, 1, 1], [], []>} : vector<8x8xbf16>, vector<8x32xbf16>, vector<8x32xf32> -> vector<8x32xf32>
    %67 = arith.addf %46, %66 : vector<8x32xf32>
    %68 = vector.extract_strided_slice %1 {offsets = [0, 24], sizes = [8, 8], strides = [1, 1]} : vector<8x32xbf16> to vector<8x8xbf16>
    %69 = vector.extract_strided_slice %3 {offsets = [0, 24], sizes = [8, 8], strides = [1, 1]} : vector<8x64xbf16> to vector<8x8xbf16>
    %70 = vector.extract_strided_slice %3 {offsets = [0, 56], sizes = [8, 8], strides = [1, 1]} : vector<8x64xbf16> to vector<8x8xbf16>
    %cst_27 = arith.constant dense<0.000000e+00> : vector<8x8xf32>
    %71 = tpu.matmul %68, %69, %cst_27 {dimension_numbers = #tpu.dot_dimension_numbers<[1], [1], [0], [0], [0, 0, 1, 0], [], []>} : vector<8x8xbf16>, vector<8x8xbf16>, vector<8x8xf32> -> vector<8x8xf32>
    %cst_28 = arith.constant 0.353553385 : f32
    %72 = vector.broadcast %cst_28 : f32 to vector<8x8xf32>
    %73 = arith.mulf %71, %72 : vector<8x8xf32>
    %cst_29 = arith.constant dense<0xFF800000> : vector<8xf32>
    %74 = vector.multi_reduction <maximumf>, %73, %cst_29 [1] : vector<8x8xf32> to vector<8xf32>
    %75 = vector.shape_cast %74 : vector<8xf32> to vector<8x1xf32>
    %76 = vector.broadcast %75 : vector<8x1xf32> to vector<8x8xf32>
    %77 = arith.subf %73, %76 : vector<8x8xf32>
    %78 = math.exp %77 : vector<8x8xf32>
    %cst_30 = arith.constant dense<0.000000e+00> : vector<8xf32>
    %79 = vector.multi_reduction <add>, %78, %cst_30 [1] : vector<8x8xf32> to vector<8xf32>
    %80 = vector.shape_cast %79 : vector<8xf32> to vector<8x1xf32>
    %81 = arith.truncf %78 : vector<8x8xf32> to vector<8x8xbf16>
    %cst_31 = arith.constant dense<0.000000e+00> : vector<8x8xf32>
    %82 = tpu.matmul %81, %70, %cst_31 {dimension_numbers = #tpu.dot_dimension_numbers<[1], [0], [0], [1], [0, 0, 1, 1], [], []>} : vector<8x8xbf16>, vector<8x8xbf16>, vector<8x8xf32> -> vector<8x8xf32>
    %83 = vector.broadcast %80 : vector<8x1xf32> to vector<8x8xf32>
    %84 = arith.divf %82, %83 : vector<8x8xf32>
    %85 = arith.truncf %84 : vector<8x8xf32> to vector<8x8xbf16>
    %c24 = arith.constant 24 : index
    %c0_32 = arith.constant 0 : index
    %86 = vector.load %arg5[%c24, %c0_32] : memref<32x32xbf16, #tpu.memory_space<vmem>>, vector<8x32xbf16>
    %cst_33 = arith.constant dense<0.000000e+00> : vector<8x32xf32>
    %87 = tpu.matmul %85, %86, %cst_33 {dimension_numbers = #tpu.dot_dimension_numbers<[1], [0], [0], [1], [0, 0, 1, 1], [], []>} : vector<8x8xbf16>, vector<8x32xbf16>, vector<8x32xf32> -> vector<8x32xf32>
    %88 = arith.addf %67, %87 : vector<8x32xf32>
    %c0_34 = arith.constant 0 : index
    %c0_35 = arith.constant 0 : index
    %c0_36 = arith.constant 0 : index
    %89 = vector.load %arg4[%c0_34, %c0_35, %c0_36] : memref<1x8x32xf32, #tpu.memory_space<vmem>>, vector<1x8x32xf32>
    %90 = vector.shape_cast %89 : vector<1x8x32xf32> to vector<8x32xf32>
    %91 = arith.addf %90, %88 : vector<8x32xf32>
    %c0_37 = arith.constant 0 : index
    %c0_38 = arith.constant 0 : index
    %92 = vector.load %arg6[%c0_37, %c0_38] : memref<1x32xf32, #tpu.memory_space<vmem>>, vector<1x32xf32>
    %93 = vector.broadcast %92 : vector<1x32xf32> to vector<8x32xf32>
    %94 = arith.addf %91, %93 : vector<8x32xf32>
    %cst_39 = arith.constant dense<0.000000e+00> : vector<8xf32>
    %95 = vector.multi_reduction <add>, %94, %cst_39 [1] : vector<8x32xf32> to vector<8xf32>
    %96 = vector.shape_cast %95 : vector<8xf32> to vector<8x1xf32>
    %cst_40 = arith.constant 3.200000e+01 : f32
    %97 = vector.broadcast %cst_40 : f32 to vector<8x1xf32>
    %98 = arith.divf %96, %97 : vector<8x1xf32>
    %99 = vector.broadcast %98 : vector<8x1xf32> to vector<8x32xf32>
    %100 = arith.subf %94, %99 : vector<8x32xf32>
    %101 = arith.mulf %100, %100 : vector<8x32xf32>
    %cst_41 = arith.constant dense<0.000000e+00> : vector<8xf32>
    %102 = vector.multi_reduction <add>, %101, %cst_41 [1] : vector<8x32xf32> to vector<8xf32>
    %103 = vector.shape_cast %102 : vector<8xf32> to vector<8x1xf32>
    %cst_42 = arith.constant 3.200000e+01 : f32
    %104 = vector.broadcast %cst_42 : f32 to vector<8x1xf32>
    %105 = arith.divf %103, %104 : vector<8x1xf32>
    %cst_43 = arith.constant 9.99999974E-6 : f32
    %106 = vector.broadcast %cst_43 : f32 to vector<8x1xf32>
    %107 = arith.addf %105, %106 : vector<8x1xf32>
    %108 = math.rsqrt %107 : vector<8x1xf32>
    %109 = vector.broadcast %108 : vector<8x1xf32> to vector<8x32xf32>
    %110 = arith.mulf %100, %109 : vector<8x32xf32>
    %c0_44 = arith.constant 0 : index
    %c0_45 = arith.constant 0 : index
    %111 = vector.load %arg7[%c0_44, %c0_45] : memref<1x32xf32, #tpu.memory_space<vmem>>, vector<1x32xf32>
    %112 = vector.broadcast %111 : vector<1x32xf32> to vector<8x32xf32>
    %113 = arith.mulf %110, %112 : vector<8x32xf32>
    %c0_46 = arith.constant 0 : index
    %c0_47 = arith.constant 0 : index
    %114 = vector.load %arg8[%c0_46, %c0_47] : memref<1x32xf32, #tpu.memory_space<vmem>>, vector<1x32xf32>
    %115 = vector.broadcast %114 : vector<1x32xf32> to vector<8x32xf32>
    %116 = arith.addf %113, %115 : vector<8x32xf32>
    %c0_48 = arith.constant 0 : index
    %c0_49 = arith.constant 0 : index
    %c0_50 = arith.constant 0 : index
    %117 = vector.load %arg9[%c0_48, %c0_49, %c0_50] : memref<1x8x32xf32, #tpu.memory_space<vmem>>, vector<1x8x32xf32>
    %118 = vector.shape_cast %117 : vector<1x8x32xf32> to vector<8x32xf32>
    %119 = vector.shape_cast %116 : vector<8x32xf32> to vector<1x8x32xf32>
    tpu.vector_store %arg9[%c0_48, %c0_49, %c0_50], %119 {strides = array<i32>} : memref<1x8x32xf32, #tpu.memory_space<vmem>>, vector<1x8x32xf32>,
    return
  }
  func.func @transform_0(%arg0: i32, %arg1: i32) -> (i32, i32, i32) {
    %c0_i32 = arith.constant 0 : i32
    %c0_i32_0 = arith.constant 0 : i32
    return %arg0, %arg1, %c0_i32 : i32, i32, i32
  }
  func.func @transform_1(%arg0: i32, %arg1: i32) -> (i32, i32, i32) {
    %c0_i32 = arith.constant 0 : i32
    %c0_i32_0 = arith.constant 0 : i32
    %c0_i32_1 = arith.constant 0 : i32
    return %arg0, %c0_i32, %c0_i32_0 : i32, i32, i32
  }
  func.func @transform_2(%arg0: i32, %arg1: i32) -> (i32, i32, i32) {
    %c0_i32 = arith.constant 0 : i32
    %c0_i32_0 = arith.constant 0 : i32
    return %arg0, %arg1, %c0_i32 : i32, i32, i32
  }
  func.func @transform_3(%arg0: i32, %arg1: i32) -> (i32, i32) {
    %c0_i32 = arith.constant 0 : i32
    %c0_i32_0 = arith.constant 0 : i32
    %c0_i32_1 = arith.constant 0 : i32
    return %c0_i32, %c0_i32_0 : i32, i32
  }
  func.func @transform_4(%arg0: i32, %arg1: i32) -> (i32, i32) {
    %c0_i32 = arith.constant 0 : i32
    %c0_i32_0 = arith.constant 0 : i32
    %c0_i32_1 = arith.constant 0 : i32
    return %c0_i32, %c0_i32_0 : i32, i32
  }
  func.func @transform_5(%arg0: i32, %arg1: i32) -> (i32, i32) {
    %c0_i32 = arith.constant 0 : i32
    %c0_i32_0 = arith.constant 0 : i32
    %c0_i32_1 = arith.constant 0 : i32
    return %c0_i32, %c0_i32_0 : i32, i32
  }
  func.func @transform_6(%arg0: i32, %arg1: i32) -> (i32, i32) {
    %c0_i32 = arith.constant 0 : i32
    %c0_i32_0 = arith.constant 0 : i32
    %c0_i32_1 = arith.constant 0 : i32
    return %c0_i32, %c0_i32_0 : i32, i32
  }
  func.func @transform_7(%arg0: i32, %arg1: i32) -> (i32, i32, i32) {
    %c0_i32 = arith.constant 0 : i32
    %c0_i32_0 = arith.constant 0 : i32
    return %arg0, %arg1, %c0_i32 : i32, i32, i32
  }
}

module attributes {stable_mosaic.version = 11 : i64} {
  func.func @_qkv_split_kernel(%arg0: i32, %arg1: memref<16x32xf32, #tpu.memory_space<vmem>>, %arg2: memref<32x96xbf16, #tpu.memory_space<vmem>>, %arg3: memref<1x96xf32, #tpu.memory_space<vmem>>, %arg4: memref<16x32xbf16, #tpu.memory_space<vmem>>, %arg5: memref<16x64xbf16, #tpu.memory_space<vmem>>) attributes {dimension_semantics = [#tpu.dimension_semantics<parallel>], iteration_bounds = array<i64: 1>, scalar_prefetch = 0 : i64, scratch_operands = 0 : i64, tpu.core_type = #tpu.core_type<tc>, window_params = [{transform_indices = @transform_0, window_bounds = array<i64: 16, 32>}, {pipeline_mode = #tpu.pipeline_mode<synchronous>, transform_indices = @transform_1, window_bounds = array<i64: 32, 96>}, {pipeline_mode = #tpu.pipeline_mode<synchronous>, transform_indices = @transform_2, window_bounds = array<i64: 1, 96>}, {transform_indices = @transform_3, window_bounds = array<i64: 16, 32>}, {transform_indices = @transform_4, window_bounds = array<i64: 16, 64>}]} {
    %c0 = arith.constant 0 : index
    %c0_0 = arith.constant 0 : index
    %0 = vector.load %arg1[%c0, %c0_0] : memref<16x32xf32, #tpu.memory_space<vmem>>, vector<16x32xf32>
    %1 = arith.truncf %0 : vector<16x32xf32> to vector<16x32xbf16>
    %c0_1 = arith.constant 0 : index
    %c0_2 = arith.constant 0 : index
    %2 = vector.load %arg2[%c0_1, %c0_2] : memref<32x96xbf16, #tpu.memory_space<vmem>>, vector<32x96xbf16>
    %cst = arith.constant dense<0.000000e+00> : vector<16x96xf32>
    %3 = tpu.matmul %1, %2, %cst {dimension_numbers = #tpu.dot_dimension_numbers<[1], [0], [0], [1], [0, 0, 1, 1], [], []>} : vector<16x32xbf16>, vector<32x96xbf16>, vector<16x96xf32> -> vector<16x96xf32>
    %c0_3 = arith.constant 0 : index
    %c0_4 = arith.constant 0 : index
    %4 = vector.load %arg3[%c0_3, %c0_4] : memref<1x96xf32, #tpu.memory_space<vmem>>, vector<1x96xf32>
    %5 = vector.broadcast %4 : vector<1x96xf32> to vector<16x96xf32>
    %6 = arith.addf %3, %5 : vector<16x96xf32>
    %7 = vector.extract_strided_slice %6 {offsets = [0, 0], sizes = [16, 32], strides = [1, 1]} : vector<16x96xf32> to vector<16x32xf32>
    %8 = arith.truncf %7 : vector<16x32xf32> to vector<16x32xbf16>
    %c0_5 = arith.constant 0 : index
    %c0_6 = arith.constant 0 : index
    %9 = vector.load %arg4[%c0_5, %c0_6] : memref<16x32xbf16, #tpu.memory_space<vmem>>, vector<16x32xbf16>
    tpu.vector_store %arg4[%c0_5, %c0_6], %8 {strides = array<i32>} : memref<16x32xbf16, #tpu.memory_space<vmem>>, vector<16x32xbf16>,
    %10 = vector.extract_strided_slice %6 {offsets = [0, 32], sizes = [16, 64], strides = [1, 1]} : vector<16x96xf32> to vector<16x64xf32>
    %11 = arith.truncf %10 : vector<16x64xf32> to vector<16x64xbf16>
    %c0_7 = arith.constant 0 : index
    %c0_8 = arith.constant 0 : index
    %12 = vector.load %arg5[%c0_7, %c0_8] : memref<16x64xbf16, #tpu.memory_space<vmem>>, vector<16x64xbf16>
    tpu.vector_store %arg5[%c0_7, %c0_8], %11 {strides = array<i32>} : memref<16x64xbf16, #tpu.memory_space<vmem>>, vector<16x64xbf16>,
    return
  }
  func.func @transform_0(%arg0: i32) -> (i32, i32) {
    %c0_i32 = arith.constant 0 : i32
    %c0_i32_0 = arith.constant 0 : i32
    return %arg0, %c0_i32 : i32, i32
  }
  func.func @transform_1(%arg0: i32) -> (i32, i32) {
    %c0_i32 = arith.constant 0 : i32
    %c0_i32_0 = arith.constant 0 : i32
    %c0_i32_1 = arith.constant 0 : i32
    return %c0_i32, %c0_i32_0 : i32, i32
  }
  func.func @transform_2(%arg0: i32) -> (i32, i32) {
    %c0_i32 = arith.constant 0 : i32
    %c0_i32_0 = arith.constant 0 : i32
    %c0_i32_1 = arith.constant 0 : i32
    return %c0_i32, %c0_i32_0 : i32, i32
  }
  func.func @transform_3(%arg0: i32) -> (i32, i32) {
    %c0_i32 = arith.constant 0 : i32
    %c0_i32_0 = arith.constant 0 : i32
    return %arg0, %c0_i32 : i32, i32
  }
  func.func @transform_4(%arg0: i32) -> (i32, i32) {
    %c0_i32 = arith.constant 0 : i32
    %c0_i32_0 = arith.constant 0 : i32
    return %arg0, %c0_i32 : i32, i32
  }
}

module attributes {stable_mosaic.version = 11 : i64} {
  func.func @_attn_proj_res_ln_kernel(%arg0: i32, %arg1: i32, %arg2: memref<1x8x32xbf16, #tpu.memory_space<vmem>>, %arg3: memref<1x8x64xbf16, #tpu.memory_space<vmem>>, %arg4: memref<1x8x32xf32, #tpu.memory_space<vmem>>, %arg5: memref<32x32xbf16, #tpu.memory_space<vmem>>, %arg6: memref<1x32xf32, #tpu.memory_space<vmem>>, %arg7: memref<1x32xf32, #tpu.memory_space<vmem>>, %arg8: memref<1x32xf32, #tpu.memory_space<vmem>>, %arg9: memref<1x8x32xf32, #tpu.memory_space<vmem>>) attributes {dimension_semantics = [#tpu.dimension_semantics<parallel>, #tpu.dimension_semantics<parallel>], iteration_bounds = array<i64: 2, 1>, scalar_prefetch = 0 : i64, scratch_operands = 0 : i64, tpu.core_type = #tpu.core_type<tc>, window_params = [{transform_indices = @transform_0, window_bounds = array<i64: 1, 8, 32>}, {transform_indices = @transform_1, window_bounds = array<i64: 1, 8, 64>}, {transform_indices = @transform_2, window_bounds = array<i64: 1, 8, 32>}, {pipeline_mode = #tpu.pipeline_mode<synchronous>, transform_indices = @transform_3, window_bounds = array<i64: 32, 32>}, {pipeline_mode = #tpu.pipeline_mode<synchronous>, transform_indices = @transform_4, window_bounds = array<i64: 1, 32>}, {pipeline_mode = #tpu.pipeline_mode<synchronous>, transform_indices = @transform_5, window_bounds = array<i64: 1, 32>}, {pipeline_mode = #tpu.pipeline_mode<synchronous>, transform_indices = @transform_6, window_bounds = array<i64: 1, 32>}, {transform_indices = @transform_7, window_bounds = array<i64: 1, 8, 32>}]} {
    %c0 = arith.constant 0 : index
    %c0_0 = arith.constant 0 : index
    %c0_1 = arith.constant 0 : index
    %0 = vector.load %arg2[%c0, %c0_0, %c0_1] : memref<1x8x32xbf16, #tpu.memory_space<vmem>>, vector<1x8x32xbf16>
    %1 = vector.shape_cast %0 : vector<1x8x32xbf16> to vector<8x32xbf16>
    %c0_2 = arith.constant 0 : index
    %c0_3 = arith.constant 0 : index
    %c0_4 = arith.constant 0 : index
    %2 = vector.load %arg3[%c0_2, %c0_3, %c0_4] : memref<1x8x64xbf16, #tpu.memory_space<vmem>>, vector<1x8x64xbf16>
    %3 = vector.shape_cast %2 : vector<1x8x64xbf16> to vector<8x64xbf16>
    %c8_i32 = arith.constant 8 : i32
    %4 = arith.muli %arg1, %c8_i32 : i32
    %5 = tpu.iota {dimensions = array<i32: 0>} : vector<8x8xi32>
    %6 = vector.broadcast %4 : i32 to vector<8x8xi32>
    %7 = arith.addi %6, %5 : vector<8x8xi32>
    %8 = tpu.iota {dimensions = array<i32: 1>} : vector<8x8xi32>
    %9 = arith.cmpi sle, %8, %7 : vector<8x8xi32>
    %cst = arith.constant 0.000000e+00 : f32
    %10 = vector.broadcast %cst : f32 to vector<8x32xf32>
    %11 = vector.extract_strided_slice %1 {offsets = [0, 0], sizes = [8, 8], strides = [1, 1]} : vector<8x32xbf16> to vector<8x8xbf16>
    %12 = vector.extract_strided_slice %3 {offsets = [0, 0], sizes = [8, 8], strides = [1, 1]} : vector<8x64xbf16> to vector<8x8xbf16>
    %13 = vector.extract_strided_slice %3 {offsets = [0, 32], sizes = [8, 8], strides = [1, 1]} : vector<8x64xbf16> to vector<8x8xbf16>
    %cst_5 = arith.constant dense<0.000000e+00> : vector<8x8xf32>
    %14 = tpu.matmul %11, %12, %cst_5 {dimension_numbers = #tpu.dot_dimension_numbers<[1], [1], [0], [0], [0, 0, 1, 0], [], []>} : vector<8x8xbf16>, vector<8x8xbf16>, vector<8x8xf32> -> vector<8x8xf32>
    %cst_6 = arith.constant 0.353553385 : f32
    %15 = vector.broadcast %cst_6 : f32 to vector<8x8xf32>
    %16 = arith.mulf %14, %15 : vector<8x8xf32>
    %cst_7 = arith.constant -1.000000e+30 : f32
    %17 = vector.broadcast %cst_7 : f32 to vector<8x8xf32>
    %18 = arith.select %9, %16, %17 : vector<8x8xi1>, vector<8x8xf32>
    %cst_8 = arith.constant dense<0xFF800000> : vector<8xf32>
    %19 = vector.multi_reduction <maximumf>, %18, %cst_8 [1] : vector<8x8xf32> to vector<8xf32>
    %20 = vector.shape_cast %19 : vector<8xf32> to vector<8x1xf32>
    %21 = vector.broadcast %20 : vector<8x1xf32> to vector<8x8xf32>
    %22 = arith.subf %18, %21 : vector<8x8xf32>
    %23 = math.exp %22 : vector<8x8xf32>
    %cst_9 = arith.constant dense<0.000000e+00> : vector<8xf32>
    %24 = vector.multi_reduction <add>, %23, %cst_9 [1] : vector<8x8xf32> to vector<8xf32>
    %25 = vector.shape_cast %24 : vector<8xf32> to vector<8x1xf32>
    %26 = arith.truncf %23 : vector<8x8xf32> to vector<8x8xbf16>
    %cst_10 = arith.constant dense<0.000000e+00> : vector<8x8xf32>
    %27 = tpu.matmul %26, %13, %cst_10 {dimension_numbers = #tpu.dot_dimension_numbers<[1], [0], [0], [1], [0, 0, 1, 1], [], []>} : vector<8x8xbf16>, vector<8x8xbf16>, vector<8x8xf32> -> vector<8x8xf32>
    %28 = vector.broadcast %25 : vector<8x1xf32> to vector<8x8xf32>
    %29 = arith.divf %27, %28 : vector<8x8xf32>
    %30 = arith.truncf %29 : vector<8x8xf32> to vector<8x8xbf16>
    %c0_11 = arith.constant 0 : index
    %c0_12 = arith.constant 0 : index
    %31 = vector.load %arg5[%c0_11, %c0_12] : memref<32x32xbf16, #tpu.memory_space<vmem>>, vector<8x32xbf16>
    %cst_13 = arith.constant dense<0.000000e+00> : vector<8x32xf32>
    %32 = tpu.matmul %30, %31, %cst_13 {dimension_numbers = #tpu.dot_dimension_numbers<[1], [0], [0], [1], [0, 0, 1, 1], [], []>} : vector<8x8xbf16>, vector<8x32xbf16>, vector<8x32xf32> -> vector<8x32xf32>
    %33 = arith.addf %10, %32 : vector<8x32xf32>
    %34 = vector.extract_strided_slice %1 {offsets = [0, 8], sizes = [8, 8], strides = [1, 1]} : vector<8x32xbf16> to vector<8x8xbf16>
    %35 = vector.extract_strided_slice %3 {offsets = [0, 8], sizes = [8, 8], strides = [1, 1]} : vector<8x64xbf16> to vector<8x8xbf16>
    %36 = vector.extract_strided_slice %3 {offsets = [0, 40], sizes = [8, 8], strides = [1, 1]} : vector<8x64xbf16> to vector<8x8xbf16>
    %cst_14 = arith.constant dense<0.000000e+00> : vector<8x8xf32>
    %37 = tpu.matmul %34, %35, %cst_14 {dimension_numbers = #tpu.dot_dimension_numbers<[1], [1], [0], [0], [0, 0, 1, 0], [], []>} : vector<8x8xbf16>, vector<8x8xbf16>, vector<8x8xf32> -> vector<8x8xf32>
    %cst_15 = arith.constant 0.353553385 : f32
    %38 = vector.broadcast %cst_15 : f32 to vector<8x8xf32>
    %39 = arith.mulf %37, %38 : vector<8x8xf32>
    %cst_16 = arith.constant -1.000000e+30 : f32
    %40 = vector.broadcast %cst_16 : f32 to vector<8x8xf32>
    %41 = arith.select %9, %39, %40 : vector<8x8xi1>, vector<8x8xf32>
    %cst_17 = arith.constant dense<0xFF800000> : vector<8xf32>
    %42 = vector.multi_reduction <maximumf>, %41, %cst_17 [1] : vector<8x8xf32> to vector<8xf32>
    %43 = vector.shape_cast %42 : vector<8xf32> to vector<8x1xf32>
    %44 = vector.broadcast %43 : vector<8x1xf32> to vector<8x8xf32>
    %45 = arith.subf %41, %44 : vector<8x8xf32>
    %46 = math.exp %45 : vector<8x8xf32>
    %cst_18 = arith.constant dense<0.000000e+00> : vector<8xf32>
    %47 = vector.multi_reduction <add>, %46, %cst_18 [1] : vector<8x8xf32> to vector<8xf32>
    %48 = vector.shape_cast %47 : vector<8xf32> to vector<8x1xf32>
    %49 = arith.truncf %46 : vector<8x8xf32> to vector<8x8xbf16>
    %cst_19 = arith.constant dense<0.000000e+00> : vector<8x8xf32>
    %50 = tpu.matmul %49, %36, %cst_19 {dimension_numbers = #tpu.dot_dimension_numbers<[1], [0], [0], [1], [0, 0, 1, 1], [], []>} : vector<8x8xbf16>, vector<8x8xbf16>, vector<8x8xf32> -> vector<8x8xf32>
    %51 = vector.broadcast %48 : vector<8x1xf32> to vector<8x8xf32>
    %52 = arith.divf %50, %51 : vector<8x8xf32>
    %53 = arith.truncf %52 : vector<8x8xf32> to vector<8x8xbf16>
    %c8 = arith.constant 8 : index
    %c0_20 = arith.constant 0 : index
    %54 = vector.load %arg5[%c8, %c0_20] : memref<32x32xbf16, #tpu.memory_space<vmem>>, vector<8x32xbf16>
    %cst_21 = arith.constant dense<0.000000e+00> : vector<8x32xf32>
    %55 = tpu.matmul %53, %54, %cst_21 {dimension_numbers = #tpu.dot_dimension_numbers<[1], [0], [0], [1], [0, 0, 1, 1], [], []>} : vector<8x8xbf16>, vector<8x32xbf16>, vector<8x32xf32> -> vector<8x32xf32>
    %56 = arith.addf %33, %55 : vector<8x32xf32>
    %57 = vector.extract_strided_slice %1 {offsets = [0, 16], sizes = [8, 8], strides = [1, 1]} : vector<8x32xbf16> to vector<8x8xbf16>
    %58 = vector.extract_strided_slice %3 {offsets = [0, 16], sizes = [8, 8], strides = [1, 1]} : vector<8x64xbf16> to vector<8x8xbf16>
    %59 = vector.extract_strided_slice %3 {offsets = [0, 48], sizes = [8, 8], strides = [1, 1]} : vector<8x64xbf16> to vector<8x8xbf16>
    %cst_22 = arith.constant dense<0.000000e+00> : vector<8x8xf32>
    %60 = tpu.matmul %57, %58, %cst_22 {dimension_numbers = #tpu.dot_dimension_numbers<[1], [1], [0], [0], [0, 0, 1, 0], [], []>} : vector<8x8xbf16>, vector<8x8xbf16>, vector<8x8xf32> -> vector<8x8xf32>
    %cst_23 = arith.constant 0.353553385 : f32
    %61 = vector.broadcast %cst_23 : f32 to vector<8x8xf32>
    %62 = arith.mulf %60, %61 : vector<8x8xf32>
    %cst_24 = arith.constant -1.000000e+30 : f32
    %63 = vector.broadcast %cst_24 : f32 to vector<8x8xf32>
    %64 = arith.select %9, %62, %63 : vector<8x8xi1>, vector<8x8xf32>
    %cst_25 = arith.constant dense<0xFF800000> : vector<8xf32>
    %65 = vector.multi_reduction <maximumf>, %64, %cst_25 [1] : vector<8x8xf32> to vector<8xf32>
    %66 = vector.shape_cast %65 : vector<8xf32> to vector<8x1xf32>
    %67 = vector.broadcast %66 : vector<8x1xf32> to vector<8x8xf32>
    %68 = arith.subf %64, %67 : vector<8x8xf32>
    %69 = math.exp %68 : vector<8x8xf32>
    %cst_26 = arith.constant dense<0.000000e+00> : vector<8xf32>
    %70 = vector.multi_reduction <add>, %69, %cst_26 [1] : vector<8x8xf32> to vector<8xf32>
    %71 = vector.shape_cast %70 : vector<8xf32> to vector<8x1xf32>
    %72 = arith.truncf %69 : vector<8x8xf32> to vector<8x8xbf16>
    %cst_27 = arith.constant dense<0.000000e+00> : vector<8x8xf32>
    %73 = tpu.matmul %72, %59, %cst_27 {dimension_numbers = #tpu.dot_dimension_numbers<[1], [0], [0], [1], [0, 0, 1, 1], [], []>} : vector<8x8xbf16>, vector<8x8xbf16>, vector<8x8xf32> -> vector<8x8xf32>
    %74 = vector.broadcast %71 : vector<8x1xf32> to vector<8x8xf32>
    %75 = arith.divf %73, %74 : vector<8x8xf32>
    %76 = arith.truncf %75 : vector<8x8xf32> to vector<8x8xbf16>
    %c16 = arith.constant 16 : index
    %c0_28 = arith.constant 0 : index
    %77 = vector.load %arg5[%c16, %c0_28] : memref<32x32xbf16, #tpu.memory_space<vmem>>, vector<8x32xbf16>
    %cst_29 = arith.constant dense<0.000000e+00> : vector<8x32xf32>
    %78 = tpu.matmul %76, %77, %cst_29 {dimension_numbers = #tpu.dot_dimension_numbers<[1], [0], [0], [1], [0, 0, 1, 1], [], []>} : vector<8x8xbf16>, vector<8x32xbf16>, vector<8x32xf32> -> vector<8x32xf32>
    %79 = arith.addf %56, %78 : vector<8x32xf32>
    %80 = vector.extract_strided_slice %1 {offsets = [0, 24], sizes = [8, 8], strides = [1, 1]} : vector<8x32xbf16> to vector<8x8xbf16>
    %81 = vector.extract_strided_slice %3 {offsets = [0, 24], sizes = [8, 8], strides = [1, 1]} : vector<8x64xbf16> to vector<8x8xbf16>
    %82 = vector.extract_strided_slice %3 {offsets = [0, 56], sizes = [8, 8], strides = [1, 1]} : vector<8x64xbf16> to vector<8x8xbf16>
    %cst_30 = arith.constant dense<0.000000e+00> : vector<8x8xf32>
    %83 = tpu.matmul %80, %81, %cst_30 {dimension_numbers = #tpu.dot_dimension_numbers<[1], [1], [0], [0], [0, 0, 1, 0], [], []>} : vector<8x8xbf16>, vector<8x8xbf16>, vector<8x8xf32> -> vector<8x8xf32>
    %cst_31 = arith.constant 0.353553385 : f32
    %84 = vector.broadcast %cst_31 : f32 to vector<8x8xf32>
    %85 = arith.mulf %83, %84 : vector<8x8xf32>
    %cst_32 = arith.constant -1.000000e+30 : f32
    %86 = vector.broadcast %cst_32 : f32 to vector<8x8xf32>
    %87 = arith.select %9, %85, %86 : vector<8x8xi1>, vector<8x8xf32>
    %cst_33 = arith.constant dense<0xFF800000> : vector<8xf32>
    %88 = vector.multi_reduction <maximumf>, %87, %cst_33 [1] : vector<8x8xf32> to vector<8xf32>
    %89 = vector.shape_cast %88 : vector<8xf32> to vector<8x1xf32>
    %90 = vector.broadcast %89 : vector<8x1xf32> to vector<8x8xf32>
    %91 = arith.subf %87, %90 : vector<8x8xf32>
    %92 = math.exp %91 : vector<8x8xf32>
    %cst_34 = arith.constant dense<0.000000e+00> : vector<8xf32>
    %93 = vector.multi_reduction <add>, %92, %cst_34 [1] : vector<8x8xf32> to vector<8xf32>
    %94 = vector.shape_cast %93 : vector<8xf32> to vector<8x1xf32>
    %95 = arith.truncf %92 : vector<8x8xf32> to vector<8x8xbf16>
    %cst_35 = arith.constant dense<0.000000e+00> : vector<8x8xf32>
    %96 = tpu.matmul %95, %82, %cst_35 {dimension_numbers = #tpu.dot_dimension_numbers<[1], [0], [0], [1], [0, 0, 1, 1], [], []>} : vector<8x8xbf16>, vector<8x8xbf16>, vector<8x8xf32> -> vector<8x8xf32>
    %97 = vector.broadcast %94 : vector<8x1xf32> to vector<8x8xf32>
    %98 = arith.divf %96, %97 : vector<8x8xf32>
    %99 = arith.truncf %98 : vector<8x8xf32> to vector<8x8xbf16>
    %c24 = arith.constant 24 : index
    %c0_36 = arith.constant 0 : index
    %100 = vector.load %arg5[%c24, %c0_36] : memref<32x32xbf16, #tpu.memory_space<vmem>>, vector<8x32xbf16>
    %cst_37 = arith.constant dense<0.000000e+00> : vector<8x32xf32>
    %101 = tpu.matmul %99, %100, %cst_37 {dimension_numbers = #tpu.dot_dimension_numbers<[1], [0], [0], [1], [0, 0, 1, 1], [], []>} : vector<8x8xbf16>, vector<8x32xbf16>, vector<8x32xf32> -> vector<8x32xf32>
    %102 = arith.addf %79, %101 : vector<8x32xf32>
    %c0_38 = arith.constant 0 : index
    %c0_39 = arith.constant 0 : index
    %c0_40 = arith.constant 0 : index
    %103 = vector.load %arg4[%c0_38, %c0_39, %c0_40] : memref<1x8x32xf32, #tpu.memory_space<vmem>>, vector<1x8x32xf32>
    %104 = vector.shape_cast %103 : vector<1x8x32xf32> to vector<8x32xf32>
    %105 = arith.addf %104, %102 : vector<8x32xf32>
    %c0_41 = arith.constant 0 : index
    %c0_42 = arith.constant 0 : index
    %106 = vector.load %arg6[%c0_41, %c0_42] : memref<1x32xf32, #tpu.memory_space<vmem>>, vector<1x32xf32>
    %107 = vector.broadcast %106 : vector<1x32xf32> to vector<8x32xf32>
    %108 = arith.addf %105, %107 : vector<8x32xf32>
    %cst_43 = arith.constant dense<0.000000e+00> : vector<8xf32>
    %109 = vector.multi_reduction <add>, %108, %cst_43 [1] : vector<8x32xf32> to vector<8xf32>
    %110 = vector.shape_cast %109 : vector<8xf32> to vector<8x1xf32>
    %cst_44 = arith.constant 3.200000e+01 : f32
    %111 = vector.broadcast %cst_44 : f32 to vector<8x1xf32>
    %112 = arith.divf %110, %111 : vector<8x1xf32>
    %113 = vector.broadcast %112 : vector<8x1xf32> to vector<8x32xf32>
    %114 = arith.subf %108, %113 : vector<8x32xf32>
    %115 = arith.mulf %114, %114 : vector<8x32xf32>
    %cst_45 = arith.constant dense<0.000000e+00> : vector<8xf32>
    %116 = vector.multi_reduction <add>, %115, %cst_45 [1] : vector<8x32xf32> to vector<8xf32>
    %117 = vector.shape_cast %116 : vector<8xf32> to vector<8x1xf32>
    %cst_46 = arith.constant 3.200000e+01 : f32
    %118 = vector.broadcast %cst_46 : f32 to vector<8x1xf32>
    %119 = arith.divf %117, %118 : vector<8x1xf32>
    %cst_47 = arith.constant 9.99999974E-6 : f32
    %120 = vector.broadcast %cst_47 : f32 to vector<8x1xf32>
    %121 = arith.addf %119, %120 : vector<8x1xf32>
    %122 = math.rsqrt %121 : vector<8x1xf32>
    %123 = vector.broadcast %122 : vector<8x1xf32> to vector<8x32xf32>
    %124 = arith.mulf %114, %123 : vector<8x32xf32>
    %c0_48 = arith.constant 0 : index
    %c0_49 = arith.constant 0 : index
    %125 = vector.load %arg7[%c0_48, %c0_49] : memref<1x32xf32, #tpu.memory_space<vmem>>, vector<1x32xf32>
    %126 = vector.broadcast %125 : vector<1x32xf32> to vector<8x32xf32>
    %127 = arith.mulf %124, %126 : vector<8x32xf32>
    %c0_50 = arith.constant 0 : index
    %c0_51 = arith.constant 0 : index
    %128 = vector.load %arg8[%c0_50, %c0_51] : memref<1x32xf32, #tpu.memory_space<vmem>>, vector<1x32xf32>
    %129 = vector.broadcast %128 : vector<1x32xf32> to vector<8x32xf32>
    %130 = arith.addf %127, %129 : vector<8x32xf32>
    %c0_52 = arith.constant 0 : index
    %c0_53 = arith.constant 0 : index
    %c0_54 = arith.constant 0 : index
    %131 = vector.load %arg9[%c0_52, %c0_53, %c0_54] : memref<1x8x32xf32, #tpu.memory_space<vmem>>, vector<1x8x32xf32>
    %132 = vector.shape_cast %131 : vector<1x8x32xf32> to vector<8x32xf32>
    %133 = vector.shape_cast %130 : vector<8x32xf32> to vector<1x8x32xf32>
    tpu.vector_store %arg9[%c0_52, %c0_53, %c0_54], %133 {strides = array<i32>} : memref<1x8x32xf32, #tpu.memory_space<vmem>>, vector<1x8x32xf32>,
    return
  }
  func.func @transform_0(%arg0: i32, %arg1: i32) -> (i32, i32, i32) {
    %c0_i32 = arith.constant 0 : i32
    %c0_i32_0 = arith.constant 0 : i32
    return %arg0, %arg1, %c0_i32 : i32, i32, i32
  }
  func.func @transform_1(%arg0: i32, %arg1: i32) -> (i32, i32, i32) {
    %c0_i32 = arith.constant 0 : i32
    %c0_i32_0 = arith.constant 0 : i32
    %c0_i32_1 = arith.constant 0 : i32
    return %arg0, %c0_i32, %c0_i32_0 : i32, i32, i32
  }
  func.func @transform_2(%arg0: i32, %arg1: i32) -> (i32, i32, i32) {
    %c0_i32 = arith.constant 0 : i32
    %c0_i32_0 = arith.constant 0 : i32
    return %arg0, %arg1, %c0_i32 : i32, i32, i32
  }
  func.func @transform_3(%arg0: i32, %arg1: i32) -> (i32, i32) {
    %c0_i32 = arith.constant 0 : i32
    %c0_i32_0 = arith.constant 0 : i32
    %c0_i32_1 = arith.constant 0 : i32
    return %c0_i32, %c0_i32_0 : i32, i32
  }
  func.func @transform_4(%arg0: i32, %arg1: i32) -> (i32, i32) {
    %c0_i32 = arith.constant 0 : i32
    %c0_i32_0 = arith.constant 0 : i32
    %c0_i32_1 = arith.constant 0 : i32
    return %c0_i32, %c0_i32_0 : i32, i32
  }
  func.func @transform_5(%arg0: i32, %arg1: i32) -> (i32, i32) {
    %c0_i32 = arith.constant 0 : i32
    %c0_i32_0 = arith.constant 0 : i32
    %c0_i32_1 = arith.constant 0 : i32
    return %c0_i32, %c0_i32_0 : i32, i32
  }
  func.func @transform_6(%arg0: i32, %arg1: i32) -> (i32, i32) {
    %c0_i32 = arith.constant 0 : i32
    %c0_i32_0 = arith.constant 0 : i32
    %c0_i32_1 = arith.constant 0 : i32
    return %c0_i32, %c0_i32_0 : i32, i32
  }
  func.func @transform_7(%arg0: i32, %arg1: i32) -> (i32, i32, i32) {
    %c0_i32 = arith.constant 0 : i32
    %c0_i32_0 = arith.constant 0 : i32
    return %arg0, %arg1, %c0_i32 : i32, i32, i32
  }
}

module attributes {stable_mosaic.version = 11 : i64} {
  func.func @_linear_kernel(%arg0: i32, %arg1: memref<16x32xf32, #tpu.memory_space<vmem>>, %arg2: memref<32x32xbf16, #tpu.memory_space<vmem>>, %arg3: memref<1x32xf32, #tpu.memory_space<vmem>>, %arg4: memref<16x32xbf16, #tpu.memory_space<vmem>>) attributes {dimension_semantics = [#tpu.dimension_semantics<parallel>], iteration_bounds = array<i64: 1>, scalar_prefetch = 0 : i64, scratch_operands = 0 : i64, tpu.core_type = #tpu.core_type<tc>, window_params = [{transform_indices = @transform_0, window_bounds = array<i64: 16, 32>}, {pipeline_mode = #tpu.pipeline_mode<synchronous>, transform_indices = @transform_1, window_bounds = array<i64: 32, 32>}, {pipeline_mode = #tpu.pipeline_mode<synchronous>, transform_indices = @transform_2, window_bounds = array<i64: 1, 32>}, {transform_indices = @transform_3, window_bounds = array<i64: 16, 32>}]} {
    %c0 = arith.constant 0 : index
    %c0_0 = arith.constant 0 : index
    %0 = vector.load %arg1[%c0, %c0_0] : memref<16x32xf32, #tpu.memory_space<vmem>>, vector<16x32xf32>
    %1 = arith.truncf %0 : vector<16x32xf32> to vector<16x32xbf16>
    %c0_1 = arith.constant 0 : index
    %c0_2 = arith.constant 0 : index
    %2 = vector.load %arg2[%c0_1, %c0_2] : memref<32x32xbf16, #tpu.memory_space<vmem>>, vector<32x32xbf16>
    %cst = arith.constant dense<0.000000e+00> : vector<16x32xf32>
    %3 = tpu.matmul %1, %2, %cst {dimension_numbers = #tpu.dot_dimension_numbers<[1], [0], [0], [1], [0, 0, 1, 1], [], []>} : vector<16x32xbf16>, vector<32x32xbf16>, vector<16x32xf32> -> vector<16x32xf32>
    %c0_3 = arith.constant 0 : index
    %c0_4 = arith.constant 0 : index
    %4 = vector.load %arg3[%c0_3, %c0_4] : memref<1x32xf32, #tpu.memory_space<vmem>>, vector<1x32xf32>
    %5 = vector.broadcast %4 : vector<1x32xf32> to vector<16x32xf32>
    %6 = arith.addf %3, %5 : vector<16x32xf32>
    %7 = arith.truncf %6 : vector<16x32xf32> to vector<16x32xbf16>
    %c0_5 = arith.constant 0 : index
    %c0_6 = arith.constant 0 : index
    %8 = vector.load %arg4[%c0_5, %c0_6] : memref<16x32xbf16, #tpu.memory_space<vmem>>, vector<16x32xbf16>
    tpu.vector_store %arg4[%c0_5, %c0_6], %7 {strides = array<i32>} : memref<16x32xbf16, #tpu.memory_space<vmem>>, vector<16x32xbf16>,
    return
  }
  func.func @transform_0(%arg0: i32) -> (i32, i32) {
    %c0_i32 = arith.constant 0 : i32
    %c0_i32_0 = arith.constant 0 : i32
    return %arg0, %c0_i32 : i32, i32
  }
  func.func @transform_1(%arg0: i32) -> (i32, i32) {
    %c0_i32 = arith.constant 0 : i32
    %c0_i32_0 = arith.constant 0 : i32
    %c0_i32_1 = arith.constant 0 : i32
    return %c0_i32, %c0_i32_0 : i32, i32
  }
  func.func @transform_2(%arg0: i32) -> (i32, i32) {
    %c0_i32 = arith.constant 0 : i32
    %c0_i32_0 = arith.constant 0 : i32
    %c0_i32_1 = arith.constant 0 : i32
    return %c0_i32, %c0_i32_0 : i32, i32
  }
  func.func @transform_3(%arg0: i32) -> (i32, i32) {
    %c0_i32 = arith.constant 0 : i32
    %c0_i32_0 = arith.constant 0 : i32
    return %arg0, %c0_i32 : i32, i32
  }
}

module attributes {stable_mosaic.version = 11 : i64} {
  func.func @_ffn_res_ln_kernel(%arg0: i32, %arg1: memref<16x32xf32, #tpu.memory_space<vmem>>, %arg2: memref<32x64xbf16, #tpu.memory_space<vmem>>, %arg3: memref<1x64xf32, #tpu.memory_space<vmem>>, %arg4: memref<64x32xbf16, #tpu.memory_space<vmem>>, %arg5: memref<1x32xf32, #tpu.memory_space<vmem>>, %arg6: memref<1x32xf32, #tpu.memory_space<vmem>>, %arg7: memref<1x32xf32, #tpu.memory_space<vmem>>, %arg8: memref<16x32xf32, #tpu.memory_space<vmem>>) attributes {dimension_semantics = [#tpu.dimension_semantics<parallel>], iteration_bounds = array<i64: 1>, scalar_prefetch = 0 : i64, scratch_operands = 0 : i64, tpu.core_type = #tpu.core_type<tc>, window_params = [{transform_indices = @transform_0, window_bounds = array<i64: 16, 32>}, {pipeline_mode = #tpu.pipeline_mode<synchronous>, transform_indices = @transform_1, window_bounds = array<i64: 32, 64>}, {pipeline_mode = #tpu.pipeline_mode<synchronous>, transform_indices = @transform_2, window_bounds = array<i64: 1, 64>}, {pipeline_mode = #tpu.pipeline_mode<synchronous>, transform_indices = @transform_3, window_bounds = array<i64: 64, 32>}, {pipeline_mode = #tpu.pipeline_mode<synchronous>, transform_indices = @transform_4, window_bounds = array<i64: 1, 32>}, {pipeline_mode = #tpu.pipeline_mode<synchronous>, transform_indices = @transform_5, window_bounds = array<i64: 1, 32>}, {pipeline_mode = #tpu.pipeline_mode<synchronous>, transform_indices = @transform_6, window_bounds = array<i64: 1, 32>}, {transform_indices = @transform_7, window_bounds = array<i64: 16, 32>}]} {
    %c0 = arith.constant 0 : index
    %c0_0 = arith.constant 0 : index
    %0 = vector.load %arg1[%c0, %c0_0] : memref<16x32xf32, #tpu.memory_space<vmem>>, vector<16x32xf32>
    %c0_1 = arith.constant 0 : index
    %c0_2 = arith.constant 0 : index
    %1 = vector.load %arg1[%c0_1, %c0_2] : memref<16x32xf32, #tpu.memory_space<vmem>>, vector<16x32xf32>
    %2 = arith.truncf %1 : vector<16x32xf32> to vector<16x32xbf16>
    %c0_3 = arith.constant 0 : index
    %c0_4 = arith.constant 0 : index
    %3 = vector.load %arg2[%c0_3, %c0_4] : memref<32x64xbf16, #tpu.memory_space<vmem>>, vector<32x64xbf16>
    %cst = arith.constant dense<0.000000e+00> : vector<16x64xf32>
    %4 = tpu.matmul %2, %3, %cst {dimension_numbers = #tpu.dot_dimension_numbers<[1], [0], [0], [1], [0, 0, 1, 1], [], []>} : vector<16x32xbf16>, vector<32x64xbf16>, vector<16x64xf32> -> vector<16x64xf32>
    %c0_5 = arith.constant 0 : index
    %c0_6 = arith.constant 0 : index
    %5 = vector.load %arg3[%c0_5, %c0_6] : memref<1x64xf32, #tpu.memory_space<vmem>>, vector<1x64xf32>
    %6 = vector.broadcast %5 : vector<1x64xf32> to vector<16x64xf32>
    %7 = arith.addf %4, %6 : vector<16x64xf32>
    %cst_7 = arith.constant 0.000000e+00 : f32
    %8 = vector.broadcast %cst_7 : f32 to vector<16x64xf32>
    %9 = arith.maximumf %7, %8 : vector<16x64xf32>
    %10 = arith.truncf %9 : vector<16x64xf32> to vector<16x64xbf16>
    %c0_8 = arith.constant 0 : index
    %c0_9 = arith.constant 0 : index
    %11 = vector.load %arg4[%c0_8, %c0_9] : memref<64x32xbf16, #tpu.memory_space<vmem>>, vector<64x32xbf16>
    %cst_10 = arith.constant dense<0.000000e+00> : vector<16x32xf32>
    %12 = tpu.matmul %10, %11, %cst_10 {dimension_numbers = #tpu.dot_dimension_numbers<[1], [0], [0], [1], [0, 0, 1, 1], [], []>} : vector<16x64xbf16>, vector<64x32xbf16>, vector<16x32xf32> -> vector<16x32xf32>
    %c0_11 = arith.constant 0 : index
    %c0_12 = arith.constant 0 : index
    %13 = vector.load %arg5[%c0_11, %c0_12] : memref<1x32xf32, #tpu.memory_space<vmem>>, vector<1x32xf32>
    %14 = vector.broadcast %13 : vector<1x32xf32> to vector<16x32xf32>
    %15 = arith.addf %12, %14 : vector<16x32xf32>
    %16 = arith.addf %0, %15 : vector<16x32xf32>
    %cst_13 = arith.constant dense<0.000000e+00> : vector<16xf32>
    %17 = vector.multi_reduction <add>, %16, %cst_13 [1] : vector<16x32xf32> to vector<16xf32>
    %18 = vector.shape_cast %17 : vector<16xf32> to vector<16x1xf32>
    %cst_14 = arith.constant 3.200000e+01 : f32
    %19 = vector.broadcast %cst_14 : f32 to vector<16x1xf32>
    %20 = arith.divf %18, %19 : vector<16x1xf32>
    %21 = vector.broadcast %20 : vector<16x1xf32> to vector<16x32xf32>
    %22 = arith.subf %16, %21 : vector<16x32xf32>
    %23 = arith.mulf %22, %22 : vector<16x32xf32>
    %cst_15 = arith.constant dense<0.000000e+00> : vector<16xf32>
    %24 = vector.multi_reduction <add>, %23, %cst_15 [1] : vector<16x32xf32> to vector<16xf32>
    %25 = vector.shape_cast %24 : vector<16xf32> to vector<16x1xf32>
    %cst_16 = arith.constant 3.200000e+01 : f32
    %26 = vector.broadcast %cst_16 : f32 to vector<16x1xf32>
    %27 = arith.divf %25, %26 : vector<16x1xf32>
    %cst_17 = arith.constant 9.99999974E-6 : f32
    %28 = vector.broadcast %cst_17 : f32 to vector<16x1xf32>
    %29 = arith.addf %27, %28 : vector<16x1xf32>
    %30 = math.rsqrt %29 : vector<16x1xf32>
    %31 = vector.broadcast %30 : vector<16x1xf32> to vector<16x32xf32>
    %32 = arith.mulf %22, %31 : vector<16x32xf32>
    %c0_18 = arith.constant 0 : index
    %c0_19 = arith.constant 0 : index
    %33 = vector.load %arg6[%c0_18, %c0_19] : memref<1x32xf32, #tpu.memory_space<vmem>>, vector<1x32xf32>
    %34 = vector.broadcast %33 : vector<1x32xf32> to vector<16x32xf32>
    %35 = arith.mulf %32, %34 : vector<16x32xf32>
    %c0_20 = arith.constant 0 : index
    %c0_21 = arith.constant 0 : index
    %36 = vector.load %arg7[%c0_20, %c0_21] : memref<1x32xf32, #tpu.memory_space<vmem>>, vector<1x32xf32>
    %37 = vector.broadcast %36 : vector<1x32xf32> to vector<16x32xf32>
    %38 = arith.addf %35, %37 : vector<16x32xf32>
    %c0_22 = arith.constant 0 : index
    %c0_23 = arith.constant 0 : index
    %39 = vector.load %arg8[%c0_22, %c0_23] : memref<16x32xf32, #tpu.memory_space<vmem>>, vector<16x32xf32>
    tpu.vector_store %arg8[%c0_22, %c0_23], %38 {strides = array<i32>} : memref<16x32xf32, #tpu.memory_space<vmem>>, vector<16x32xf32>,
    return
  }
  func.func @transform_0(%arg0: i32) -> (i32, i32) {
    %c0_i32 = arith.constant 0 : i32
    %c0_i32_0 = arith.constant 0 : i32
    return %arg0, %c0_i32 : i32, i32
  }
  func.func @transform_1(%arg0: i32) -> (i32, i32) {
    %c0_i32 = arith.constant 0 : i32
    %c0_i32_0 = arith.constant 0 : i32
    %c0_i32_1 = arith.constant 0 : i32
    return %c0_i32, %c0_i32_0 : i32, i32
  }
  func.func @transform_2(%arg0: i32) -> (i32, i32) {
    %c0_i32 = arith.constant 0 : i32
    %c0_i32_0 = arith.constant 0 : i32
    %c0_i32_1 = arith.constant 0 : i32
    return %c0_i32, %c0_i32_0 : i32, i32
  }
  func.func @transform_3(%arg0: i32) -> (i32, i32) {
    %c0_i32 = arith.constant 0 : i32
    %c0_i32_0 = arith.constant 0 : i32
    %c0_i32_1 = arith.constant 0 : i32
    return %c0_i32, %c0_i32_0 : i32, i32
  }
  func.func @transform_4(%arg0: i32) -> (i32, i32) {
    %c0_i32 = arith.constant 0 : i32
    %c0_i32_0 = arith.constant 0 : i32
    %c0_i32_1 = arith.constant 0 : i32
    return %c0_i32, %c0_i32_0 : i32, i32
  }
  func.func @transform_5(%arg0: i32) -> (i32, i32) {
    %c0_i32 = arith.constant 0 : i32
    %c0_i32_0 = arith.constant 0 : i32
    %c0_i32_1 = arith.constant 0 : i32
    return %c0_i32, %c0_i32_0 : i32, i32
  }
  func.func @transform_6(%arg0: i32) -> (i32, i32) {
    %c0_i32 = arith.constant 0 : i32
    %c0_i32_0 = arith.constant 0 : i32
    %c0_i32_1 = arith.constant 0 : i32
    return %c0_i32, %c0_i32_0 : i32, i32
  }
  func.func @transform_7(%arg0: i32) -> (i32, i32) {
    %c0_i32 = arith.constant 0 : i32
    %c0_i32_0 = arith.constant 0 : i32
    return %arg0, %c0_i32 : i32, i32
  }
}

</mosaic_0001>

<llo_original>
// kernel: transformer_decoder.15
$region0: #{transformer_decoder.15}
  #allocation0 [shape = 'u32[]', space=smem, size = 0x4, offset = 0x4, fixed_abs, tag = 'smem constant byte address 0x4 - core index']
  #allocation1 [shape = 'u32[72,128]{1,0:T(1,128)}', space=vmem, size = 0x9000, scoped, tag = 'internal scratch']
  %s0 = inlined_call_operand.hbm [shape: f32[16,32], index: 0, kind: input, shape index: {}]
  %s1 = inlined_call_operand.hbm [shape: bf16[32,64], index: 1, kind: input, shape index: {}]
  %s2 = inlined_call_operand.hbm [shape: f32[1,64], index: 2, kind: input, shape index: {}]
  %s3 = inlined_call_operand.vmem [shape: bf16[16,64], index: 3, kind: output, shape index: {}]
  %s4 = sld [smem:[#allocation0]]
  $region34: #{transformer_decoder.15} parent=0
    _
  %s6 = ssub.s32 1, %s4
  %s7 = scalar_select 0, %s6, %s4
  $region1: #{transformer_decoder.15} parent=0
    #allocation2 [shape = 'u8[8192]{0}', space=vmem, size = 0x2000, scoped, tag = 'input window, operand 0, single buffered']
    #allocation3 [shape = 's32[1]{0}', space=sflag, size = 0x4, scoped, tag = 'scoped memory for transformer_decoder.15']
    #allocation4 [shape = 'u8[8192]{0}', space=vmem, size = 0x2000, scoped, tag = 'input window, operand 1, single buffered']
    #allocation5 [shape = 's32[1]{0}', space=sflag, size = 0x4, scoped, tag = 'scoped memory for transformer_decoder.15']
    #allocation6 [shape = 'u8[512]{0}', space=vmem, size = 0x400, scoped, tag = 'input window, operand 2, single buffered']
    %8 = vsyncpa [#allocation3], 0
    %9 = vsyncpa [#allocation5], 0
    // Predicated region
    $region2: #{transformer_decoder.15} parent=1 // pred_check
      _
    $region3: #{transformer_decoder.15} parent=1 // pred_check_branch
      %11 = sbr.rel (0) target = $region5
    $region4: #{transformer_decoder.15} parent=1 // pred_region
      %13 = vsyncadd [#allocation3], 0
      %s14 = sshll.u32 %s0, 4
      %s15 = int_to_ptr.hbm [resolvable:$true] %s14
      %s16 = sshll.u32 [#allocation2], 4
      %s17 = int_to_ptr.vmem [resolvable:$true] %s16
      %22 = dma.hbm_to_vmem [thread:$0]  %s15, 256, %s17, [#allocation3], 128, 128, 8
    $region5: #{transformer_decoder.15} parent=1 // pred_fallthru
      _
    // Predicated region
    $region6: #{transformer_decoder.15} parent=1 // pred_check
      _
    $region7: #{transformer_decoder.15} parent=1 // pred_check_branch
      %24 = sbr.rel (0) target = $region9
    $region8: #{transformer_decoder.15} parent=1 // pred_region
      %26 = vsyncadd [#allocation5], 0
      %s27 = sshll.u32 %s1, 4
      %s28 = int_to_ptr.hbm [resolvable:$true] %s27
      %s29 = sshll.u32 [#allocation4], 4
      %s30 = int_to_ptr.vmem [resolvable:$true] %s29
      %35 = dma.hbm_to_vmem [thread:$0]  %s28, 256, %s30, [#allocation5], 64, 64, 4
    $region9: #{transformer_decoder.15} parent=1 // pred_fallthru
      _
    // Predicated region
    $region10: #{transformer_decoder.15} parent=1 // pred_check
      _
    $region11: #{transformer_decoder.15} parent=1 // pred_check_branch
      %37 = sbr.rel (0) target = $region13
    $region12: #{transformer_decoder.15} parent=1 // pred_region
      %39 = vsyncadd [#allocation5], 0
      %s41 = sshll.u32 %s2, 4
      %s42 = int_to_ptr.hbm [resolvable:$true] %s41
      %s43 = sshll.u32 [#allocation6], 4
      %s44 = int_to_ptr.vmem [resolvable:$true] %s43
      %46 = dma.hbm_to_vmem [thread:$0]  %s42, 16, %s44, [#allocation5]
    $region13: #{transformer_decoder.15} parent=1 // pred_fallthru
      _
    // Predicated region
    $region14: #{transformer_decoder.15} parent=1 // pred_check
      _
    $region15: #{transformer_decoder.15} parent=1 // pred_check_branch
      %48 = sbr.rel (0) target = $region17
    $region16: #{transformer_decoder.15} parent=1 // pred_region
      %50 = dma.done [#allocation3], 256
    $region17: #{transformer_decoder.15} parent=1 // pred_fallthru
      _
    // Predicated region
    $region18: #{transformer_decoder.15} parent=1 // pred_check
      _
    $region19: #{transformer_decoder.15} parent=1 // pred_check_branch
      %52 = sbr.rel (0) target = $region21
    $region20: #{transformer_decoder.15} parent=1 // pred_region
      %54 = dma.done [#allocation5], 256
    $region21: #{transformer_decoder.15} parent=1 // pred_fallthru
      _
    // Predicated region
    $region22: #{transformer_decoder.15} parent=1 // pred_check
      _
    $region23: #{transformer_decoder.15} parent=1 // pred_check_branch
      %56 = sbr.rel (0) target = $region25
    $region24: #{transformer_decoder.15} parent=1 // pred_region
      %58 = dma.done [#allocation5], 16
    $region25: #{transformer_decoder.15} parent=1 // pred_fallthru
      _
    %v60 = vld [vmem:[#allocation2] sm:$0xff]
    %v61 = vld [vmem:[#allocation2 + $0x8] sm:$0xff]
    %v62 = vpack.c.bf16 %v61, %v60
    %v63 = vld [vmem:[#allocation4] sm:$0xf]
    %v64 = vld [vmem:[#allocation4 + $0x4] sm:$0xf]
    %v65 = vld [vmem:[#allocation4 + $0x8] sm:$0xf]
    %v66 = vld [vmem:[#allocation4 + $0xc] sm:$0xf]
    %v67 = vld [vmem:[#allocation6] sm:$0x1]
    %v69 = vperm.slane %v67, 0
    %v75 = vunpack.c.l.b16 %v63
    %v76 = vunpack.c.l.b16 %v64
    %v77 = vunpack.c.l.b16 %v65
    %v78 = vunpack.c.l.b16 %v66
    %v79 = vpack.c.b16 %v76, %v75
    %v80 = vpack.c.b16 %v78, %v77
    %vm83 = vcmask 261120
    %v85 = vsel %vm83, %v62, 0
    %87 = vmatpush.bf16.msra.mxu0 0
    %88 = vmatpush.bf16.msra.mxu0 0
    %89 = vmatpush.bf16.msra.mxu0 0
    %90 = vmatpush.bf16.msra.mxu0 0
    %91 = vmatpush.bf16.msra.mxu0 0
    %92 = vmatpush.bf16.msra.mxu0 0
    %93 = vmatpush.bf16.msra.mxu0 %v80
    %94 = vmatpush.bf16.msra.mxu0 %v79
    %95 = vmatmul.bf16.gmra.mxu0 %v85
    %v96 = vpop.f32.mrf.mxu0
    %v97 = vadd.f32 %v69, %v96
    %v98 = vpop.f32.mrf.mxu0
    %v99 = vadd.f32 %v69, %v98
    %100 = vdwg.mxu0
    %v101 = vpack.c.bf16 %v97, %v97
    %v102 = vpack.c.bf16 %v99, %v99
    %vm103 = vcmask 519168
    %104 = vst.msk [vmem:[%s3] sm:$0xf] %vm103, %v101
    %105 = vst.msk [vmem:[%s3 + $0x4] sm:$0xf] %vm103, %v102
    // Predicated region
    $region26: #{transformer_decoder.15} parent=1 // pred_check
      _
    $region27: #{transformer_decoder.15} parent=1 // pred_check_branch
      %107 = sbr.rel (0) target = $region29
    $region28: #{transformer_decoder.15} parent=1 // pred_region
      _
    $region29: #{transformer_decoder.15} parent=1 // pred_fallthru
      _
    // Predicated region
    $region30: #{transformer_decoder.15} parent=1 // pred_check
      _
    $region31: #{transformer_decoder.15} parent=1 // pred_check_branch
      %109 = sbr.rel (0) target = $region33
    $region32: #{transformer_decoder.15} parent=1 // pred_region
      _
    $region33: #{transformer_decoder.15} parent=1 // pred_fallthru
      _
    %110 = vsyncpa [#allocation3], 1
    %111 = vsyncpa [#allocation5], 1

// kernel: transformer_decoder.12
$region0: #{transformer_decoder.12}
  #allocation0 [shape = 'u32[]', space=smem, size = 0x4, offset = 0x4, fixed_abs, tag = 'smem constant byte address 0x4 - core index']
  #allocation1 [shape = 'u32[72,128]{1,0:T(1,128)}', space=vmem, size = 0x9000, scoped, tag = 'internal scratch']
  %s0 = inlined_call_operand.vmem [shape: f32[16,32], index: 0, kind: input, shape index: {}]
  %s1 = inlined_call_operand.vmem [shape: bf16[32,96], index: 1, kind: input, shape index: {}]
  %s2 = inlined_call_operand.vmem [shape: f32[1,96], index: 2, kind: input, shape index: {}]
  %s3 = inlined_call_operand.vmem [shape: bf16[16,32], index: 3, kind: output, shape index: {0}]
  %s4 = inlined_call_operand.vmem [shape: bf16[16,64], index: 4, kind: output, shape index: {1}]
  %5 = xla_tuple %s3, %s4
  %s6 = sld [smem:[#allocation0]]
  $region30: #{transformer_decoder.12} parent=0
    _
  %s8 = ssub.s32 1, %s6
  %s9 = scalar_select 0, %s8, %s6
  // Predicated region
  $region2: #{transformer_decoder.12} parent=0 // pred_check
    _
  $region3: #{transformer_decoder.12} parent=0 // pred_check_branch
    %11 = sbr.rel (0) target = $region5
  $region4: #{transformer_decoder.12} parent=0 // pred_region
    _
  $region5: #{transformer_decoder.12} parent=0 // pred_fallthru
    _
  // Predicated region
  $region6: #{transformer_decoder.12} parent=0 // pred_check
    _
  $region7: #{transformer_decoder.12} parent=0 // pred_check_branch
    %13 = sbr.rel (0) target = $region9
  $region8: #{transformer_decoder.12} parent=0 // pred_region
    _
  $region9: #{transformer_decoder.12} parent=0 // pred_fallthru
    _
  // Predicated region
  $region10: #{transformer_decoder.12} parent=0 // pred_check
    _
  $region11: #{transformer_decoder.12} parent=0 // pred_check_branch
    %15 = sbr.rel (0) target = $region13
  $region12: #{transformer_decoder.12} parent=0 // pred_region
    _
  $region13: #{transformer_decoder.12} parent=0 // pred_fallthru
    _
  %v17 = vld [vmem:[%s0] sm:$0xff]
  %v18 = vld [vmem:[%s0 + $0x8] sm:$0xff]
  %v19 = vpack.c.bf16 %v18, %v17
  %v20 = vld [vmem:[%s1] sm:$0xf]
  %v21 = vld [vmem:[%s1 + $0x4] sm:$0xf]
  %v22 = vld [vmem:[%s1 + $0x8] sm:$0xf]
  %v23 = vld [vmem:[%s1 + $0xc] sm:$0xf]
  %v24 = vld [vmem:[%s2] sm:$0x1]
  %v26 = vperm.slane %v24, 0
  %v32 = vunpack.c.l.b16 %v20
  %v33 = vunpack.c.l.b16 %v21
  %v34 = vunpack.c.l.b16 %v22
  %v35 = vunpack.c.l.b16 %v23
  %v36 = vpack.c.b16 %v33, %v32
  %v37 = vpack.c.b16 %v35, %v34
  %vm40 = vcmask 261120
  %v42 = vsel %vm40, %v19, 0
  %44 = vmatpush.bf16.msra.mxu0 0
  %45 = vmatpush.bf16.msra.mxu0 0
  %46 = vmatpush.bf16.msra.mxu0 0
  %47 = vmatpush.bf16.msra.mxu0 0
  %48 = vmatpush.bf16.msra.mxu0 0
  %49 = vmatpush.bf16.msra.mxu0 0
  %50 = vmatpush.bf16.msra.mxu0 %v37
  %51 = vmatpush.bf16.msra.mxu0 %v36
  %52 = vmatmul.bf16.gmra.mxu0 %v42
  %v53 = vpop.f32.mrf.mxu0
  %v54 = vadd.f32 %v26, %v53
  %v55 = vpop.f32.mrf.mxu0
  %v56 = vadd.f32 %v26, %v55
  %57 = vdwg.mxu0
  %v58 = vpack.c.bf16 %v54, %v54
  %v59 = vpack.c.bf16 %v56, %v56
  %vm60 = vcmask 257024
  %61 = vst.msk [vmem:[%s3] sm:$0xf] %vm60, %v58
  %62 = vst.msk [vmem:[%s3 + $0x4] sm:$0xf] %vm60, %v59
  %65 = vrot.lane.b32.xlu0 %v58, 96
  %v66 = vpop.permute.xlu0 %65
  %67 = vrot.lane.b32.xlu0 %v59, 96
  %v68 = vpop.permute.xlu0 %67
  %vm71 = vcmask 519168
  %72 = vst.msk [vmem:[%s4] sm:$0xf] %vm71, %v66
  %73 = vst.msk [vmem:[%s4 + $0x4] sm:$0xf] %vm71, %v68
  // Predicated region
  $region14: #{transformer_decoder.12} parent=0 // pred_check
    _
  $region15: #{transformer_decoder.12} parent=0 // pred_check_branch
    %75 = sbr.rel (0) target = $region17
  $region16: #{transformer_decoder.12} parent=0 // pred_region
    _
  $region17: #{transformer_decoder.12} parent=0 // pred_fallthru
    _
  // Predicated region
  $region18: #{transformer_decoder.12} parent=0 // pred_check
    _
  $region19: #{transformer_decoder.12} parent=0 // pred_check_branch
    %77 = sbr.rel (0) target = $region21
  $region20: #{transformer_decoder.12} parent=0 // pred_region
    _
  $region21: #{transformer_decoder.12} parent=0 // pred_fallthru
    _
  // Predicated region
  $region22: #{transformer_decoder.12} parent=0 // pred_check
    _
  $region23: #{transformer_decoder.12} parent=0 // pred_check_branch
    %79 = sbr.rel (0) target = $region25
  $region24: #{transformer_decoder.12} parent=0 // pred_region
    _
  $region25: #{transformer_decoder.12} parent=0 // pred_fallthru
    _
  // Predicated region
  $region26: #{transformer_decoder.12} parent=0 // pred_check
    _
  $region27: #{transformer_decoder.12} parent=0 // pred_check_branch
    %81 = sbr.rel (0) target = $region29
  $region28: #{transformer_decoder.12} parent=0 // pred_region
    _
  $region29: #{transformer_decoder.12} parent=0 // pred_fallthru
    _

// kernel: transformer_decoder.14
$region0: #{transformer_decoder.14}
  #allocation0 [shape = 'u32[]', space=smem, size = 0x4, offset = 0x4, fixed_abs, tag = 'smem constant byte address 0x4 - core index']
  #allocation1 [shape = 'u32[72,128]{1,0:T(1,128)}', space=vmem, size = 0x9000, scoped, tag = 'internal scratch']
  %s0 = inlined_call_operand.vmem [shape: f32[16,32], index: 0, kind: input, shape index: {}]
  %s1 = inlined_call_operand.hbm [shape: bf16[32,32], index: 1, kind: input, shape index: {}]
  %s2 = inlined_call_operand.hbm [shape: f32[1,32], index: 2, kind: input, shape index: {}]
  %s3 = inlined_call_operand.vmem [shape: bf16[16,32], index: 3, kind: output, shape index: {}]
  %s4 = sld [smem:[#allocation0]]
  $region30: #{transformer_decoder.14} parent=0
    _
  %s6 = ssub.s32 1, %s4
  %s7 = scalar_select 0, %s6, %s4
  $region1: #{transformer_decoder.14} parent=0
    #allocation2 [shape = 'u8[8192]{0}', space=vmem, size = 0x2000, scoped, tag = 'input window, operand 1, single buffered']
    #allocation3 [shape = 's32[1]{0}', space=sflag, size = 0x4, scoped, tag = 'scoped memory for transformer_decoder.14']
    #allocation4 [shape = 'u8[512]{0}', space=vmem, size = 0x400, scoped, tag = 'input window, operand 2, single buffered']
    #allocation5 [shape = 's32[1]{0}', space=sflag, size = 0x4, scoped, tag = 'scoped memory for transformer_decoder.14']
    %8 = vsyncpa [#allocation3], 0
    %9 = vsyncpa [#allocation5], 0
    // Predicated region
    $region2: #{transformer_decoder.14} parent=1 // pred_check
      _
    $region3: #{transformer_decoder.14} parent=1 // pred_check_branch
      %11 = sbr.rel (0) target = $region5
    $region4: #{transformer_decoder.14} parent=1 // pred_region
      _
    $region5: #{transformer_decoder.14} parent=1 // pred_fallthru
      _
    // Predicated region
    $region6: #{transformer_decoder.14} parent=1 // pred_check
      _
    $region7: #{transformer_decoder.14} parent=1 // pred_check_branch
      %13 = sbr.rel (0) target = $region9
    $region8: #{transformer_decoder.14} parent=1 // pred_region
      %15 = vsyncadd [#allocation3], 0
      %s16 = sshll.u32 %s1, 4
      %s17 = int_to_ptr.hbm [resolvable:$true] %s16
      %s18 = sshll.u32 [#allocation2], 4
      %s19 = int_to_ptr.vmem [resolvable:$true] %s18
      %24 = dma.hbm_to_vmem [thread:$0]  %s17, 256, %s19, [#allocation3], 64, 64, 4
    $region9: #{transformer_decoder.14} parent=1 // pred_fallthru
      _
    // Predicated region
    $region10: #{transformer_decoder.14} parent=1 // pred_check
      _
    $region11: #{transformer_decoder.14} parent=1 // pred_check_branch
      %26 = sbr.rel (0) target = $region13
    $region12: #{transformer_decoder.14} parent=1 // pred_region
      %28 = vsyncadd [#allocation5], 0
      %s30 = sshll.u32 %s2, 4
      %s31 = int_to_ptr.hbm [resolvable:$true] %s30
      %s32 = sshll.u32 [#allocation4], 4
      %s33 = int_to_ptr.vmem [resolvable:$true] %s32
      %35 = dma.hbm_to_vmem [thread:$0]  %s31, 16, %s33, [#allocation5]
    $region13: #{transformer_decoder.14} parent=1 // pred_fallthru
      _
    // Predicated region
    $region14: #{transformer_decoder.14} parent=1 // pred_check
      _
    $region15: #{transformer_decoder.14} parent=1 // pred_check_branch
      %37 = sbr.rel (0) target = $region17
    $region16: #{transformer_decoder.14} parent=1 // pred_region
      %39 = dma.done [#allocation3], 256
    $region17: #{transformer_decoder.14} parent=1 // pred_fallthru
      _
    // Predicated region
    $region18: #{transformer_decoder.14} parent=1 // pred_check
      _
    $region19: #{transformer_decoder.14} parent=1 // pred_check_branch
      %41 = sbr.rel (0) target = $region21
    $region20: #{transformer_decoder.14} parent=1 // pred_region
      %43 = dma.done [#allocation5], 16
    $region21: #{transformer_decoder.14} parent=1 // pred_fallthru
      _
    %v45 = vld [vmem:[%s0] sm:$0xff]
    %v46 = vld [vmem:[%s0 + $0x8] sm:$0xff]
    %v47 = vpack.c.bf16 %v46, %v45
    %v48 = vld [vmem:[#allocation2] sm:$0xf]
    %v49 = vld [vmem:[#allocation2 + $0x4] sm:$0xf]
    %v50 = vld [vmem:[#allocation2 + $0x8] sm:$0xf]
    %v51 = vld [vmem:[#allocation2 + $0xc] sm:$0xf]
    %v52 = vld [vmem:[#allocation4] sm:$0x1]
    %v54 = vperm.slane %v52, 0
    %v60 = vunpack.c.l.b16 %v48
    %v61 = vunpack.c.l.b16 %v49
    %v62 = vunpack.c.l.b16 %v50
    %v63 = vunpack.c.l.b16 %v51
    %v64 = vpack.c.b16 %v61, %v60
    %v65 = vpack.c.b16 %v63, %v62
    %vm68 = vcmask 261120
    %v70 = vsel %vm68, %v47, 0
    %72 = vmatpush.bf16.msra.mxu0 0
    %73 = vmatpush.bf16.msra.mxu0 0
    %74 = vmatpush.bf16.msra.mxu0 0
    %75 = vmatpush.bf16.msra.mxu0 0
    %76 = vmatpush.bf16.msra.mxu0 0
    %77 = vmatpush.bf16.msra.mxu0 0
    %78 = vmatpush.bf16.msra.mxu0 %v65
    %79 = vmatpush.bf16.msra.mxu0 %v64
    %80 = vmatmul.bf16.gmra.mxu0 %v70
    %v81 = vpop.f32.mrf.mxu0
    %v82 = vadd.f32 %v54, %v81
    %v83 = vpop.f32.mrf.mxu0
    %v84 = vadd.f32 %v54, %v83
    %85 = vdwg.mxu0
    %v86 = vpack.c.bf16 %v82, %v82
    %v87 = vpack.c.bf16 %v84, %v84
    %vm88 = vcmask 257024
    %89 = vst.msk [vmem:[%s3] sm:$0xf] %vm88, %v86
    %90 = vst.msk [vmem:[%s3 + $0x4] sm:$0xf] %vm88, %v87
    // Predicated region
    $region22: #{transformer_decoder.14} parent=1 // pred_check
      _
    $region23: #{transformer_decoder.14} parent=1 // pred_check_branch
      %92 = sbr.rel (0) target = $region25
    $region24: #{transformer_decoder.14} parent=1 // pred_region
      _
    $region25: #{transformer_decoder.14} parent=1 // pred_fallthru
      _
    // Predicated region
    $region26: #{transformer_decoder.14} parent=1 // pred_check
      _
    $region27: #{transformer_decoder.14} parent=1 // pred_check_branch
      %94 = sbr.rel (0) target = $region29
    $region28: #{transformer_decoder.14} parent=1 // pred_region
      _
    $region29: #{transformer_decoder.14} parent=1 // pred_fallthru
      _
    %95 = vsyncpa [#allocation3], 1
    %96 = vsyncpa [#allocation5], 1

// kernel: transformer_decoder.13
$region0: #{transformer_decoder.13}
  #allocation0 [shape = 'u32[]', space=smem, size = 0x4, offset = 0x4, fixed_abs, tag = 'smem constant byte address 0x4 - core index']
  #allocation1 [shape = 'u32[72,128]{1,0:T(1,128)}', space=vmem, size = 0x9000, scoped, tag = 'internal scratch']
  %s0 = inlined_call_operand.vmem [shape: bf16[2,8,32], index: 0, kind: input, shape index: {}]
  %s1 = inlined_call_operand.vmem [shape: bf16[2,8,64], index: 1, kind: input, shape index: {}]
  %s2 = inlined_call_operand.vmem [shape: f32[2,8,32], index: 2, kind: input, shape index: {}]
  %s3 = inlined_call_operand.hbm [shape: bf16[32,32], index: 3, kind: input, shape index: {}]
  %s4 = inlined_call_operand.vmem [shape: f32[1,32], index: 4, kind: input, shape index: {}]
  %s5 = inlined_call_operand.vmem [shape: f32[1,32], index: 5, kind: input, shape index: {}]
  %s6 = inlined_call_operand.vmem [shape: f32[1,32], index: 6, kind: input, shape index: {}]
  %s7 = inlined_call_operand.vmem [shape: f32[2,8,32], index: 7, kind: output, shape index: {}]
  %s8 = sld [smem:[#allocation0]]
  $region65: #{transformer_decoder.13} parent=0
    _
  %s10 = ssub.s32 1, %s8
  %s11 = scalar_select 0, %s10, %s8
  $region1: #{transformer_decoder.13} parent=0
    #allocation2 [shape = 'u8[8192]{0}', space=vmem, size = 0x2000, scoped, tag = 'input window, operand 3, single buffered']
    #allocation3 [shape = 's32[2]{0}', space=sflag, size = 0x8, scoped, tag = 'scoped memory for transformer_decoder.13']
    %12 = vsyncpa [#allocation3], 0
    loop: start=0, step=1, limit=4
    $region2: #{transformer_decoder.13} parent=1 // loop_pre_header
      _
    $region3: #{transformer_decoder.13} parent=1 // loop_header
      %s14 = sphi 0, %s18
      %p15 = scmp.ge.s32.totalorder %s14, 4
      %s21 = sphi 0, %s33
      %s22 = sphi 0, %s29
      %s23 = sphi 0, %s21
      %s24 = sphi 0, %s22
      %s25 = sphi 0, %s23
      %s26 = sphi 0, %s24
      %s38 = sphi 0, %s40
      %s41 = sphi 0, %s38
      %s42 = sphi 0, %s41
      %s58 = sphi 0, %s42
      %s64 = sphi 0, %s66
      %s67 = sphi 0, %s64
      %s68 = sphi 0, %s67
      %s84 = sphi 0, %s68
      %s92 = sphi 0, %s94
      %s95 = sphi 0, %s92
      %s96 = sphi 0, %s95
      %s112 = sphi 0, %s96
      %s116 = sphi 0, %s116
      %s118 = sphi 0, %s116
      %s119 = sphi 0, %s118
      %s133 = sphi 0, %s119
      %s137 = sphi 0, %s137
      %s139 = sphi 0, %s137
      %s140 = sphi 0, %s139
      %s154 = sphi 0, %s140
      %s158 = sphi 0, %s158
      %s160 = sphi 0, %s158
      %s161 = sphi 0, %s160
      %s175 = sphi 0, %s161
      %s179 = sphi 0, %s179
      %s181 = sphi 0, %s179
      %s182 = sphi 0, %s181
      %s196 = sphi 0, %s182
      %s204 = sphi 0, %s206
      %s207 = sphi 0, %s204
      %s208 = sphi 0, %s207
      %s224 = sphi 0, %s208
    $region4: #{transformer_decoder.13} parent=1 // loop_header_branch
      %17 = sbr.rel (%p15) target = $region8
    $region5: #{transformer_decoder.13} parent=1 // loop_body
      %s19 = ssub.s32 %s14, 1
      %s20 = ssub.s32 %s14, 2
      %s27 = sadd.s32 1, %s22
      %p28 = scmp.ge.s32.totalorder %s27, 1
      %s29 = scalar_select %p28, 0, %s27
      %s30 = sadd.s32 1, %s21
      %s31 = scalar_select %p28, %s30, %s21
      %p32 = scmp.ge.s32.totalorder %s31, 2
      %s33 = scalar_select %p32, 0, %s31
      %s34 = ssub.s32 %s21, %s33
      %s35 = ssub.s32 %s22, %s29
      %s36 = sor.u32 %s34, %s35
      %p37 = scmp.eq.s32.totalorder %s36, 0
      %s39 = sadd.s32 %s38, 1
      %s40 = scalar_select %p37, %s38, %s39
      %p43 = pneg %p37
      %p44 = scmp.eq.s32.totalorder %s14, 1
      %p45 = por %p43, %p44
      %p46 = scmp.ne.s32.totalorder %s38, %s41
      %p47 = scmp.eq.s32.totalorder %s14, 0
      %p48 = por %p46, %p47
      %p49 = scmp.ne.s32.totalorder %s38, %s41
      %p50 = scmp.eq.s32.totalorder %s19, 1
      %p51 = por %p49, %p50
      %p52 = scmp.ne.s32.totalorder %s41, %s42
      %p53 = scmp.eq.s32.totalorder %s19, 0
      %p54 = por %p52, %p53
      %p55 = scmp.ne.s32.totalorder %s41, %s42
      %p56 = scmp.eq.s32.totalorder %s20, 1
      %p57 = por %p55, %p56
      %p59 = scmp.ne.s32.totalorder %s42, %s58
      %p60 = scmp.eq.s32.totalorder %s20, 0
      %p61 = por %p59, %p60
      %s62 = ssub.s32 %s21, %s33
      %p63 = scmp.eq.s32.totalorder %s62, 0
      %s65 = sadd.s32 %s64, 1
      %s66 = scalar_select %p63, %s64, %s65
      %p69 = pneg %p63
      %p70 = scmp.eq.s32.totalorder %s14, 1
      %p71 = por %p69, %p70
      %p72 = scmp.ne.s32.totalorder %s64, %s67
      %p73 = scmp.eq.s32.totalorder %s14, 0
      %p74 = por %p72, %p73
      %p75 = scmp.ne.s32.totalorder %s64, %s67
      %p76 = scmp.eq.s32.totalorder %s19, 1
      %p77 = por %p75, %p76
      %p78 = scmp.ne.s32.totalorder %s67, %s68
      %p79 = scmp.eq.s32.totalorder %s19, 0
      %p80 = por %p78, %p79
      %p81 = scmp.ne.s32.totalorder %s67, %s68
      %p82 = scmp.eq.s32.totalorder %s20, 1
      %p83 = por %p81, %p82
      %p85 = scmp.ne.s32.totalorder %s68, %s84
      %p86 = scmp.eq.s32.totalorder %s20, 0
      %p87 = por %p85, %p86
      %s88 = ssub.s32 %s21, %s33
      %s89 = ssub.s32 %s22, %s29
      %s90 = sor.u32 %s88, %s89
      %p91 = scmp.eq.s32.totalorder %s90, 0
      %s93 = sadd.s32 %s92, 1
      %s94 = scalar_select %p91, %s92, %s93
      %p97 = pneg %p91
      %p98 = scmp.eq.s32.totalorder %s14, 1
      %p99 = por %p97, %p98
      %p100 = scmp.ne.s32.totalorder %s92, %s95
      %p101 = scmp.eq.s32.totalorder %s14, 0
      %p102 = por %p100, %p101
      %p103 = scmp.ne.s32.totalorder %s92, %s95
      %p104 = scmp.eq.s32.totalorder %s19, 1
      %p105 = por %p103, %p104
      %p106 = scmp.ne.s32.totalorder %s95, %s96
      %p107 = scmp.eq.s32.totalorder %s19, 0
      %p108 = por %p106, %p107
      %p109 = scmp.ne.s32.totalorder %s95, %s96
      %p110 = scmp.eq.s32.totalorder %s20, 1
      %p111 = por %p109, %p110
      %p113 = scmp.ne.s32.totalorder %s96, %s112
      %p114 = scmp.eq.s32.totalorder %s20, 0
      %p115 = por %p113, %p114
      %s117 = sadd.s32 %s116, 1
      %p120 = scmp.eq.s32.totalorder %s14, 1
      %p121 = scmp.ne.s32.totalorder %s116, %s118
      %p122 = scmp.eq.s32.totalorder %s14, 0
      %p123 = por %p121, %p122
      %p124 = scmp.ne.s32.totalorder %s116, %s118
      %p125 = scmp.eq.s32.totalorder %s19, 1
      %p126 = por %p124, %p125
      %p127 = scmp.ne.s32.totalorder %s118, %s119
      %p128 = scmp.eq.s32.totalorder %s19, 0
      %p129 = por %p127, %p128
      %p130 = scmp.ne.s32.totalorder %s118, %s119
      %p131 = scmp.eq.s32.totalorder %s20, 1
      %p132 = por %p130, %p131
      %p134 = scmp.ne.s32.totalorder %s119, %s133
      %p135 = scmp.eq.s32.totalorder %s20, 0
      %p136 = por %p134, %p135
      %s138 = sadd.s32 %s137, 1
      %p141 = scmp.eq.s32.totalorder %s14, 1
      %p142 = scmp.ne.s32.totalorder %s137, %s139
      %p143 = scmp.eq.s32.totalorder %s14, 0
      %p144 = por %p142, %p143
      %p145 = scmp.ne.s32.totalorder %s137, %s139
      %p146 = scmp.eq.s32.totalorder %s19, 1
      %p147 = por %p145, %p146
      %p148 = scmp.ne.s32.totalorder %s139, %s140
      %p149 = scmp.eq.s32.totalorder %s19, 0
      %p150 = por %p148, %p149
      %p151 = scmp.ne.s32.totalorder %s139, %s140
      %p152 = scmp.eq.s32.totalorder %s20, 1
      %p153 = por %p151, %p152
      %p155 = scmp.ne.s32.totalorder %s140, %s154
      %p156 = scmp.eq.s32.totalorder %s20, 0
      %p157 = por %p155, %p156
      %s159 = sadd.s32 %s158, 1
      %p162 = scmp.eq.s32.totalorder %s14, 1
      %p163 = scmp.ne.s32.totalorder %s158, %s160
      %p164 = scmp.eq.s32.totalorder %s14, 0
      %p165 = por %p163, %p164
      %p166 = scmp.ne.s32.totalorder %s158, %s160
      %p167 = scmp.eq.s32.totalorder %s19, 1
      %p168 = por %p166, %p167
      %p169 = scmp.ne.s32.totalorder %s160, %s161
      %p170 = scmp.eq.s32.totalorder %s19, 0
      %p171 = por %p169, %p170
      %p172 = scmp.ne.s32.totalorder %s160, %s161
      %p173 = scmp.eq.s32.totalorder %s20, 1
      %p174 = por %p172, %p173
      %p176 = scmp.ne.s32.totalorder %s161, %s175
      %p177 = scmp.eq.s32.totalorder %s20, 0
      %p178 = por %p176, %p177
      %s180 = sadd.s32 %s179, 1
      %p183 = scmp.eq.s32.totalorder %s14, 1
      %p184 = scmp.ne.s32.totalorder %s179, %s181
      %p185 = scmp.eq.s32.totalorder %s14, 0
      %p186 = por %p184, %p185
      %p187 = scmp.ne.s32.totalorder %s179, %s181
      %p188 = scmp.eq.s32.totalorder %s19, 1
      %p189 = por %p187, %p188
      %p190 = scmp.ne.s32.totalorder %s181, %s182
      %p191 = scmp.eq.s32.totalorder %s19, 0
      %p192 = por %p190, %p191
      %p193 = scmp.ne.s32.totalorder %s181, %s182
      %p194 = scmp.eq.s32.totalorder %s20, 1
      %p195 = por %p193, %p194
      %p197 = scmp.ne.s32.totalorder %s182, %s196
      %p198 = scmp.eq.s32.totalorder %s20, 0
      %p199 = por %p197, %p198
      %s200 = ssub.s32 %s21, %s33
      %s201 = ssub.s32 %s22, %s29
      %s202 = sor.u32 %s200, %s201
      %p203 = scmp.eq.s32.totalorder %s202, 0
      %s205 = sadd.s32 %s204, 1
      %s206 = scalar_select %p203, %s204, %s205
      %p209 = pneg %p203
      %p210 = scmp.eq.s32.totalorder %s14, 1
      %p211 = por %p209, %p210
      %p212 = scmp.ne.s32.totalorder %s204, %s207
      %p213 = scmp.eq.s32.totalorder %s14, 0
      %p214 = por %p212, %p213
      %p215 = scmp.ne.s32.totalorder %s204, %s207
      %p216 = scmp.eq.s32.totalorder %s19, 1
      %p217 = por %p215, %p216
      %p218 = scmp.ne.s32.totalorder %s207, %s208
      %p219 = scmp.eq.s32.totalorder %s19, 0
      %p220 = por %p218, %p219
      %p221 = scmp.ne.s32.totalorder %s207, %s208
      %p222 = scmp.eq.s32.totalorder %s20, 1
      %p223 = por %p221, %p222
      %p225 = scmp.ne.s32.totalorder %s208, %s224
      %p226 = scmp.eq.s32.totalorder %s20, 0
      %p227 = por %p225, %p226
      %p228 = scmp.le.s32.totalorder 1, %s14
      %p229 = scmp.lt.s32.totalorder %s14, 3
      %p230 = pnand %p228, %p229
      %p231 = pneg %p230
      // Predicated region
      $region9: #{transformer_decoder.13} parent=5 // pred_check
        _
      $region10: #{transformer_decoder.13} parent=5 // pred_check_branch
        %233 = sbr.rel (%p230) target = $region12
      $region11: #{transformer_decoder.13} parent=5 // pred_region
        %s234 = ssub.s32 %s14, 1
        // Predicated region
        $region13: #{transformer_decoder.13} parent=11 // pred_check
          %p235 = pneg %p129
        $region14: #{transformer_decoder.13} parent=11 // pred_check_branch
          %237 = sbr.rel (%p235) target = $region16
        $region15: #{transformer_decoder.13} parent=11 // pred_region
          %239 = vsyncadd [#allocation3], 0
          %s240 = sshll.u32 %s3, 4
          %s241 = int_to_ptr.hbm [resolvable:$true] %s240
          %s242 = sshll.u32 [#allocation2], 4
          %s243 = int_to_ptr.vmem [resolvable:$true] %s242
          %248 = dma.hbm_to_vmem [thread:$0]  %s241, 256, %s243, [#allocation3], 64, 64, 4
        $region16: #{transformer_decoder.13} parent=11 // pred_fallthru
          _
        // Predicated region
        $region17: #{transformer_decoder.13} parent=11 // pred_check
          %p249 = pneg %p150
        $region18: #{transformer_decoder.13} parent=11 // pred_check_branch
          %251 = sbr.rel (%p249) target = $region20
        $region19: #{transformer_decoder.13} parent=11 // pred_region
          _
        $region20: #{transformer_decoder.13} parent=11 // pred_fallthru
          _
        // Predicated region
        $region21: #{transformer_decoder.13} parent=11 // pred_check
          %p252 = pneg %p171
        $region22: #{transformer_decoder.13} parent=11 // pred_check_branch
          %254 = sbr.rel (%p252) target = $region24
        $region23: #{transformer_decoder.13} parent=11 // pred_region
          _
        $region24: #{transformer_decoder.13} parent=11 // pred_fallthru
          _
        // Predicated region
        $region25: #{transformer_decoder.13} parent=11 // pred_check
          %p255 = pneg %p192
        $region26: #{transformer_decoder.13} parent=11 // pred_check_branch
          %257 = sbr.rel (%p255) target = $region28
        $region27: #{transformer_decoder.13} parent=11 // pred_region
          _
        $region28: #{transformer_decoder.13} parent=11 // pred_fallthru
          _
      $region12: #{transformer_decoder.13} parent=5 // pred_fallthru
        _
      %p258 = scmp.lt.s32.totalorder %s14, 2
      // Predicated region
      $region29: #{transformer_decoder.13} parent=5 // pred_check
        %p259 = pneg %p258
      $region30: #{transformer_decoder.13} parent=5 // pred_check_branch
        %261 = sbr.rel (%p259) target = $region32
      $region31: #{transformer_decoder.13} parent=5 // pred_region
        // Predicated region
        $region33: #{transformer_decoder.13} parent=31 // pred_check
          %p262 = pneg %p48
        $region34: #{transformer_decoder.13} parent=31 // pred_check_branch
          %264 = sbr.rel (%p262) target = $region36
        $region35: #{transformer_decoder.13} parent=31 // pred_region
          %p265 = scmp.lt.s32.totalorder %s21, 1
          %s266 = scalar_select %p265, %s21, 1
          %p267 = scmp.lt.s32.totalorder %s22, 0
          %s268 = scalar_select %p267, %s22, 0
          %s269 = sadd.s32 %s268, %s266
          %s270 = smul.addr %s269, 4
          %s271 = scalar_lea.vmem %s0, %s270
        $region36: #{transformer_decoder.13} parent=31 // pred_fallthru
          _
        // Predicated region
        $region37: #{transformer_decoder.13} parent=31 // pred_check
          %p272 = pneg %p74
        $region38: #{transformer_decoder.13} parent=31 // pred_check_branch
          %274 = sbr.rel (%p272) target = $region40
        $region39: #{transformer_decoder.13} parent=31 // pred_region
          %p275 = scmp.lt.s32.totalorder %s21, 1
          %s276 = scalar_select %p275, %s21, 1
          %s277 = smul.addr %s276, 4
          %s278 = scalar_lea.vmem %s1, %s277
        $region40: #{transformer_decoder.13} parent=31 // pred_fallthru
          _
        // Predicated region
        $region41: #{transformer_decoder.13} parent=31 // pred_check
          %p279 = pneg %p102
        $region42: #{transformer_decoder.13} parent=31 // pred_check_branch
          %281 = sbr.rel (%p279) target = $region44
        $region43: #{transformer_decoder.13} parent=31 // pred_region
          %p282 = scmp.lt.s32.totalorder %s21, 1
          %s283 = scalar_select %p282, %s21, 1
          %p284 = scmp.lt.s32.totalorder %s22, 0
          %s285 = scalar_select %p284, %s22, 0
          %s286 = sadd.s32 %s285, %s283
          %s287 = smul.addr %s286, 8
          %s288 = scalar_lea.vmem %s2, %s287
        $region44: #{transformer_decoder.13} parent=31 // pred_fallthru
          _
      $region32: #{transformer_decoder.13} parent=5 // pred_fallthru
        _
      %p289 = scmp.le.s32.totalorder 1, %s14
      %p290 = scmp.lt.s32.totalorder %s14, 3
      %p291 = pnand %p289, %p290
      %p292 = pneg %p291
      // Predicated region
      $region45: #{transformer_decoder.13} parent=5 // pred_check
        _
      $region46: #{transformer_decoder.13} parent=5 // pred_check_branch
        %294 = sbr.rel (%p291) target = $region48
      $region47: #{transformer_decoder.13} parent=5 // pred_region
        %s295 = ssub.s32 %s14, 1
        // Predicated region
        $region49: #{transformer_decoder.13} parent=47 // pred_check
          %p296 = pneg %p129
        $region50: #{transformer_decoder.13} parent=47 // pred_check_branch
          %298 = sbr.rel (%p296) target = $region52
        $region51: #{transformer_decoder.13} parent=47 // pred_region
          %300 = dma.done [#allocation3], 256
        $region52: #{transformer_decoder.13} parent=47 // pred_fallthru
          _
        %p301 = scmp.lt.s32.totalorder %s23, 1
        %s302 = scalar_select %p301, %s23, 1
        %p303 = scmp.lt.s32.totalorder %s24, 0
        %s304 = scalar_select %p303, %s24, 0
        %s305 = sadd.s32 %s304, %s302
        %s306 = smul.addr %s305, 4
        %s307 = scalar_lea.vmem %s0, %s306
        %p308 = pneg %p54
        %p309 = pneg %p51
        %p310 = scmp.lt.s32.totalorder %s23, 1
        %s311 = scalar_select %p310, %s23, 1
        %s312 = smul.addr %s311, 4
        %s313 = scalar_lea.vmem %s1, %s312
        %p314 = pneg %p80
        %p315 = pneg %p77
        %p316 = scmp.lt.s32.totalorder %s23, 1
        %s317 = scalar_select %p316, %s23, 1
        %p318 = scmp.lt.s32.totalorder %s24, 0
        %s319 = scalar_select %p318, %s24, 0
        %s320 = sadd.s32 %s319, %s317
        %s321 = smul.addr %s320, 8
        %s322 = scalar_lea.vmem %s2, %s321
        %p323 = pneg %p108
        %p324 = pneg %p105
        %p325 = pneg %p129
        %p326 = pneg %p126
        %p327 = pneg %p150
        %p328 = pneg %p147
        %p329 = pneg %p171
        %p330 = pneg %p168
        %p331 = pneg %p192
        %p332 = pneg %p189
        %p333 = pneg %p220
        %p334 = pneg %p217
        %p335 = scmp.lt.s32.totalorder %s23, 1
        %s336 = scalar_select %p335, %s23, 1
        %p337 = scmp.lt.s32.totalorder %s24, 0
        %s338 = scalar_select %p337, %s24, 0
        %s339 = sadd.s32 %s338, %s336
        %s340 = smul.addr %s339, 8
        %s341 = scalar_lea.vmem %s7, %s340
        %p342 = scmp.lt.s32.totalorder %s23, 1
        %s343 = scalar_select %p342, %s23, 1
        %p344 = scmp.lt.s32.totalorder %s24, 0
        %s345 = scalar_select %p344, %s24, 0
        %s346 = sadd.s32 %s345, %s343
        %s347 = smul.addr %s346, 4
        %s348 = scalar_lea.vmem %s0, %s347
        %p349 = scmp.lt.s32.totalorder %s23, 1
        %s350 = scalar_select %p349, %s23, 1
        %s351 = smul.addr %s350, 4
        %s352 = scalar_lea.vmem %s1, %s351
        %p353 = scmp.lt.s32.totalorder %s23, 1
        %s354 = scalar_select %p353, %s23, 1
        %p355 = scmp.lt.s32.totalorder %s24, 0
        %s356 = scalar_select %p355, %s24, 0
        %s357 = sadd.s32 %s356, %s354
        %s358 = smul.addr %s357, 8
        %s359 = scalar_lea.vmem %s2, %s358
        %p360 = scmp.lt.s32.totalorder %s23, 1
        %s361 = scalar_select %p360, %s23, 1
        %p362 = scmp.lt.s32.totalorder %s24, 0
        %s363 = scalar_select %p362, %s24, 0
        %s364 = sadd.s32 %s363, %s361
        %s365 = smul.addr %s364, 8
        %s366 = scalar_lea.vmem %s7, %s365
        %v368 = vld [vmem:[%s348] sm:$0xf]
        %v369 = vld [vmem:[%s352] sm:$0xf]
        %s370 = smul.u32 %s24, 8
        %v371 = vlaneseq
        %v372 = vshrl.u32 %v371, 7
        %v373 = vstv %s370
        %v374 = vadd.s32 %v373, %v372
        %v375 = vlaneseq
        %v376 = vand.u32 %v375, 127
        %vm377 = vcmp.le.s32.totalorder %v376, %v374
        %vm378 = vcmask 64512
        %v380 = vsel %vm378, %v368, 0
        %v383 = vsel %vm378, %v369, 0
        %385 = vmatpush.bf16.xpose.msra.mxu0 0
        %386 = vmatpush.bf16.xpose.msra.mxu0 0
        %387 = vmatpush.bf16.xpose.msra.mxu0 0
        %388 = vmatpush.bf16.xpose.msra.mxu0 0
        %389 = vmatpush.bf16.xpose.msra.mxu0 0
        %390 = vmatpush.bf16.xpose.msra.mxu0 0
        %391 = vmatpush.bf16.xpose.msra.mxu0 0
        %392 = vmatpush.bf16.xpose.msra.mxu0 %v383
        %393 = vmatmul.bf16.gmra.mxu0 %v380
        %v394 = vpop.f32.mrf.mxu0
        %v395 = vadd.f32 0.0, %v394
        %v396 = vpop.f32.mrf.mxu0
        %397 = vdwg.mxu0
        %v398 = vmul.f32 %v395, 0.35355338
        %v399 = vsel %vm377, %v398, -1e+30
        %v400 = vsel %vm378, %v399, -inf
        %401 = vmax.xlane.f32.xlu0 %v400
        %v402 = vpop.xlane.xlu0 %401
        %v403 = vsub.f32 %v399, %v402
        %v404 = vmul.f32 %v403, 1.442695
        %v405 = vpow.pop %v404
        %v406 = vsel %vm378, %v405, 0.0
        %407 = vadd.xlane.f32.xlu0 %v406
        %v408 = vpop.xlane.xlu0 %407
        %v409 = vpack.c.bf16 %v405, %v405
        %v411 = vunpack.c.l.b16 %v369
        %v412 = vpack.c.b16 %v411, %v411
        %413 = vrot.lane.b32.xlu0 %v412, 96
        %v414 = vpop.permute.xlu0 %413
        %v416 = vsel %vm378, %v409, 0
        %vm418 = vcmask 1043456
        %v420 = vsel %vm418, %v414, 0
        %422 = vmatpush.bf16.msra.mxu0 0
        %423 = vmatpush.bf16.msra.mxu0 0
        %424 = vmatpush.bf16.msra.mxu0 0
        %425 = vmatpush.bf16.msra.mxu0 0
        %426 = vmatpush.bf16.msra.mxu0 0
        %427 = vmatpush.bf16.msra.mxu0 0
        %428 = vmatpush.bf16.msra.mxu0 0
        %429 = vmatpush.bf16.msra.mxu0 %v420
        %430 = vmatmul.bf16.gmra.mxu0 %v416
        %v431 = vpop.f32.mrf.mxu0
        %v432 = vadd.f32 0.0, %v431
        %v433 = vpop.f32.mrf.mxu0
        %434 = vdwg.mxu0
        %v435 = vrcp.pop %v408
        %v436 = vmul.f32 %v408, %v435
        %v437 = vsub.f32 1.0, %v436
        %v438 = vmul.f32 %v435, %v437
        %v439 = vadd.f32 %v435, %v438
        %vm440 = vweird.f32 %v408
        %vm441 = vweird.f32 %v435
        %vm442 = vmor %vm440, %vm441
        %v443 = vsel %vm442, %v435, %v439
        %v444 = vand.u32 2147483647, %v408
        %vm445 = vcmp.eq.f32.partialorder %v444, 8.507059e+37
        %v446 = vand.u32 %v408, 2147483648
        %v447 = vor.u32 1.1754944e-38, %v446
        %v448 = vsel %vm445, %v447, %v443
        %v449 = vmul.f32 %v432, %v448
        %v450 = vpack.c.bf16 %v449, %v449
        %v451 = vld [vmem:[#allocation2] sm:$0xf]
        %v453 = vunpack.c.l.b16 %v368
        %v454 = vpack.c.b16 %v453, %v453
        %455 = vrot.lane.b32.xlu0 %v454, 120
        %v456 = vpop.permute.xlu0 %455
        %457 = vrot.lane.b32.xlu0 %v412, 120
        %v458 = vpop.permute.xlu0 %457
        %v460 = vsel %vm378, %v456, 0
        %v463 = vsel %vm378, %v458, 0
        %465 = vmatpush.bf16.xpose.msra.mxu0 0
        %466 = vmatpush.bf16.xpose.msra.mxu0 0
        %467 = vmatpush.bf16.xpose.msra.mxu0 0
        %468 = vmatpush.bf16.xpose.msra.mxu0 0
        %469 = vmatpush.bf16.xpose.msra.mxu0 0
        %470 = vmatpush.bf16.xpose.msra.mxu0 0
        %471 = vmatpush.bf16.xpose.msra.mxu0 0
        %472 = vmatpush.bf16.xpose.msra.mxu0 %v463
        %473 = vmatmul.bf16.gmra.mxu0 %v460
        %v474 = vpop.f32.mrf.mxu0
        %v475 = vadd.f32 0.0, %v474
        %v476 = vpop.f32.mrf.mxu0
        %477 = vdwg.mxu0
        %v478 = vmul.f32 %v475, 0.35355338
        %v479 = vsel %vm377, %v478, -1e+30
        %v480 = vsel %vm378, %v479, -inf
        %481 = vmax.xlane.f32.xlu0 %v480
        %v482 = vpop.xlane.xlu0 %481
        %v483 = vsub.f32 %v479, %v482
        %v484 = vmul.f32 %v483, 1.442695
        %v485 = vpow.pop %v484
        %v486 = vsel %vm378, %v485, 0.0
        %487 = vadd.xlane.f32.xlu0 %v486
        %v488 = vpop.xlane.xlu0 %487
        %v489 = vpack.c.bf16 %v485, %v485
        %490 = vrot.lane.b32.xlu0 %v412, 88
        %v491 = vpop.permute.xlu0 %490
        %v493 = vsel %vm378, %v489, 0
        %v496 = vsel %vm418, %v491, 0
        %498 = vmatpush.bf16.msra.mxu0 0
        %499 = vmatpush.bf16.msra.mxu0 0
        %500 = vmatpush.bf16.msra.mxu0 0
        %501 = vmatpush.bf16.msra.mxu0 0
        %502 = vmatpush.bf16.msra.mxu0 0
        %503 = vmatpush.bf16.msra.mxu0 0
        %504 = vmatpush.bf16.msra.mxu0 0
        %505 = vmatpush.bf16.msra.mxu0 %v496
        %506 = vmatmul.bf16.gmra.mxu0 %v493
        %v507 = vpop.f32.mrf.mxu0
        %v508 = vadd.f32 0.0, %v507
        %v509 = vpop.f32.mrf.mxu0
        %510 = vdwg.mxu0
        %v511 = vrcp.pop %v488
        %v512 = vmul.f32 %v488, %v511
        %v513 = vsub.f32 1.0, %v512
        %v514 = vmul.f32 %v511, %v513
        %v515 = vadd.f32 %v511, %v514
        %vm516 = vweird.f32 %v488
        %vm517 = vweird.f32 %v511
        %vm518 = vmor %vm516, %vm517
        %v519 = vsel %vm518, %v511, %v515
        %v520 = vand.u32 2147483647, %v488
        %vm521 = vcmp.eq.f32.partialorder %v520, 8.507059e+37
        %v522 = vand.u32 %v488, 2147483648
        %v523 = vor.u32 1.1754944e-38, %v522
        %v524 = vsel %vm521, %v523, %v519
        %v525 = vmul.f32 %v508, %v524
        %v526 = vpack.c.bf16 %v525, %v525
        %v527 = vld [vmem:[#allocation2 + $0x4] sm:$0xf]
        %v529 = vsel %vm378, %v526, 0
        %v532 = vsel %vm418, %v527, 0
        %534 = vmatpush.bf16.msra.mxu0 0
        %535 = vmatpush.bf16.msra.mxu0 0
        %536 = vmatpush.bf16.msra.mxu0 0
        %537 = vmatpush.bf16.msra.mxu0 0
        %538 = vmatpush.bf16.msra.mxu0 0
        %539 = vmatpush.bf16.msra.mxu0 0
        %540 = vmatpush.bf16.msra.mxu0 0
        %541 = vmatpush.bf16.msra.mxu0 %v532
        %542 = vmatmul.bf16.gmra.mxu0 %v529
        %v543 = vpop.f32.mrf.mxu0
        %v544 = vadd.f32 0.0, %v543
        %v545 = vpop.f32.mrf.mxu0
        %546 = vdwg.mxu0
        %v548 = vsel %vm378, %v450, 0
        %v551 = vsel %vm418, %v451, 0
        %553 = vmatpush.bf16.msra.mxu0 0
        %554 = vmatpush.bf16.msra.mxu0 0
        %555 = vmatpush.bf16.msra.mxu0 0
        %556 = vmatpush.bf16.msra.mxu0 0
        %557 = vmatpush.bf16.msra.mxu0 0
        %558 = vmatpush.bf16.msra.mxu0 0
        %559 = vmatpush.bf16.msra.mxu0 0
        %560 = vmatpush.bf16.msra.mxu0 %v551
        %561 = vmatmul.bf16.gmra.mxu0 %v548
        %v562 = vpop.f32.mrf.mxu0
        %v563 = vadd.f32 %v544, %v562
        %v564 = vpop.f32.mrf.mxu0
        %565 = vdwg.mxu0
        %566 = vrot.lane.b32.xlu0 %v454, 112
        %v567 = vpop.permute.xlu0 %566
        %568 = vrot.lane.b32.xlu0 %v412, 112
        %v569 = vpop.permute.xlu0 %568
        %v571 = vsel %vm378, %v567, 0
        %v574 = vsel %vm378, %v569, 0
        %576 = vmatpush.bf16.xpose.msra.mxu0 0
        %577 = vmatpush.bf16.xpose.msra.mxu0 0
        %578 = vmatpush.bf16.xpose.msra.mxu0 0
        %579 = vmatpush.bf16.xpose.msra.mxu0 0
        %580 = vmatpush.bf16.xpose.msra.mxu0 0
        %581 = vmatpush.bf16.xpose.msra.mxu0 0
        %582 = vmatpush.bf16.xpose.msra.mxu0 0
        %583 = vmatpush.bf16.xpose.msra.mxu0 %v574
        %584 = vmatmul.bf16.gmra.mxu0 %v571
        %v585 = vpop.f32.mrf.mxu0
        %v586 = vadd.f32 0.0, %v585
        %v587 = vpop.f32.mrf.mxu0
        %588 = vdwg.mxu0
        %v589 = vmul.f32 %v586, 0.35355338
        %v590 = vsel %vm377, %v589, -1e+30
        %v591 = vsel %vm378, %v590, -inf
        %592 = vmax.xlane.f32.xlu0 %v591
        %v593 = vpop.xlane.xlu0 %592
        %v594 = vsub.f32 %v590, %v593
        %v595 = vmul.f32 %v594, 1.442695
        %v596 = vpow.pop %v595
        %v597 = vsel %vm378, %v596, 0.0
        %598 = vadd.xlane.f32.xlu0 %v597
        %v599 = vpop.xlane.xlu0 %598
        %v600 = vpack.c.bf16 %v596, %v596
        %601 = vrot.lane.b32.xlu0 %v412, 80
        %v602 = vpop.permute.xlu0 %601
        %v604 = vsel %vm378, %v600, 0
        %v607 = vsel %vm418, %v602, 0
        %609 = vmatpush.bf16.msra.mxu0 0
        %610 = vmatpush.bf16.msra.mxu0 0
        %611 = vmatpush.bf16.msra.mxu0 0
        %612 = vmatpush.bf16.msra.mxu0 0
        %613 = vmatpush.bf16.msra.mxu0 0
        %614 = vmatpush.bf16.msra.mxu0 0
        %615 = vmatpush.bf16.msra.mxu0 0
        %616 = vmatpush.bf16.msra.mxu0 %v607
        %617 = vmatmul.bf16.gmra.mxu0 %v604
        %v618 = vpop.f32.mrf.mxu0
        %v619 = vadd.f32 0.0, %v618
        %v620 = vpop.f32.mrf.mxu0
        %621 = vdwg.mxu0
        %v622 = vrcp.pop %v599
        %v623 = vmul.f32 %v599, %v622
        %v624 = vsub.f32 1.0, %v623
        %v625 = vmul.f32 %v622, %v624
        %v626 = vadd.f32 %v622, %v625
        %vm627 = vweird.f32 %v599
        %vm628 = vweird.f32 %v622
        %vm629 = vmor %vm627, %vm628
        %v630 = vsel %vm629, %v622, %v626
        %v631 = vand.u32 2147483647, %v599
        %vm632 = vcmp.eq.f32.partialorder %v631, 8.507059e+37
        %v633 = vand.u32 %v599, 2147483648
        %v634 = vor.u32 1.1754944e-38, %v633
        %v635 = vsel %vm632, %v634, %v630
        %v636 = vmul.f32 %v619, %v635
        %v637 = vpack.c.bf16 %v636, %v636
        %v638 = vld [vmem:[#allocation2 + $0x8] sm:$0xf]
        %v640 = vsel %vm378, %v637, 0
        %v643 = vsel %vm418, %v638, 0
        %645 = vmatpush.bf16.msra.mxu0 0
        %646 = vmatpush.bf16.msra.mxu0 0
        %647 = vmatpush.bf16.msra.mxu0 0
        %648 = vmatpush.bf16.msra.mxu0 0
        %649 = vmatpush.bf16.msra.mxu0 0
        %650 = vmatpush.bf16.msra.mxu0 0
        %651 = vmatpush.bf16.msra.mxu0 0
        %652 = vmatpush.bf16.msra.mxu0 %v643
        %653 = vmatmul.bf16.gmra.mxu0 %v640
        %v654 = vpop.f32.mrf.mxu0
        %v655 = vadd.f32 0.0, %v654
        %v656 = vpop.f32.mrf.mxu0
        %657 = vdwg.mxu0
        %v658 = vadd.f32 %v563, %v655
        %659 = vrot.lane.b32.xlu0 %v454, 104
        %v660 = vpop.permute.xlu0 %659
        %661 = vrot.lane.b32.xlu0 %v412, 104
        %v662 = vpop.permute.xlu0 %661
        %v664 = vsel %vm378, %v660, 0
        %v667 = vsel %vm378, %v662, 0
        %669 = vmatpush.bf16.xpose.msra.mxu0 0
        %670 = vmatpush.bf16.xpose.msra.mxu0 0
        %671 = vmatpush.bf16.xpose.msra.mxu0 0
        %672 = vmatpush.bf16.xpose.msra.mxu0 0
        %673 = vmatpush.bf16.xpose.msra.mxu0 0
        %674 = vmatpush.bf16.xpose.msra.mxu0 0
        %675 = vmatpush.bf16.xpose.msra.mxu0 0
        %676 = vmatpush.bf16.xpose.msra.mxu0 %v667
        %677 = vmatmul.bf16.gmra.mxu0 %v664
        %v678 = vpop.f32.mrf.mxu0
        %v679 = vadd.f32 0.0, %v678
        %v680 = vpop.f32.mrf.mxu0
        %681 = vdwg.mxu0
        %v682 = vmul.f32 %v679, 0.35355338
        %v683 = vsel %vm377, %v682, -1e+30
        %v684 = vsel %vm378, %v683, -inf
        %685 = vmax.xlane.f32.xlu0 %v684
        %v686 = vpop.xlane.xlu0 %685
        %v687 = vsub.f32 %v683, %v686
        %v688 = vmul.f32 %v687, 1.442695
        %v689 = vpow.pop %v688
        %v690 = vsel %vm378, %v689, 0.0
        %691 = vadd.xlane.f32.xlu0 %v690
        %v692 = vpop.xlane.xlu0 %691
        %v693 = vpack.c.bf16 %v689, %v689
        %694 = vrot.lane.b32.xlu0 %v412, 72
        %v695 = vpop.permute.xlu0 %694
        %v697 = vsel %vm378, %v693, 0
        %v700 = vsel %vm418, %v695, 0
        %702 = vmatpush.bf16.msra.mxu0 0
        %703 = vmatpush.bf16.msra.mxu0 0
        %704 = vmatpush.bf16.msra.mxu0 0
        %705 = vmatpush.bf16.msra.mxu0 0
        %706 = vmatpush.bf16.msra.mxu0 0
        %707 = vmatpush.bf16.msra.mxu0 0
        %708 = vmatpush.bf16.msra.mxu0 0
        %709 = vmatpush.bf16.msra.mxu0 %v700
        %710 = vmatmul.bf16.gmra.mxu0 %v697
        %v711 = vpop.f32.mrf.mxu0
        %v712 = vadd.f32 0.0, %v711
        %v713 = vpop.f32.mrf.mxu0
        %714 = vdwg.mxu0
        %v715 = vrcp.pop %v692
        %v716 = vmul.f32 %v692, %v715
        %v717 = vsub.f32 1.0, %v716
        %v718 = vmul.f32 %v715, %v717
        %v719 = vadd.f32 %v715, %v718
        %vm720 = vweird.f32 %v692
        %vm721 = vweird.f32 %v715
        %vm722 = vmor %vm720, %vm721
        %v723 = vsel %vm722, %v715, %v719
        %v724 = vand.u32 2147483647, %v692
        %vm725 = vcmp.eq.f32.partialorder %v724, 8.507059e+37
        %v726 = vand.u32 %v692, 2147483648
        %v727 = vor.u32 1.1754944e-38, %v726
        %v728 = vsel %vm725, %v727, %v723
        %v729 = vmul.f32 %v712, %v728
        %v730 = vpack.c.bf16 %v729, %v729
        %v731 = vld [vmem:[#allocation2 + $0xc] sm:$0xf]
        %v733 = vsel %vm378, %v730, 0
        %v736 = vsel %vm418, %v731, 0
        %738 = vmatpush.bf16.msra.mxu0 0
        %739 = vmatpush.bf16.msra.mxu0 0
        %740 = vmatpush.bf16.msra.mxu0 0
        %741 = vmatpush.bf16.msra.mxu0 0
        %742 = vmatpush.bf16.msra.mxu0 0
        %743 = vmatpush.bf16.msra.mxu0 0
        %744 = vmatpush.bf16.msra.mxu0 0
        %745 = vmatpush.bf16.msra.mxu0 %v736
        %746 = vmatmul.bf16.gmra.mxu0 %v733
        %v747 = vpop.f32.mrf.mxu0
        %v748 = vadd.f32 0.0, %v747
        %v749 = vpop.f32.mrf.mxu0
        %750 = vdwg.mxu0
        %v751 = vadd.f32 %v658, %v748
        %v752 = vld [vmem:[%s359] sm:$0xff]
        %v753 = vadd.f32 %v752, %v751
        %v754 = vld [vmem:[%s4] sm:$0x1]
        %v756 = vperm.slane %v754, 0
        %v758 = vadd.f32 %v753, %v756
        %vm759 = vcmask 261120
        %v760 = vsel %vm759, %v758, 0.0
        %761 = vadd.xlane.f32.xlu0 %v760
        %v762 = vpop.xlane.xlu0 %761
        %v763 = vrcp.pop 32.0
        %v764 = vmul.f32 32.0, %v763
        %v765 = vsub.f32 1.0, %v764
        %v766 = vmul.f32 %v763, %v765
        %v767 = vadd.f32 %v763, %v766
        %vm768 = vweird.f32 %v763
        %v769 = vsel %vm768, %v763, %v767
        %v770 = vmul.f32 %v762, %v769
        %v771 = vsub.f32 %v758, %v770
        %v772 = vmul.f32 %v771, %v771
        %v773 = vsel %vm759, %v772, 0.0
        %774 = vadd.xlane.f32.xlu0 %v773
        %v775 = vpop.xlane.xlu0 %774
        %v776 = vmul.f32 %v775, %v769
        %v777 = vadd.f32 %v776, 1e-05
        %v778 = vrsqrt.pop %v777
        %v779 = vmul.f32 %v778, %v777
        %v780 = vmul.f32 %v779, %v778
        %v781 = vmul.f32 0.5, %v780
        %v782 = vsub.f32 1.5, %v781
        %v783 = vmul.f32 %v778, %v782
        %vm784 = vweird.f32 %v777
        %vm785 = vweird.f32 %v778
        %vm786 = vmor %vm784, %vm785
        %v787 = vsel %vm786, %v778, %v783
        %v788 = vmul.f32 %v771, %v787
        %v789 = vld [vmem:[%s5] sm:$0x1]
        %v791 = vperm.slane %v789, 0
        %v793 = vmul.f32 %v788, %v791
        %v794 = vld [vmem:[%s6] sm:$0x1]
        %v796 = vperm.slane %v794, 0
        %v798 = vadd.f32 %v793, %v796
        %799 = vst.msk [vmem:[%s366] sm:$0xff] %vm759, %v798
        %p800 = scmp.lt.s32.totalorder %s23, 1
        %s801 = scalar_select %p800, %s23, 1
        %p802 = scmp.lt.s32.totalorder %s24, 0
        %s803 = scalar_select %p802, %s24, 0
        %s804 = sadd.s32 %s803, %s801
        %s805 = smul.addr %s804, 8
        %s806 = scalar_lea.vmem %s7, %s805
        // Predicated region
        $region53: #{transformer_decoder.13} parent=47 // pred_check
          %p807 = pneg %p217
        $region54: #{transformer_decoder.13} parent=47 // pred_check_branch
          %809 = sbr.rel (%p807) target = $region56
        $region55: #{transformer_decoder.13} parent=47 // pred_region
          _
        $region56: #{transformer_decoder.13} parent=47 // pred_fallthru
          _
      $region48: #{transformer_decoder.13} parent=5 // pred_fallthru
        _
      %p810 = scmp.le.s32.totalorder 2, %s14
      // Predicated region
      $region57: #{transformer_decoder.13} parent=5 // pred_check
        %p811 = pneg %p810
      $region58: #{transformer_decoder.13} parent=5 // pred_check_branch
        %813 = sbr.rel (%p811) target = $region60
      $region59: #{transformer_decoder.13} parent=5 // pred_region
        %s814 = ssub.s32 %s14, 2
        // Predicated region
        $region61: #{transformer_decoder.13} parent=59 // pred_check
          %p815 = pneg %p223
        $region62: #{transformer_decoder.13} parent=59 // pred_check_branch
          %817 = sbr.rel (%p815) target = $region64
        $region63: #{transformer_decoder.13} parent=59 // pred_region
          %p818 = scmp.lt.s32.totalorder %s25, 1
          %s819 = scalar_select %p818, %s25, 1
          %p820 = scmp.lt.s32.totalorder %s26, 0
          %s821 = scalar_select %p820, %s26, 0
          %s822 = sadd.s32 %s821, %s819
          %s823 = smul.addr %s822, 8
          %s824 = scalar_lea.vmem %s7, %s823
        $region64: #{transformer_decoder.13} parent=59 // pred_fallthru
          _
      $region60: #{transformer_decoder.13} parent=5 // pred_fallthru
        _
    $region6: #{transformer_decoder.13} parent=1 // loop_footer
      %s18 = sadd.s32 1, %s14
    $region7: #{transformer_decoder.13} parent=1 // loop_footer_branch
      %13 = sbr.rel target = $region3
    $region8: #{transformer_decoder.13} parent=1 // loop_exit
      _
    %825 = vsyncpa [#allocation3], 1
    %s826 = scalar_lea.sflag [#allocation3], 1
    %827 = vsyncpa %s826, 1

// kernel: transformer_decoder.17
$region0: #{transformer_decoder.17}
  #allocation0 [shape = 'u32[]', space=smem, size = 0x4, offset = 0x4, fixed_abs, tag = 'smem constant byte address 0x4 - core index']
  #allocation1 [shape = 'u32[72,128]{1,0:T(1,128)}', space=vmem, size = 0x9000, scoped, tag = 'internal scratch']
  %s0 = inlined_call_operand.vmem [shape: f32[16,32], index: 0, kind: input, shape index: {}]
  %s1 = inlined_call_operand.vmem [shape: bf16[32,64], index: 1, kind: input, shape index: {}]
  %s2 = inlined_call_operand.hbm [shape: f32[1,64], index: 2, kind: input, shape index: {}]
  %s3 = inlined_call_operand.vmem [shape: bf16[64,32], index: 3, kind: input, shape index: {}]
  %s4 = inlined_call_operand.hbm [shape: f32[1,32], index: 4, kind: input, shape index: {}]
  %s5 = inlined_call_operand.hbm [shape: f32[1,32], index: 5, kind: input, shape index: {}]
  %s6 = inlined_call_operand.hbm [shape: f32[1,32], index: 6, kind: input, shape index: {}]
  %s7 = inlined_call_operand.vmem [shape: f32[16,32], index: 7, kind: output, shape index: {}]
  %s8 = sld [smem:[#allocation0]]
  $region54: #{transformer_decoder.17} parent=0
    _
  %s10 = ssub.s32 1, %s8
  %s11 = scalar_select 0, %s10, %s8
  $region1: #{transformer_decoder.17} parent=0
    #allocation2 [shape = 'u8[512]{0}', space=vmem, size = 0x400, scoped, tag = 'input window, operand 2, single buffered']
    #allocation3 [shape = 's32[1]{0}', space=sflag, size = 0x4, scoped, tag = 'scoped memory for transformer_decoder.17']
    #allocation4 [shape = 'u8[512]{0}', space=vmem, size = 0x400, scoped, tag = 'input window, operand 4, single buffered']
    #allocation5 [shape = 's32[1]{0}', space=sflag, size = 0x4, scoped, tag = 'scoped memory for transformer_decoder.17']
    #allocation6 [shape = 'u8[512]{0}', space=vmem, size = 0x400, scoped, tag = 'input window, operand 5, single buffered']
    #allocation7 [shape = 'u8[512]{0}', space=vmem, size = 0x400, scoped, tag = 'input window, operand 6, single buffered']
    #allocation8 [shape = 's32[1]{0}', space=sflag, size = 0x4, scoped, tag = 'scoped memory for transformer_decoder.17']
    %12 = vsyncpa [#allocation3], 0
    %13 = vsyncpa [#allocation5], 0
    %14 = vsyncpa [#allocation8], 0
    // Predicated region
    $region2: #{transformer_decoder.17} parent=1 // pred_check
      _
    $region3: #{transformer_decoder.17} parent=1 // pred_check_branch
      %16 = sbr.rel (0) target = $region5
    $region4: #{transformer_decoder.17} parent=1 // pred_region
      _
    $region5: #{transformer_decoder.17} parent=1 // pred_fallthru
      _
    // Predicated region
    $region6: #{transformer_decoder.17} parent=1 // pred_check
      _
    $region7: #{transformer_decoder.17} parent=1 // pred_check_branch
      %18 = sbr.rel (0) target = $region9
    $region8: #{transformer_decoder.17} parent=1 // pred_region
      _
    $region9: #{transformer_decoder.17} parent=1 // pred_fallthru
      _
    // Predicated region
    $region10: #{transformer_decoder.17} parent=1 // pred_check
      _
    $region11: #{transformer_decoder.17} parent=1 // pred_check_branch
      %20 = sbr.rel (0) target = $region13
    $region12: #{transformer_decoder.17} parent=1 // pred_region
      %22 = vsyncadd [#allocation3], 0
      %s24 = sshll.u32 %s2, 4
      %s25 = int_to_ptr.hbm [resolvable:$true] %s24
      %s26 = sshll.u32 [#allocation2], 4
      %s27 = int_to_ptr.vmem [resolvable:$true] %s26
      %29 = dma.hbm_to_vmem [thread:$0]  %s25, 16, %s27, [#allocation3]
    $region13: #{transformer_decoder.17} parent=1 // pred_fallthru
      _
    // Predicated region
    $region14: #{transformer_decoder.17} parent=1 // pred_check
      _
    $region15: #{transformer_decoder.17} parent=1 // pred_check_branch
      %31 = sbr.rel (0) target = $region17
    $region16: #{transformer_decoder.17} parent=1 // pred_region
      _
    $region17: #{transformer_decoder.17} parent=1 // pred_fallthru
      _
    // Predicated region
    $region18: #{transformer_decoder.17} parent=1 // pred_check
      _
    $region19: #{transformer_decoder.17} parent=1 // pred_check_branch
      %33 = sbr.rel (0) target = $region21
    $region20: #{transformer_decoder.17} parent=1 // pred_region
      %35 = vsyncadd [#allocation5], 0
      %s37 = sshll.u32 %s4, 4
      %s38 = int_to_ptr.hbm [resolvable:$true] %s37
      %s39 = sshll.u32 [#allocation4], 4
      %s40 = int_to_ptr.vmem [resolvable:$true] %s39
      %42 = dma.hbm_to_vmem [thread:$0]  %s38, 16, %s40, [#allocation5]
    $region21: #{transformer_decoder.17} parent=1 // pred_fallthru
      _
    // Predicated region
    $region22: #{transformer_decoder.17} parent=1 // pred_check
      _
    $region23: #{transformer_decoder.17} parent=1 // pred_check_branch
      %44 = sbr.rel (0) target = $region25
    $region24: #{transformer_decoder.17} parent=1 // pred_region
      %46 = vsyncadd [#allocation5], 0
      %s48 = sshll.u32 %s5, 4
      %s49 = int_to_ptr.hbm [resolvable:$true] %s48
      %s50 = sshll.u32 [#allocation6], 4
      %s51 = int_to_ptr.vmem [resolvable:$true] %s50
      %53 = dma.hbm_to_vmem [thread:$0]  %s49, 16, %s51, [#allocation5]
    $region25: #{transformer_decoder.17} parent=1 // pred_fallthru
      _
    // Predicated region
    $region26: #{transformer_decoder.17} parent=1 // pred_check
      _
    $region27: #{transformer_decoder.17} parent=1 // pred_check_branch
      %55 = sbr.rel (0) target = $region29
    $region28: #{transformer_decoder.17} parent=1 // pred_region
      %57 = vsyncadd [#allocation8], 0
      %s59 = sshll.u32 %s6, 4
      %s60 = int_to_ptr.hbm [resolvable:$true] %s59
      %s61 = sshll.u32 [#allocation7], 4
      %s62 = int_to_ptr.vmem [resolvable:$true] %s61
      %64 = dma.hbm_to_vmem [thread:$0]  %s60, 16, %s62, [#allocation8]
    $region29: #{transformer_decoder.17} parent=1 // pred_fallthru
      _
    // Predicated region
    $region30: #{transformer_decoder.17} parent=1 // pred_check
      _
    $region31: #{transformer_decoder.17} parent=1 // pred_check_branch
      %66 = sbr.rel (0) target = $region33
    $region32: #{transformer_decoder.17} parent=1 // pred_region
      %68 = dma.done [#allocation3], 16
    $region33: #{transformer_decoder.17} parent=1 // pred_fallthru
      _
    // Predicated region
    $region34: #{transformer_decoder.17} parent=1 // pred_check
      _
    $region35: #{transformer_decoder.17} parent=1 // pred_check_branch
      %70 = sbr.rel (0) target = $region37
    $region36: #{transformer_decoder.17} parent=1 // pred_region
      %72 = dma.done [#allocation5], 16
    $region37: #{transformer_decoder.17} parent=1 // pred_fallthru
      _
    // Predicated region
    $region38: #{transformer_decoder.17} parent=1 // pred_check
      _
    $region39: #{transformer_decoder.17} parent=1 // pred_check_branch
      %74 = sbr.rel (0) target = $region41
    $region40: #{transformer_decoder.17} parent=1 // pred_region
      %76 = dma.done [#allocation5], 16
    $region41: #{transformer_decoder.17} parent=1 // pred_fallthru
      _
    // Predicated region
    $region42: #{transformer_decoder.17} parent=1 // pred_check
      _
    $region43: #{transformer_decoder.17} parent=1 // pred_check_branch
      %78 = sbr.rel (0) target = $region45
    $region44: #{transformer_decoder.17} parent=1 // pred_region
      %80 = dma.done [#allocation8], 16
    $region45: #{transformer_decoder.17} parent=1 // pred_fallthru
      _
    %v82 = vld [vmem:[%s0] sm:$0xff]
    %v83 = vld [vmem:[%s0 + $0x8] sm:$0xff]
    %v84 = vpack.c.bf16 %v83, %v82
    %v85 = vld [vmem:[%s1] sm:$0xf]
    %v86 = vld [vmem:[%s1 + $0x4] sm:$0xf]
    %v87 = vld [vmem:[%s1 + $0x8] sm:$0xf]
    %v88 = vld [vmem:[%s1 + $0xc] sm:$0xf]
    %v89 = vld [vmem:[#allocation2] sm:$0x1]
    %v91 = vperm.slane %v89, 0
    %v97 = vunpack.c.l.b16 %v85
    %v98 = vunpack.c.l.b16 %v86
    %v99 = vunpack.c.l.b16 %v87
    %v100 = vunpack.c.l.b16 %v88
    %v101 = vpack.c.b16 %v98, %v97
    %v102 = vpack.c.b16 %v100, %v99
    %vm105 = vcmask 261120
    %v107 = vsel %vm105, %v84, 0
    %109 = vmatpush.bf16.msra.mxu0 0
    %110 = vmatpush.bf16.msra.mxu0 0
    %111 = vmatpush.bf16.msra.mxu0 0
    %112 = vmatpush.bf16.msra.mxu0 0
    %113 = vmatpush.bf16.msra.mxu0 0
    %114 = vmatpush.bf16.msra.mxu0 0
    %115 = vmatpush.bf16.msra.mxu0 %v102
    %116 = vmatpush.bf16.msra.mxu0 %v101
    %117 = vmatmul.bf16.gmra.mxu0 %v107
    %v118 = vpop.f32.mrf.mxu0
    %v119 = vadd.f32 %v91, %v118
    %v120 = vpop.f32.mrf.mxu0
    %v121 = vadd.f32 %v91, %v120
    %122 = vdwg.mxu0
    %v123 = vmax.f32 %v119, 0.0
    %v124 = vmax.f32 %v121, 0.0
    %v125 = vpack.c.bf16 %v124, %v123
    %v126 = vld [vmem:[%s3] sm:$0xf]
    %v127 = vld [vmem:[%s3 + $0x4] sm:$0xf]
    %v128 = vld [vmem:[%s3 + $0x8] sm:$0xf]
    %v129 = vld [vmem:[%s3 + $0xc] sm:$0xf]
    %v130 = vld [vmem:[%s3 + $0x10] sm:$0xf]
    %v131 = vld [vmem:[%s3 + $0x14] sm:$0xf]
    %v132 = vld [vmem:[%s3 + $0x18] sm:$0xf]
    %v133 = vld [vmem:[%s3 + $0x1c] sm:$0xf]
    %v134 = vld [vmem:[#allocation4] sm:$0x1]
    %v136 = vperm.slane %v134, 0
    %v146 = vunpack.c.l.b16 %v126
    %v147 = vunpack.c.l.b16 %v127
    %v148 = vunpack.c.l.b16 %v128
    %v149 = vunpack.c.l.b16 %v129
    %v150 = vunpack.c.l.b16 %v130
    %v151 = vunpack.c.l.b16 %v131
    %v152 = vunpack.c.l.b16 %v132
    %v153 = vunpack.c.l.b16 %v133
    %v154 = vpack.c.b16 %v147, %v146
    %v155 = vpack.c.b16 %v149, %v148
    %v156 = vpack.c.b16 %v151, %v150
    %v157 = vpack.c.b16 %v153, %v152
    %vm162 = vcmask 523264
    %v164 = vsel %vm162, %v125, 0
    %166 = vmatpush.bf16.msra.mxu0 0
    %167 = vmatpush.bf16.msra.mxu0 0
    %168 = vmatpush.bf16.msra.mxu0 0
    %169 = vmatpush.bf16.msra.mxu0 0
    %170 = vmatpush.bf16.msra.mxu0 %v157
    %171 = vmatpush.bf16.msra.mxu0 %v156
    %172 = vmatpush.bf16.msra.mxu0 %v155
    %173 = vmatpush.bf16.msra.mxu0 %v154
    %174 = vmatmul.bf16.gmra.mxu0 %v164
    %v175 = vpop.f32.mrf.mxu0
    %v176 = vadd.f32 %v136, %v175
    %v177 = vpop.f32.mrf.mxu0
    %v178 = vadd.f32 %v136, %v177
    %179 = vdwg.mxu0
    %v180 = vadd.f32 %v82, %v176
    %v181 = vadd.f32 %v83, %v178
    %v182 = vsel %vm105, %v180, 0.0
    %183 = vadd.xlane.f32.xlu0 %v182
    %v184 = vpop.xlane.xlu0 %183
    %v185 = vsel %vm105, %v181, 0.0
    %186 = vadd.xlane.f32.xlu0 %v185
    %v187 = vpop.xlane.xlu0 %186
    %v188 = vrcp.pop 32.0
    %v189 = vmul.f32 32.0, %v188
    %v190 = vsub.f32 1.0, %v189
    %v191 = vmul.f32 %v188, %v190
    %v192 = vadd.f32 %v188, %v191
    %vm193 = vweird.f32 %v188
    %v194 = vsel %vm193, %v188, %v192
    %v195 = vmul.f32 %v184, %v194
    %v196 = vmul.f32 %v187, %v194
    %v197 = vsub.f32 %v180, %v195
    %v198 = vsub.f32 %v181, %v196
    %v199 = vmul.f32 %v197, %v197
    %v200 = vmul.f32 %v198, %v198
    %v201 = vsel %vm105, %v199, 0.0
    %202 = vadd.xlane.f32.xlu0 %v201
    %v203 = vpop.xlane.xlu0 %202
    %v204 = vsel %vm105, %v200, 0.0
    %205 = vadd.xlane.f32.xlu0 %v204
    %v206 = vpop.xlane.xlu0 %205
    %v207 = vmul.f32 %v203, %v194
    %v208 = vmul.f32 %v206, %v194
    %v209 = vadd.f32 %v207, 1e-05
    %v210 = vadd.f32 %v208, 1e-05
    %v211 = vrsqrt.pop %v209
    %v212 = vmul.f32 %v211, %v209
    %v213 = vmul.f32 %v212, %v211
    %v214 = vmul.f32 0.5, %v213
    %v215 = vsub.f32 1.5, %v214
    %v216 = vmul.f32 %v211, %v215
    %vm217 = vweird.f32 %v209
    %vm218 = vweird.f32 %v211
    %vm219 = vmor %vm217, %vm218
    %v220 = vsel %vm219, %v211, %v216
    %v221 = vrsqrt.pop %v210
    %v222 = vmul.f32 %v221, %v210
    %v223 = vmul.f32 %v222, %v221
    %v224 = vmul.f32 0.5, %v223
    %v225 = vsub.f32 1.5, %v224
    %v226 = vmul.f32 %v221, %v225
    %vm227 = vweird.f32 %v210
    %vm228 = vweird.f32 %v221
    %vm229 = vmor %vm227, %vm228
    %v230 = vsel %vm229, %v221, %v226
    %v231 = vmul.f32 %v197, %v220
    %v232 = vmul.f32 %v198, %v230
    %v233 = vld [vmem:[#allocation6] sm:$0x1]
    %v235 = vperm.slane %v233, 0
    %v237 = vmul.f32 %v231, %v235
    %v238 = vmul.f32 %v232, %v235
    %v239 = vld [vmem:[#allocation7] sm:$0x1]
    %v241 = vperm.slane %v239, 0
    %v243 = vadd.f32 %v237, %v241
    %v244 = vadd.f32 %v238, %v241
    %245 = vst.msk [vmem:[%s7] sm:$0xff] %vm105, %v243
    %246 = vst.msk [vmem:[%s7 + $0x8] sm:$0xff] %vm105, %v244
    // Predicated region
    $region46: #{transformer_decoder.17} parent=1 // pred_check
      _
    $region47: #{transformer_decoder.17} parent=1 // pred_check_branch
      %248 = sbr.rel (0) target = $region49
    $region48: #{transformer_decoder.17} parent=1 // pred_region
      _
    $region49: #{transformer_decoder.17} parent=1 // pred_fallthru
      _
    // Predicated region
    $region50: #{transformer_decoder.17} parent=1 // pred_check
      _
    $region51: #{transformer_decoder.17} parent=1 // pred_check_branch
      %250 = sbr.rel (0) target = $region53
    $region52: #{transformer_decoder.17} parent=1 // pred_region
      _
    $region53: #{transformer_decoder.17} parent=1 // pred_fallthru
      _
    %251 = vsyncpa [#allocation3], 1
    %252 = vsyncpa [#allocation5], 1
    %253 = vsyncpa [#allocation8], 1

// kernel: transformer_decoder.18
$region0: #{transformer_decoder.18}
  #allocation0 [shape = 'u32[]', space=smem, size = 0x4, offset = 0x4, fixed_abs, tag = 'smem constant byte address 0x4 - core index']
  #allocation1 [shape = 'u32[72,128]{1,0:T(1,128)}', space=vmem, size = 0x9000, scoped, tag = 'internal scratch']
  %s0 = inlined_call_operand.vmem [shape: f32[16,32], index: 0, kind: input, shape index: {}]
  %s1 = inlined_call_operand.vmem [shape: bf16[32,96], index: 1, kind: input, shape index: {}]
  %s2 = inlined_call_operand.hbm [shape: f32[1,96], index: 2, kind: input, shape index: {}]
  %s3 = inlined_call_operand.vmem [shape: bf16[16,32], index: 3, kind: output, shape index: {0}]
  %s4 = inlined_call_operand.vmem [shape: bf16[16,64], index: 4, kind: output, shape index: {1}]
  %5 = xla_tuple %s3, %s4
  %s6 = sld [smem:[#allocation0]]
  $region34: #{transformer_decoder.18} parent=0
    _
  %s8 = ssub.s32 1, %s6
  %s9 = scalar_select 0, %s8, %s6
  $region1: #{transformer_decoder.18} parent=0
    #allocation2 [shape = 'u8[512]{0}', space=vmem, size = 0x400, scoped, tag = 'input window, operand 2, single buffered']
    #allocation3 [shape = 's32[1]{0}', space=sflag, size = 0x4, scoped, tag = 'scoped memory for transformer_decoder.18']
    %10 = vsyncpa [#allocation3], 0
    // Predicated region
    $region2: #{transformer_decoder.18} parent=1 // pred_check
      _
    $region3: #{transformer_decoder.18} parent=1 // pred_check_branch
      %12 = sbr.rel (0) target = $region5
    $region4: #{transformer_decoder.18} parent=1 // pred_region
      _
    $region5: #{transformer_decoder.18} parent=1 // pred_fallthru
      _
    // Predicated region
    $region6: #{transformer_decoder.18} parent=1 // pred_check
      _
    $region7: #{transformer_decoder.18} parent=1 // pred_check_branch
      %14 = sbr.rel (0) target = $region9
    $region8: #{transformer_decoder.18} parent=1 // pred_region
      _
    $region9: #{transformer_decoder.18} parent=1 // pred_fallthru
      _
    // Predicated region
    $region10: #{transformer_decoder.18} parent=1 // pred_check
      _
    $region11: #{transformer_decoder.18} parent=1 // pred_check_branch
      %16 = sbr.rel (0) target = $region13
    $region12: #{transformer_decoder.18} parent=1 // pred_region
      %18 = vsyncadd [#allocation3], 0
      %s20 = sshll.u32 %s2, 4
      %s21 = int_to_ptr.hbm [resolvable:$true] %s20
      %s22 = sshll.u32 [#allocation2], 4
      %s23 = int_to_ptr.vmem [resolvable:$true] %s22
      %25 = dma.hbm_to_vmem [thread:$0]  %s21, 16, %s23, [#allocation3]
    $region13: #{transformer_decoder.18} parent=1 // pred_fallthru
      _
    // Predicated region
    $region14: #{transformer_decoder.18} parent=1 // pred_check
      _
    $region15: #{transformer_decoder.18} parent=1 // pred_check_branch
      %27 = sbr.rel (0) target = $region17
    $region16: #{transformer_decoder.18} parent=1 // pred_region
      %29 = dma.done [#allocation3], 16
    $region17: #{transformer_decoder.18} parent=1 // pred_fallthru
      _
    %v31 = vld [vmem:[%s0] sm:$0xff]
    %v32 = vld [vmem:[%s0 + $0x8] sm:$0xff]
    %v33 = vpack.c.bf16 %v32, %v31
    %v34 = vld [vmem:[%s1] sm:$0xf]
    %v35 = vld [vmem:[%s1 + $0x4] sm:$0xf]
    %v36 = vld [vmem:[%s1 + $0x8] sm:$0xf]
    %v37 = vld [vmem:[%s1 + $0xc] sm:$0xf]
    %v38 = vld [vmem:[#allocation2] sm:$0x1]
    %v40 = vperm.slane %v38, 0
    %v46 = vunpack.c.l.b16 %v34
    %v47 = vunpack.c.l.b16 %v35
    %v48 = vunpack.c.l.b16 %v36
    %v49 = vunpack.c.l.b16 %v37
    %v50 = vpack.c.b16 %v47, %v46
    %v51 = vpack.c.b16 %v49, %v48
    %vm54 = vcmask 261120
    %v56 = vsel %vm54, %v33, 0
    %58 = vmatpush.bf16.msra.mxu0 0
    %59 = vmatpush.bf16.msra.mxu0 0
    %60 = vmatpush.bf16.msra.mxu0 0
    %61 = vmatpush.bf16.msra.mxu0 0
    %62 = vmatpush.bf16.msra.mxu0 0
    %63 = vmatpush.bf16.msra.mxu0 0
    %64 = vmatpush.bf16.msra.mxu0 %v51
    %65 = vmatpush.bf16.msra.mxu0 %v50
    %66 = vmatmul.bf16.gmra.mxu0 %v56
    %v67 = vpop.f32.mrf.mxu0
    %v68 = vadd.f32 %v40, %v67
    %v69 = vpop.f32.mrf.mxu0
    %v70 = vadd.f32 %v40, %v69
    %71 = vdwg.mxu0
    %v72 = vpack.c.bf16 %v68, %v68
    %v73 = vpack.c.bf16 %v70, %v70
    %vm74 = vcmask 257024
    %75 = vst.msk [vmem:[%s3] sm:$0xf] %vm74, %v72
    %76 = vst.msk [vmem:[%s3 + $0x4] sm:$0xf] %vm74, %v73
    %79 = vrot.lane.b32.xlu0 %v72, 96
    %v80 = vpop.permute.xlu0 %79
    %81 = vrot.lane.b32.xlu0 %v73, 96
    %v82 = vpop.permute.xlu0 %81
    %vm85 = vcmask 519168
    %86 = vst.msk [vmem:[%s4] sm:$0xf] %vm85, %v80
    %87 = vst.msk [vmem:[%s4 + $0x4] sm:$0xf] %vm85, %v82
    // Predicated region
    $region18: #{transformer_decoder.18} parent=1 // pred_check
      _
    $region19: #{transformer_decoder.18} parent=1 // pred_check_branch
      %89 = sbr.rel (0) target = $region21
    $region20: #{transformer_decoder.18} parent=1 // pred_region
      _
    $region21: #{transformer_decoder.18} parent=1 // pred_fallthru
      _
    // Predicated region
    $region22: #{transformer_decoder.18} parent=1 // pred_check
      _
    $region23: #{transformer_decoder.18} parent=1 // pred_check_branch
      %91 = sbr.rel (0) target = $region25
    $region24: #{transformer_decoder.18} parent=1 // pred_region
      _
    $region25: #{transformer_decoder.18} parent=1 // pred_fallthru
      _
    // Predicated region
    $region26: #{transformer_decoder.18} parent=1 // pred_check
      _
    $region27: #{transformer_decoder.18} parent=1 // pred_check_branch
      %93 = sbr.rel (0) target = $region29
    $region28: #{transformer_decoder.18} parent=1 // pred_region
      _
    $region29: #{transformer_decoder.18} parent=1 // pred_fallthru
      _
    // Predicated region
    $region30: #{transformer_decoder.18} parent=1 // pred_check
      _
    $region31: #{transformer_decoder.18} parent=1 // pred_check_branch
      %95 = sbr.rel (0) target = $region33
    $region32: #{transformer_decoder.18} parent=1 // pred_region
      _
    $region33: #{transformer_decoder.18} parent=1 // pred_fallthru
      _
    %96 = vsyncpa [#allocation3], 1

// kernel: transformer_decoder.16
$region0: #{transformer_decoder.16}
  #allocation0 [shape = 'u32[]', space=smem, size = 0x4, offset = 0x4, fixed_abs, tag = 'smem constant byte address 0x4 - core index']
  #allocation1 [shape = 'u32[72,128]{1,0:T(1,128)}', space=vmem, size = 0x9000, scoped, tag = 'internal scratch']
  %s0 = inlined_call_operand.vmem [shape: bf16[2,8,32], index: 0, kind: input, shape index: {}]
  %s1 = inlined_call_operand.vmem [shape: bf16[2,8,64], index: 1, kind: input, shape index: {}]
  %s2 = inlined_call_operand.vmem [shape: f32[2,8,32], index: 2, kind: input, shape index: {}]
  %s3 = inlined_call_operand.hbm [shape: bf16[32,32], index: 3, kind: input, shape index: {}]
  %s4 = inlined_call_operand.hbm [shape: f32[1,32], index: 4, kind: input, shape index: {}]
  %s5 = inlined_call_operand.hbm [shape: f32[1,32], index: 5, kind: input, shape index: {}]
  %s6 = inlined_call_operand.hbm [shape: f32[1,32], index: 6, kind: input, shape index: {}]
  %s7 = inlined_call_operand.vmem [shape: f32[2,8,32], index: 7, kind: output, shape index: {}]
  %s8 = sld [smem:[#allocation0]]
  $region77: #{transformer_decoder.16} parent=0
    _
  %s10 = ssub.s32 1, %s8
  %s11 = scalar_select 0, %s10, %s8
  $region1: #{transformer_decoder.16} parent=0
    #allocation2 [shape = 'u8[8192]{0}', space=vmem, size = 0x2000, scoped, tag = 'input window, operand 3, single buffered']
    #allocation3 [shape = 's32[2]{0}', space=sflag, size = 0x8, scoped, tag = 'scoped memory for transformer_decoder.16']
    #allocation4 [shape = 'u8[512]{0}', space=vmem, size = 0x400, scoped, tag = 'input window, operand 4, single buffered']
    #allocation5 [shape = 's32[1]{0}', space=sflag, size = 0x4, scoped, tag = 'scoped memory for transformer_decoder.16']
    #allocation6 [shape = 'u8[512]{0}', space=vmem, size = 0x400, scoped, tag = 'input window, operand 5, single buffered']
    #allocation7 [shape = 'u8[512]{0}', space=vmem, size = 0x400, scoped, tag = 'input window, operand 6, single buffered']
    #allocation8 [shape = 's32[1]{0}', space=sflag, size = 0x4, scoped, tag = 'scoped memory for transformer_decoder.16']
    %12 = vsyncpa [#allocation3], 0
    %13 = vsyncpa [#allocation5], 0
    %14 = vsyncpa [#allocation8], 0
    loop: start=0, step=1, limit=4
    $region2: #{transformer_decoder.16} parent=1 // loop_pre_header
      _
    $region3: #{transformer_decoder.16} parent=1 // loop_header
      %s16 = sphi 0, %s20
      %p17 = scmp.ge.s32.totalorder %s16, 4
      %s23 = sphi 0, %s35
      %s24 = sphi 0, %s31
      %s25 = sphi 0, %s23
      %s26 = sphi 0, %s24
      %s27 = sphi 0, %s25
      %s28 = sphi 0, %s26
      %s40 = sphi 0, %s42
      %s43 = sphi 0, %s40
      %s44 = sphi 0, %s43
      %s60 = sphi 0, %s44
      %s66 = sphi 0, %s68
      %s69 = sphi 0, %s66
      %s70 = sphi 0, %s69
      %s86 = sphi 0, %s70
      %s94 = sphi 0, %s96
      %s97 = sphi 0, %s94
      %s98 = sphi 0, %s97
      %s114 = sphi 0, %s98
      %s118 = sphi 0, %s118
      %s120 = sphi 0, %s118
      %s121 = sphi 0, %s120
      %s135 = sphi 0, %s121
      %s139 = sphi 0, %s139
      %s141 = sphi 0, %s139
      %s142 = sphi 0, %s141
      %s156 = sphi 0, %s142
      %s160 = sphi 0, %s160
      %s162 = sphi 0, %s160
      %s163 = sphi 0, %s162
      %s177 = sphi 0, %s163
      %s181 = sphi 0, %s181
      %s183 = sphi 0, %s181
      %s184 = sphi 0, %s183
      %s198 = sphi 0, %s184
      %s206 = sphi 0, %s208
      %s209 = sphi 0, %s206
      %s210 = sphi 0, %s209
      %s226 = sphi 0, %s210
    $region4: #{transformer_decoder.16} parent=1 // loop_header_branch
      %19 = sbr.rel (%p17) target = $region8
    $region5: #{transformer_decoder.16} parent=1 // loop_body
      %s21 = ssub.s32 %s16, 1
      %s22 = ssub.s32 %s16, 2
      %s29 = sadd.s32 1, %s24
      %p30 = scmp.ge.s32.totalorder %s29, 1
      %s31 = scalar_select %p30, 0, %s29
      %s32 = sadd.s32 1, %s23
      %s33 = scalar_select %p30, %s32, %s23
      %p34 = scmp.ge.s32.totalorder %s33, 2
      %s35 = scalar_select %p34, 0, %s33
      %s36 = ssub.s32 %s23, %s35
      %s37 = ssub.s32 %s24, %s31
      %s38 = sor.u32 %s36, %s37
      %p39 = scmp.eq.s32.totalorder %s38, 0
      %s41 = sadd.s32 %s40, 1
      %s42 = scalar_select %p39, %s40, %s41
      %p45 = pneg %p39
      %p46 = scmp.eq.s32.totalorder %s16, 1
      %p47 = por %p45, %p46
      %p48 = scmp.ne.s32.totalorder %s40, %s43
      %p49 = scmp.eq.s32.totalorder %s16, 0
      %p50 = por %p48, %p49
      %p51 = scmp.ne.s32.totalorder %s40, %s43
      %p52 = scmp.eq.s32.totalorder %s21, 1
      %p53 = por %p51, %p52
      %p54 = scmp.ne.s32.totalorder %s43, %s44
      %p55 = scmp.eq.s32.totalorder %s21, 0
      %p56 = por %p54, %p55
      %p57 = scmp.ne.s32.totalorder %s43, %s44
      %p58 = scmp.eq.s32.totalorder %s22, 1
      %p59 = por %p57, %p58
      %p61 = scmp.ne.s32.totalorder %s44, %s60
      %p62 = scmp.eq.s32.totalorder %s22, 0
      %p63 = por %p61, %p62
      %s64 = ssub.s32 %s23, %s35
      %p65 = scmp.eq.s32.totalorder %s64, 0
      %s67 = sadd.s32 %s66, 1
      %s68 = scalar_select %p65, %s66, %s67
      %p71 = pneg %p65
      %p72 = scmp.eq.s32.totalorder %s16, 1
      %p73 = por %p71, %p72
      %p74 = scmp.ne.s32.totalorder %s66, %s69
      %p75 = scmp.eq.s32.totalorder %s16, 0
      %p76 = por %p74, %p75
      %p77 = scmp.ne.s32.totalorder %s66, %s69
      %p78 = scmp.eq.s32.totalorder %s21, 1
      %p79 = por %p77, %p78
      %p80 = scmp.ne.s32.totalorder %s69, %s70
      %p81 = scmp.eq.s32.totalorder %s21, 0
      %p82 = por %p80, %p81
      %p83 = scmp.ne.s32.totalorder %s69, %s70
      %p84 = scmp.eq.s32.totalorder %s22, 1
      %p85 = por %p83, %p84
      %p87 = scmp.ne.s32.totalorder %s70, %s86
      %p88 = scmp.eq.s32.totalorder %s22, 0
      %p89 = por %p87, %p88
      %s90 = ssub.s32 %s23, %s35
      %s91 = ssub.s32 %s24, %s31
      %s92 = sor.u32 %s90, %s91
      %p93 = scmp.eq.s32.totalorder %s92, 0
      %s95 = sadd.s32 %s94, 1
      %s96 = scalar_select %p93, %s94, %s95
      %p99 = pneg %p93
      %p100 = scmp.eq.s32.totalorder %s16, 1
      %p101 = por %p99, %p100
      %p102 = scmp.ne.s32.totalorder %s94, %s97
      %p103 = scmp.eq.s32.totalorder %s16, 0
      %p104 = por %p102, %p103
      %p105 = scmp.ne.s32.totalorder %s94, %s97
      %p106 = scmp.eq.s32.totalorder %s21, 1
      %p107 = por %p105, %p106
      %p108 = scmp.ne.s32.totalorder %s97, %s98
      %p109 = scmp.eq.s32.totalorder %s21, 0
      %p110 = por %p108, %p109
      %p111 = scmp.ne.s32.totalorder %s97, %s98
      %p112 = scmp.eq.s32.totalorder %s22, 1
      %p113 = por %p111, %p112
      %p115 = scmp.ne.s32.totalorder %s98, %s114
      %p116 = scmp.eq.s32.totalorder %s22, 0
      %p117 = por %p115, %p116
      %s119 = sadd.s32 %s118, 1
      %p122 = scmp.eq.s32.totalorder %s16, 1
      %p123 = scmp.ne.s32.totalorder %s118, %s120
      %p124 = scmp.eq.s32.totalorder %s16, 0
      %p125 = por %p123, %p124
      %p126 = scmp.ne.s32.totalorder %s118, %s120
      %p127 = scmp.eq.s32.totalorder %s21, 1
      %p128 = por %p126, %p127
      %p129 = scmp.ne.s32.totalorder %s120, %s121
      %p130 = scmp.eq.s32.totalorder %s21, 0
      %p131 = por %p129, %p130
      %p132 = scmp.ne.s32.totalorder %s120, %s121
      %p133 = scmp.eq.s32.totalorder %s22, 1
      %p134 = por %p132, %p133
      %p136 = scmp.ne.s32.totalorder %s121, %s135
      %p137 = scmp.eq.s32.totalorder %s22, 0
      %p138 = por %p136, %p137
      %s140 = sadd.s32 %s139, 1
      %p143 = scmp.eq.s32.totalorder %s16, 1
      %p144 = scmp.ne.s32.totalorder %s139, %s141
      %p145 = scmp.eq.s32.totalorder %s16, 0
      %p146 = por %p144, %p145
      %p147 = scmp.ne.s32.totalorder %s139, %s141
      %p148 = scmp.eq.s32.totalorder %s21, 1
      %p149 = por %p147, %p148
      %p150 = scmp.ne.s32.totalorder %s141, %s142
      %p151 = scmp.eq.s32.totalorder %s21, 0
      %p152 = por %p150, %p151
      %p153 = scmp.ne.s32.totalorder %s141, %s142
      %p154 = scmp.eq.s32.totalorder %s22, 1
      %p155 = por %p153, %p154
      %p157 = scmp.ne.s32.totalorder %s142, %s156
      %p158 = scmp.eq.s32.totalorder %s22, 0
      %p159 = por %p157, %p158
      %s161 = sadd.s32 %s160, 1
      %p164 = scmp.eq.s32.totalorder %s16, 1
      %p165 = scmp.ne.s32.totalorder %s160, %s162
      %p166 = scmp.eq.s32.totalorder %s16, 0
      %p167 = por %p165, %p166
      %p168 = scmp.ne.s32.totalorder %s160, %s162
      %p169 = scmp.eq.s32.totalorder %s21, 1
      %p170 = por %p168, %p169
      %p171 = scmp.ne.s32.totalorder %s162, %s163
      %p172 = scmp.eq.s32.totalorder %s21, 0
      %p173 = por %p171, %p172
      %p174 = scmp.ne.s32.totalorder %s162, %s163
      %p175 = scmp.eq.s32.totalorder %s22, 1
      %p176 = por %p174, %p175
      %p178 = scmp.ne.s32.totalorder %s163, %s177
      %p179 = scmp.eq.s32.totalorder %s22, 0
      %p180 = por %p178, %p179
      %s182 = sadd.s32 %s181, 1
      %p185 = scmp.eq.s32.totalorder %s16, 1
      %p186 = scmp.ne.s32.totalorder %s181, %s183
      %p187 = scmp.eq.s32.totalorder %s16, 0
      %p188 = por %p186, %p187
      %p189 = scmp.ne.s32.totalorder %s181, %s183
      %p190 = scmp.eq.s32.totalorder %s21, 1
      %p191 = por %p189, %p190
      %p192 = scmp.ne.s32.totalorder %s183, %s184
      %p193 = scmp.eq.s32.totalorder %s21, 0
      %p194 = por %p192, %p193
      %p195 = scmp.ne.s32.totalorder %s183, %s184
      %p196 = scmp.eq.s32.totalorder %s22, 1
      %p197 = por %p195, %p196
      %p199 = scmp.ne.s32.totalorder %s184, %s198
      %p200 = scmp.eq.s32.totalorder %s22, 0
      %p201 = por %p199, %p200
      %s202 = ssub.s32 %s23, %s35
      %s203 = ssub.s32 %s24, %s31
      %s204 = sor.u32 %s202, %s203
      %p205 = scmp.eq.s32.totalorder %s204, 0
      %s207 = sadd.s32 %s206, 1
      %s208 = scalar_select %p205, %s206, %s207
      %p211 = pneg %p205
      %p212 = scmp.eq.s32.totalorder %s16, 1
      %p213 = por %p211, %p212
      %p214 = scmp.ne.s32.totalorder %s206, %s209
      %p215 = scmp.eq.s32.totalorder %s16, 0
      %p216 = por %p214, %p215
      %p217 = scmp.ne.s32.totalorder %s206, %s209
      %p218 = scmp.eq.s32.totalorder %s21, 1
      %p219 = por %p217, %p218
      %p220 = scmp.ne.s32.totalorder %s209, %s210
      %p221 = scmp.eq.s32.totalorder %s21, 0
      %p222 = por %p220, %p221
      %p223 = scmp.ne.s32.totalorder %s209, %s210
      %p224 = scmp.eq.s32.totalorder %s22, 1
      %p225 = por %p223, %p224
      %p227 = scmp.ne.s32.totalorder %s210, %s226
      %p228 = scmp.eq.s32.totalorder %s22, 0
      %p229 = por %p227, %p228
      %p230 = scmp.le.s32.totalorder 1, %s16
      %p231 = scmp.lt.s32.totalorder %s16, 3
      %p232 = pnand %p230, %p231
      %p233 = pneg %p232
      // Predicated region
      $region9: #{transformer_decoder.16} parent=5 // pred_check
        _
      $region10: #{transformer_decoder.16} parent=5 // pred_check_branch
        %235 = sbr.rel (%p232) target = $region12
      $region11: #{transformer_decoder.16} parent=5 // pred_region
        %s236 = ssub.s32 %s16, 1
        // Predicated region
        $region13: #{transformer_decoder.16} parent=11 // pred_check
          %p237 = pneg %p131
        $region14: #{transformer_decoder.16} parent=11 // pred_check_branch
          %239 = sbr.rel (%p237) target = $region16
        $region15: #{transformer_decoder.16} parent=11 // pred_region
          %241 = vsyncadd [#allocation3], 0
          %s242 = sshll.u32 %s3, 4
          %s243 = int_to_ptr.hbm [resolvable:$true] %s242
          %s244 = sshll.u32 [#allocation2], 4
          %s245 = int_to_ptr.vmem [resolvable:$true] %s244
          %250 = dma.hbm_to_vmem [thread:$0]  %s243, 256, %s245, [#allocation3], 64, 64, 4
        $region16: #{transformer_decoder.16} parent=11 // pred_fallthru
          _
        // Predicated region
        $region17: #{transformer_decoder.16} parent=11 // pred_check
          %p251 = pneg %p152
        $region18: #{transformer_decoder.16} parent=11 // pred_check_branch
          %253 = sbr.rel (%p251) target = $region20
        $region19: #{transformer_decoder.16} parent=11 // pred_region
          %255 = vsyncadd [#allocation5], 0
          %s257 = sshll.u32 %s4, 4
          %s258 = int_to_ptr.hbm [resolvable:$true] %s257
          %s259 = sshll.u32 [#allocation4], 4
          %s260 = int_to_ptr.vmem [resolvable:$true] %s259
          %262 = dma.hbm_to_vmem [thread:$0]  %s258, 16, %s260, [#allocation5]
        $region20: #{transformer_decoder.16} parent=11 // pred_fallthru
          _
        // Predicated region
        $region21: #{transformer_decoder.16} parent=11 // pred_check
          %p263 = pneg %p173
        $region22: #{transformer_decoder.16} parent=11 // pred_check_branch
          %265 = sbr.rel (%p263) target = $region24
        $region23: #{transformer_decoder.16} parent=11 // pred_region
          %267 = vsyncadd [#allocation5], 0
          %s269 = sshll.u32 %s5, 4
          %s270 = int_to_ptr.hbm [resolvable:$true] %s269
          %s271 = sshll.u32 [#allocation6], 4
          %s272 = int_to_ptr.vmem [resolvable:$true] %s271
          %274 = dma.hbm_to_vmem [thread:$0]  %s270, 16, %s272, [#allocation5]
        $region24: #{transformer_decoder.16} parent=11 // pred_fallthru
          _
        // Predicated region
        $region25: #{transformer_decoder.16} parent=11 // pred_check
          %p275 = pneg %p194
        $region26: #{transformer_decoder.16} parent=11 // pred_check_branch
          %277 = sbr.rel (%p275) target = $region28
        $region27: #{transformer_decoder.16} parent=11 // pred_region
          %279 = vsyncadd [#allocation8], 0
          %s281 = sshll.u32 %s6, 4
          %s282 = int_to_ptr.hbm [resolvable:$true] %s281
          %s283 = sshll.u32 [#allocation7], 4
          %s284 = int_to_ptr.vmem [resolvable:$true] %s283
          %286 = dma.hbm_to_vmem [thread:$0]  %s282, 16, %s284, [#allocation8]
        $region28: #{transformer_decoder.16} parent=11 // pred_fallthru
          _
      $region12: #{transformer_decoder.16} parent=5 // pred_fallthru
        _
      %p287 = scmp.lt.s32.totalorder %s16, 2
      // Predicated region
      $region29: #{transformer_decoder.16} parent=5 // pred_check
        %p288 = pneg %p287
      $region30: #{transformer_decoder.16} parent=5 // pred_check_branch
        %290 = sbr.rel (%p288) target = $region32
      $region31: #{transformer_decoder.16} parent=5 // pred_region
        // Predicated region
        $region33: #{transformer_decoder.16} parent=31 // pred_check
          %p291 = pneg %p50
        $region34: #{transformer_decoder.16} parent=31 // pred_check_branch
          %293 = sbr.rel (%p291) target = $region36
        $region35: #{transformer_decoder.16} parent=31 // pred_region
          %p294 = scmp.lt.s32.totalorder %s23, 1
          %s295 = scalar_select %p294, %s23, 1
          %p296 = scmp.lt.s32.totalorder %s24, 0
          %s297 = scalar_select %p296, %s24, 0
          %s298 = sadd.s32 %s297, %s295
          %s299 = smul.addr %s298, 4
          %s300 = scalar_lea.vmem %s0, %s299
        $region36: #{transformer_decoder.16} parent=31 // pred_fallthru
          _
        // Predicated region
        $region37: #{transformer_decoder.16} parent=31 // pred_check
          %p301 = pneg %p76
        $region38: #{transformer_decoder.16} parent=31 // pred_check_branch
          %303 = sbr.rel (%p301) target = $region40
        $region39: #{transformer_decoder.16} parent=31 // pred_region
          %p304 = scmp.lt.s32.totalorder %s23, 1
          %s305 = scalar_select %p304, %s23, 1
          %s306 = smul.addr %s305, 4
          %s307 = scalar_lea.vmem %s1, %s306
        $region40: #{transformer_decoder.16} parent=31 // pred_fallthru
          _
        // Predicated region
        $region41: #{transformer_decoder.16} parent=31 // pred_check
          %p308 = pneg %p104
        $region42: #{transformer_decoder.16} parent=31 // pred_check_branch
          %310 = sbr.rel (%p308) target = $region44
        $region43: #{transformer_decoder.16} parent=31 // pred_region
          %p311 = scmp.lt.s32.totalorder %s23, 1
          %s312 = scalar_select %p311, %s23, 1
          %p313 = scmp.lt.s32.totalorder %s24, 0
          %s314 = scalar_select %p313, %s24, 0
          %s315 = sadd.s32 %s314, %s312
          %s316 = smul.addr %s315, 8
          %s317 = scalar_lea.vmem %s2, %s316
        $region44: #{transformer_decoder.16} parent=31 // pred_fallthru
          _
      $region32: #{transformer_decoder.16} parent=5 // pred_fallthru
        _
      %p318 = scmp.le.s32.totalorder 1, %s16
      %p319 = scmp.lt.s32.totalorder %s16, 3
      %p320 = pnand %p318, %p319
      %p321 = pneg %p320
      // Predicated region
      $region45: #{transformer_decoder.16} parent=5 // pred_check
        _
      $region46: #{transformer_decoder.16} parent=5 // pred_check_branch
        %323 = sbr.rel (%p320) target = $region48
      $region47: #{transformer_decoder.16} parent=5 // pred_region
        %s324 = ssub.s32 %s16, 1
        // Predicated region
        $region49: #{transformer_decoder.16} parent=47 // pred_check
          %p325 = pneg %p131
        $region50: #{transformer_decoder.16} parent=47 // pred_check_branch
          %327 = sbr.rel (%p325) target = $region52
        $region51: #{transformer_decoder.16} parent=47 // pred_region
          %329 = dma.done [#allocation3], 256
        $region52: #{transformer_decoder.16} parent=47 // pred_fallthru
          _
        // Predicated region
        $region53: #{transformer_decoder.16} parent=47 // pred_check
          %p330 = pneg %p152
        $region54: #{transformer_decoder.16} parent=47 // pred_check_branch
          %332 = sbr.rel (%p330) target = $region56
        $region55: #{transformer_decoder.16} parent=47 // pred_region
          %334 = dma.done [#allocation5], 16
        $region56: #{transformer_decoder.16} parent=47 // pred_fallthru
          _
        // Predicated region
        $region57: #{transformer_decoder.16} parent=47 // pred_check
          %p335 = pneg %p173
        $region58: #{transformer_decoder.16} parent=47 // pred_check_branch
          %337 = sbr.rel (%p335) target = $region60
        $region59: #{transformer_decoder.16} parent=47 // pred_region
          %339 = dma.done [#allocation5], 16
        $region60: #{transformer_decoder.16} parent=47 // pred_fallthru
          _
        // Predicated region
        $region61: #{transformer_decoder.16} parent=47 // pred_check
          %p340 = pneg %p194
        $region62: #{transformer_decoder.16} parent=47 // pred_check_branch
          %342 = sbr.rel (%p340) target = $region64
        $region63: #{transformer_decoder.16} parent=47 // pred_region
          %344 = dma.done [#allocation8], 16
        $region64: #{transformer_decoder.16} parent=47 // pred_fallthru
          _
        %p345 = scmp.lt.s32.totalorder %s25, 1
        %s346 = scalar_select %p345, %s25, 1
        %p347 = scmp.lt.s32.totalorder %s26, 0
        %s348 = scalar_select %p347, %s26, 0
        %s349 = sadd.s32 %s348, %s346
        %s350 = smul.addr %s349, 4
        %s351 = scalar_lea.vmem %s0, %s350
        %p352 = pneg %p56
        %p353 = pneg %p53
        %p354 = scmp.lt.s32.totalorder %s25, 1
        %s355 = scalar_select %p354, %s25, 1
        %s356 = smul.addr %s355, 4
        %s357 = scalar_lea.vmem %s1, %s356
        %p358 = pneg %p82
        %p359 = pneg %p79
        %p360 = scmp.lt.s32.totalorder %s25, 1
        %s361 = scalar_select %p360, %s25, 1
        %p362 = scmp.lt.s32.totalorder %s26, 0
        %s363 = scalar_select %p362, %s26, 0
        %s364 = sadd.s32 %s363, %s361
        %s365 = smul.addr %s364, 8
        %s366 = scalar_lea.vmem %s2, %s365
        %p367 = pneg %p110
        %p368 = pneg %p107
        %p369 = pneg %p131
        %p370 = pneg %p128
        %p371 = pneg %p152
        %p372 = pneg %p149
        %p373 = pneg %p173
        %p374 = pneg %p170
        %p375 = pneg %p194
        %p376 = pneg %p191
        %p377 = pneg %p222
        %p378 = pneg %p219
        %p379 = scmp.lt.s32.totalorder %s25, 1
        %s380 = scalar_select %p379, %s25, 1
        %p381 = scmp.lt.s32.totalorder %s26, 0
        %s382 = scalar_select %p381, %s26, 0
        %s383 = sadd.s32 %s382, %s380
        %s384 = smul.addr %s383, 8
        %s385 = scalar_lea.vmem %s7, %s384
        %p386 = scmp.lt.s32.totalorder %s25, 1
        %s387 = scalar_select %p386, %s25, 1
        %p388 = scmp.lt.s32.totalorder %s26, 0
        %s389 = scalar_select %p388, %s26, 0
        %s390 = sadd.s32 %s389, %s387
        %s391 = smul.addr %s390, 4
        %s392 = scalar_lea.vmem %s0, %s391
        %p393 = scmp.lt.s32.totalorder %s25, 1
        %s394 = scalar_select %p393, %s25, 1
        %s395 = smul.addr %s394, 4
        %s396 = scalar_lea.vmem %s1, %s395
        %p397 = scmp.lt.s32.totalorder %s25, 1
        %s398 = scalar_select %p397, %s25, 1
        %p399 = scmp.lt.s32.totalorder %s26, 0
        %s400 = scalar_select %p399, %s26, 0
        %s401 = sadd.s32 %s400, %s398
        %s402 = smul.addr %s401, 8
        %s403 = scalar_lea.vmem %s2, %s402
        %p404 = scmp.lt.s32.totalorder %s25, 1
        %s405 = scalar_select %p404, %s25, 1
        %p406 = scmp.lt.s32.totalorder %s26, 0
        %s407 = scalar_select %p406, %s26, 0
        %s408 = sadd.s32 %s407, %s405
        %s409 = smul.addr %s408, 8
        %s410 = scalar_lea.vmem %s7, %s409
        %v412 = vld [vmem:[%s392] sm:$0xf]
        %v413 = vld [vmem:[%s396] sm:$0xf]
        %vm414 = vcmask 64512
        %v416 = vsel %vm414, %v412, 0
        %v419 = vsel %vm414, %v413, 0
        %421 = vmatpush.bf16.xpose.msra.mxu0 0
        %422 = vmatpush.bf16.xpose.msra.mxu0 0
        %423 = vmatpush.bf16.xpose.msra.mxu0 0
        %424 = vmatpush.bf16.xpose.msra.mxu0 0
        %425 = vmatpush.bf16.xpose.msra.mxu0 0
        %426 = vmatpush.bf16.xpose.msra.mxu0 0
        %427 = vmatpush.bf16.xpose.msra.mxu0 0
        %428 = vmatpush.bf16.xpose.msra.mxu0 %v419
        %429 = vmatmul.bf16.gmra.mxu0 %v416
        %v430 = vpop.f32.mrf.mxu0
        %v431 = vadd.f32 0.0, %v430
        %v432 = vpop.f32.mrf.mxu0
        %433 = vdwg.mxu0
        %v434 = vmul.f32 %v431, 0.35355338
        %v435 = vsel %vm414, %v434, -inf
        %436 = vmax.xlane.f32.xlu0 %v435
        %v437 = vpop.xlane.xlu0 %436
        %v438 = vsub.f32 %v434, %v437
        %v439 = vmul.f32 %v438, 1.442695
        %v440 = vpow.pop %v439
        %v441 = vsel %vm414, %v440, 0.0
        %442 = vadd.xlane.f32.xlu0 %v441
        %v443 = vpop.xlane.xlu0 %442
        %v444 = vpack.c.bf16 %v440, %v440
        %v446 = vunpack.c.l.b16 %v413
        %v447 = vpack.c.b16 %v446, %v446
        %448 = vrot.lane.b32.xlu0 %v447, 96
        %v449 = vpop.permute.xlu0 %448
        %v451 = vsel %vm414, %v444, 0
        %vm453 = vcmask 1043456
        %v455 = vsel %vm453, %v449, 0
        %457 = vmatpush.bf16.msra.mxu0 0
        %458 = vmatpush.bf16.msra.mxu0 0
        %459 = vmatpush.bf16.msra.mxu0 0
        %460 = vmatpush.bf16.msra.mxu0 0
        %461 = vmatpush.bf16.msra.mxu0 0
        %462 = vmatpush.bf16.msra.mxu0 0
        %463 = vmatpush.bf16.msra.mxu0 0
        %464 = vmatpush.bf16.msra.mxu0 %v455
        %465 = vmatmul.bf16.gmra.mxu0 %v451
        %v466 = vpop.f32.mrf.mxu0
        %v467 = vadd.f32 0.0, %v466
        %v468 = vpop.f32.mrf.mxu0
        %469 = vdwg.mxu0
        %v470 = vrcp.pop %v443
        %v471 = vmul.f32 %v443, %v470
        %v472 = vsub.f32 1.0, %v471
        %v473 = vmul.f32 %v470, %v472
        %v474 = vadd.f32 %v470, %v473
        %vm475 = vweird.f32 %v443
        %vm476 = vweird.f32 %v470
        %vm477 = vmor %vm475, %vm476
        %v478 = vsel %vm477, %v470, %v474
        %v479 = vand.u32 2147483647, %v443
        %vm480 = vcmp.eq.f32.partialorder %v479, 8.507059e+37
        %v481 = vand.u32 %v443, 2147483648
        %v482 = vor.u32 1.1754944e-38, %v481
        %v483 = vsel %vm480, %v482, %v478
        %v484 = vmul.f32 %v467, %v483
        %v485 = vpack.c.bf16 %v484, %v484
        %v486 = vld [vmem:[#allocation2] sm:$0xf]
        %v488 = vunpack.c.l.b16 %v412
        %v489 = vpack.c.b16 %v488, %v488
        %490 = vrot.lane.b32.xlu0 %v489, 120
        %v491 = vpop.permute.xlu0 %490
        %492 = vrot.lane.b32.xlu0 %v447, 120
        %v493 = vpop.permute.xlu0 %492
        %v495 = vsel %vm414, %v491, 0
        %v498 = vsel %vm414, %v493, 0
        %500 = vmatpush.bf16.xpose.msra.mxu0 0
        %501 = vmatpush.bf16.xpose.msra.mxu0 0
        %502 = vmatpush.bf16.xpose.msra.mxu0 0
        %503 = vmatpush.bf16.xpose.msra.mxu0 0
        %504 = vmatpush.bf16.xpose.msra.mxu0 0
        %505 = vmatpush.bf16.xpose.msra.mxu0 0
        %506 = vmatpush.bf16.xpose.msra.mxu0 0
        %507 = vmatpush.bf16.xpose.msra.mxu0 %v498
        %508 = vmatmul.bf16.gmra.mxu0 %v495
        %v509 = vpop.f32.mrf.mxu0
        %v510 = vadd.f32 0.0, %v509
        %v511 = vpop.f32.mrf.mxu0
        %512 = vdwg.mxu0
        %v513 = vmul.f32 %v510, 0.35355338
        %v514 = vsel %vm414, %v513, -inf
        %515 = vmax.xlane.f32.xlu0 %v514
        %v516 = vpop.xlane.xlu0 %515
        %v517 = vsub.f32 %v513, %v516
        %v518 = vmul.f32 %v517, 1.442695
        %v519 = vpow.pop %v518
        %v520 = vsel %vm414, %v519, 0.0
        %521 = vadd.xlane.f32.xlu0 %v520
        %v522 = vpop.xlane.xlu0 %521
        %v523 = vpack.c.bf16 %v519, %v519
        %524 = vrot.lane.b32.xlu0 %v447, 88
        %v525 = vpop.permute.xlu0 %524
        %v527 = vsel %vm414, %v523, 0
        %v530 = vsel %vm453, %v525, 0
        %532 = vmatpush.bf16.msra.mxu0 0
        %533 = vmatpush.bf16.msra.mxu0 0
        %534 = vmatpush.bf16.msra.mxu0 0
        %535 = vmatpush.bf16.msra.mxu0 0
        %536 = vmatpush.bf16.msra.mxu0 0
        %537 = vmatpush.bf16.msra.mxu0 0
        %538 = vmatpush.bf16.msra.mxu0 0
        %539 = vmatpush.bf16.msra.mxu0 %v530
        %540 = vmatmul.bf16.gmra.mxu0 %v527
        %v541 = vpop.f32.mrf.mxu0
        %v542 = vadd.f32 0.0, %v541
        %v543 = vpop.f32.mrf.mxu0
        %544 = vdwg.mxu0
        %v545 = vrcp.pop %v522
        %v546 = vmul.f32 %v522, %v545
        %v547 = vsub.f32 1.0, %v546
        %v548 = vmul.f32 %v545, %v547
        %v549 = vadd.f32 %v545, %v548
        %vm550 = vweird.f32 %v522
        %vm551 = vweird.f32 %v545
        %vm552 = vmor %vm550, %vm551
        %v553 = vsel %vm552, %v545, %v549
        %v554 = vand.u32 2147483647, %v522
        %vm555 = vcmp.eq.f32.partialorder %v554, 8.507059e+37
        %v556 = vand.u32 %v522, 2147483648
        %v557 = vor.u32 1.1754944e-38, %v556
        %v558 = vsel %vm555, %v557, %v553
        %v559 = vmul.f32 %v542, %v558
        %v560 = vpack.c.bf16 %v559, %v559
        %v561 = vld [vmem:[#allocation2 + $0x4] sm:$0xf]
        %v563 = vsel %vm414, %v560, 0
        %v566 = vsel %vm453, %v561, 0
        %568 = vmatpush.bf16.msra.mxu0 0
        %569 = vmatpush.bf16.msra.mxu0 0
        %570 = vmatpush.bf16.msra.mxu0 0
        %571 = vmatpush.bf16.msra.mxu0 0
        %572 = vmatpush.bf16.msra.mxu0 0
        %573 = vmatpush.bf16.msra.mxu0 0
        %574 = vmatpush.bf16.msra.mxu0 0
        %575 = vmatpush.bf16.msra.mxu0 %v566
        %576 = vmatmul.bf16.gmra.mxu0 %v563
        %v577 = vpop.f32.mrf.mxu0
        %v578 = vadd.f32 0.0, %v577
        %v579 = vpop.f32.mrf.mxu0
        %580 = vdwg.mxu0
        %v582 = vsel %vm414, %v485, 0
        %v585 = vsel %vm453, %v486, 0
        %587 = vmatpush.bf16.msra.mxu0 0
        %588 = vmatpush.bf16.msra.mxu0 0
        %589 = vmatpush.bf16.msra.mxu0 0
        %590 = vmatpush.bf16.msra.mxu0 0
        %591 = vmatpush.bf16.msra.mxu0 0
        %592 = vmatpush.bf16.msra.mxu0 0
        %593 = vmatpush.bf16.msra.mxu0 0
        %594 = vmatpush.bf16.msra.mxu0 %v585
        %595 = vmatmul.bf16.gmra.mxu0 %v582
        %v596 = vpop.f32.mrf.mxu0
        %v597 = vadd.f32 %v578, %v596
        %v598 = vpop.f32.mrf.mxu0
        %599 = vdwg.mxu0
        %600 = vrot.lane.b32.xlu0 %v489, 112
        %v601 = vpop.permute.xlu0 %600
        %602 = vrot.lane.b32.xlu0 %v447, 112
        %v603 = vpop.permute.xlu0 %602
        %v605 = vsel %vm414, %v601, 0
        %v608 = vsel %vm414, %v603, 0
        %610 = vmatpush.bf16.xpose.msra.mxu0 0
        %611 = vmatpush.bf16.xpose.msra.mxu0 0
        %612 = vmatpush.bf16.xpose.msra.mxu0 0
        %613 = vmatpush.bf16.xpose.msra.mxu0 0
        %614 = vmatpush.bf16.xpose.msra.mxu0 0
        %615 = vmatpush.bf16.xpose.msra.mxu0 0
        %616 = vmatpush.bf16.xpose.msra.mxu0 0
        %617 = vmatpush.bf16.xpose.msra.mxu0 %v608
        %618 = vmatmul.bf16.gmra.mxu0 %v605
        %v619 = vpop.f32.mrf.mxu0
        %v620 = vadd.f32 0.0, %v619
        %v621 = vpop.f32.mrf.mxu0
        %622 = vdwg.mxu0
        %v623 = vmul.f32 %v620, 0.35355338
        %v624 = vsel %vm414, %v623, -inf
        %625 = vmax.xlane.f32.xlu0 %v624
        %v626 = vpop.xlane.xlu0 %625
        %v627 = vsub.f32 %v623, %v626
        %v628 = vmul.f32 %v627, 1.442695
        %v629 = vpow.pop %v628
        %v630 = vsel %vm414, %v629, 0.0
        %631 = vadd.xlane.f32.xlu0 %v630
        %v632 = vpop.xlane.xlu0 %631
        %v633 = vpack.c.bf16 %v629, %v629
        %634 = vrot.lane.b32.xlu0 %v447, 80
        %v635 = vpop.permute.xlu0 %634
        %v637 = vsel %vm414, %v633, 0
        %v640 = vsel %vm453, %v635, 0
        %642 = vmatpush.bf16.msra.mxu0 0
        %643 = vmatpush.bf16.msra.mxu0 0
        %644 = vmatpush.bf16.msra.mxu0 0
        %645 = vmatpush.bf16.msra.mxu0 0
        %646 = vmatpush.bf16.msra.mxu0 0
        %647 = vmatpush.bf16.msra.mxu0 0
        %648 = vmatpush.bf16.msra.mxu0 0
        %649 = vmatpush.bf16.msra.mxu0 %v640
        %650 = vmatmul.bf16.gmra.mxu0 %v637
        %v651 = vpop.f32.mrf.mxu0
        %v652 = vadd.f32 0.0, %v651
        %v653 = vpop.f32.mrf.mxu0
        %654 = vdwg.mxu0
        %v655 = vrcp.pop %v632
        %v656 = vmul.f32 %v632, %v655
        %v657 = vsub.f32 1.0, %v656
        %v658 = vmul.f32 %v655, %v657
        %v659 = vadd.f32 %v655, %v658
        %vm660 = vweird.f32 %v632
        %vm661 = vweird.f32 %v655
        %vm662 = vmor %vm660, %vm661
        %v663 = vsel %vm662, %v655, %v659
        %v664 = vand.u32 2147483647, %v632
        %vm665 = vcmp.eq.f32.partialorder %v664, 8.507059e+37
        %v666 = vand.u32 %v632, 2147483648
        %v667 = vor.u32 1.1754944e-38, %v666
        %v668 = vsel %vm665, %v667, %v663
        %v669 = vmul.f32 %v652, %v668
        %v670 = vpack.c.bf16 %v669, %v669
        %v671 = vld [vmem:[#allocation2 + $0x8] sm:$0xf]
        %v673 = vsel %vm414, %v670, 0
        %v676 = vsel %vm453, %v671, 0
        %678 = vmatpush.bf16.msra.mxu0 0
        %679 = vmatpush.bf16.msra.mxu0 0
        %680 = vmatpush.bf16.msra.mxu0 0
        %681 = vmatpush.bf16.msra.mxu0 0
        %682 = vmatpush.bf16.msra.mxu0 0
        %683 = vmatpush.bf16.msra.mxu0 0
        %684 = vmatpush.bf16.msra.mxu0 0
        %685 = vmatpush.bf16.msra.mxu0 %v676
        %686 = vmatmul.bf16.gmra.mxu0 %v673
        %v687 = vpop.f32.mrf.mxu0
        %v688 = vadd.f32 0.0, %v687
        %v689 = vpop.f32.mrf.mxu0
        %690 = vdwg.mxu0
        %v691 = vadd.f32 %v597, %v688
        %692 = vrot.lane.b32.xlu0 %v489, 104
        %v693 = vpop.permute.xlu0 %692
        %694 = vrot.lane.b32.xlu0 %v447, 104
        %v695 = vpop.permute.xlu0 %694
        %v697 = vsel %vm414, %v693, 0
        %v700 = vsel %vm414, %v695, 0
        %702 = vmatpush.bf16.xpose.msra.mxu0 0
        %703 = vmatpush.bf16.xpose.msra.mxu0 0
        %704 = vmatpush.bf16.xpose.msra.mxu0 0
        %705 = vmatpush.bf16.xpose.msra.mxu0 0
        %706 = vmatpush.bf16.xpose.msra.mxu0 0
        %707 = vmatpush.bf16.xpose.msra.mxu0 0
        %708 = vmatpush.bf16.xpose.msra.mxu0 0
        %709 = vmatpush.bf16.xpose.msra.mxu0 %v700
        %710 = vmatmul.bf16.gmra.mxu0 %v697
        %v711 = vpop.f32.mrf.mxu0
        %v712 = vadd.f32 0.0, %v711
        %v713 = vpop.f32.mrf.mxu0
        %714 = vdwg.mxu0
        %v715 = vmul.f32 %v712, 0.35355338
        %v716 = vsel %vm414, %v715, -inf
        %717 = vmax.xlane.f32.xlu0 %v716
        %v718 = vpop.xlane.xlu0 %717
        %v719 = vsub.f32 %v715, %v718
        %v720 = vmul.f32 %v719, 1.442695
        %v721 = vpow.pop %v720
        %v722 = vsel %vm414, %v721, 0.0
        %723 = vadd.xlane.f32.xlu0 %v722
        %v724 = vpop.xlane.xlu0 %723
        %v725 = vpack.c.bf16 %v721, %v721
        %726 = vrot.lane.b32.xlu0 %v447, 72
        %v727 = vpop.permute.xlu0 %726
        %v729 = vsel %vm414, %v725, 0
        %v732 = vsel %vm453, %v727, 0
        %734 = vmatpush.bf16.msra.mxu0 0
        %735 = vmatpush.bf16.msra.mxu0 0
        %736 = vmatpush.bf16.msra.mxu0 0
        %737 = vmatpush.bf16.msra.mxu0 0
        %738 = vmatpush.bf16.msra.mxu0 0
        %739 = vmatpush.bf16.msra.mxu0 0
        %740 = vmatpush.bf16.msra.mxu0 0
        %741 = vmatpush.bf16.msra.mxu0 %v732
        %742 = vmatmul.bf16.gmra.mxu0 %v729
        %v743 = vpop.f32.mrf.mxu0
        %v744 = vadd.f32 0.0, %v743
        %v745 = vpop.f32.mrf.mxu0
        %746 = vdwg.mxu0
        %v747 = vrcp.pop %v724
        %v748 = vmul.f32 %v724, %v747
        %v749 = vsub.f32 1.0, %v748
        %v750 = vmul.f32 %v747, %v749
        %v751 = vadd.f32 %v747, %v750
        %vm752 = vweird.f32 %v724
        %vm753 = vweird.f32 %v747
        %vm754 = vmor %vm752, %vm753
        %v755 = vsel %vm754, %v747, %v751
        %v756 = vand.u32 2147483647, %v724
        %vm757 = vcmp.eq.f32.partialorder %v756, 8.507059e+37
        %v758 = vand.u32 %v724, 2147483648
        %v759 = vor.u32 1.1754944e-38, %v758
        %v760 = vsel %vm757, %v759, %v755
        %v761 = vmul.f32 %v744, %v760
        %v762 = vpack.c.bf16 %v761, %v761
        %v763 = vld [vmem:[#allocation2 + $0xc] sm:$0xf]
        %v765 = vsel %vm414, %v762, 0
        %v768 = vsel %vm453, %v763, 0
        %770 = vmatpush.bf16.msra.mxu0 0
        %771 = vmatpush.bf16.msra.mxu0 0
        %772 = vmatpush.bf16.msra.mxu0 0
        %773 = vmatpush.bf16.msra.mxu0 0
        %774 = vmatpush.bf16.msra.mxu0 0
        %775 = vmatpush.bf16.msra.mxu0 0
        %776 = vmatpush.bf16.msra.mxu0 0
        %777 = vmatpush.bf16.msra.mxu0 %v768
        %778 = vmatmul.bf16.gmra.mxu0 %v765
        %v779 = vpop.f32.mrf.mxu0
        %v780 = vadd.f32 0.0, %v779
        %v781 = vpop.f32.mrf.mxu0
        %782 = vdwg.mxu0
        %v783 = vadd.f32 %v691, %v780
        %v784 = vld [vmem:[%s403] sm:$0xff]
        %v785 = vadd.f32 %v784, %v783
        %v786 = vld [vmem:[#allocation4] sm:$0x1]
        %v788 = vperm.slane %v786, 0
        %v790 = vadd.f32 %v785, %v788
        %vm791 = vcmask 261120
        %v792 = vsel %vm791, %v790, 0.0
        %793 = vadd.xlane.f32.xlu0 %v792
        %v794 = vpop.xlane.xlu0 %793
        %v795 = vrcp.pop 32.0
        %v796 = vmul.f32 32.0, %v795
        %v797 = vsub.f32 1.0, %v796
        %v798 = vmul.f32 %v795, %v797
        %v799 = vadd.f32 %v795, %v798
        %vm800 = vweird.f32 %v795
        %v801 = vsel %vm800, %v795, %v799
        %v802 = vmul.f32 %v794, %v801
        %v803 = vsub.f32 %v790, %v802
        %v804 = vmul.f32 %v803, %v803
        %v805 = vsel %vm791, %v804, 0.0
        %806 = vadd.xlane.f32.xlu0 %v805
        %v807 = vpop.xlane.xlu0 %806
        %v808 = vmul.f32 %v807, %v801
        %v809 = vadd.f32 %v808, 1e-05
        %v810 = vrsqrt.pop %v809
        %v811 = vmul.f32 %v810, %v809
        %v812 = vmul.f32 %v811, %v810
        %v813 = vmul.f32 0.5, %v812
        %v814 = vsub.f32 1.5, %v813
        %v815 = vmul.f32 %v810, %v814
        %vm816 = vweird.f32 %v809
        %vm817 = vweird.f32 %v810
        %vm818 = vmor %vm816, %vm817
        %v819 = vsel %vm818, %v810, %v815
        %v820 = vmul.f32 %v803, %v819
        %v821 = vld [vmem:[#allocation6] sm:$0x1]
        %v823 = vperm.slane %v821, 0
        %v825 = vmul.f32 %v820, %v823
        %v826 = vld [vmem:[#allocation7] sm:$0x1]
        %v828 = vperm.slane %v826, 0
        %v830 = vadd.f32 %v825, %v828
        %831 = vst.msk [vmem:[%s410] sm:$0xff] %vm791, %v830
        %p832 = scmp.lt.s32.totalorder %s25, 1
        %s833 = scalar_select %p832, %s25, 1
        %p834 = scmp.lt.s32.totalorder %s26, 0
        %s835 = scalar_select %p834, %s26, 0
        %s836 = sadd.s32 %s835, %s833
        %s837 = smul.addr %s836, 8
        %s838 = scalar_lea.vmem %s7, %s837
        // Predicated region
        $region65: #{transformer_decoder.16} parent=47 // pred_check
          %p839 = pneg %p219
        $region66: #{transformer_decoder.16} parent=47 // pred_check_branch
          %841 = sbr.rel (%p839) target = $region68
        $region67: #{transformer_decoder.16} parent=47 // pred_region
          _
        $region68: #{transformer_decoder.16} parent=47 // pred_fallthru
          _
      $region48: #{transformer_decoder.16} parent=5 // pred_fallthru
        _
      %p842 = scmp.le.s32.totalorder 2, %s16
      // Predicated region
      $region69: #{transformer_decoder.16} parent=5 // pred_check
        %p843 = pneg %p842
      $region70: #{transformer_decoder.16} parent=5 // pred_check_branch
        %845 = sbr.rel (%p843) target = $region72
      $region71: #{transformer_decoder.16} parent=5 // pred_region
        %s846 = ssub.s32 %s16, 2
        // Predicated region
        $region73: #{transformer_decoder.16} parent=71 // pred_check
          %p847 = pneg %p225
        $region74: #{transformer_decoder.16} parent=71 // pred_check_branch
          %849 = sbr.rel (%p847) target = $region76
        $region75: #{transformer_decoder.16} parent=71 // pred_region
          %p850 = scmp.lt.s32.totalorder %s27, 1
          %s851 = scalar_select %p850, %s27, 1
          %p852 = scmp.lt.s32.totalorder %s28, 0
          %s853 = scalar_select %p852, %s28, 0
          %s854 = sadd.s32 %s853, %s851
          %s855 = smul.addr %s854, 8
          %s856 = scalar_lea.vmem %s7, %s855
        $region76: #{transformer_decoder.16} parent=71 // pred_fallthru
          _
      $region72: #{transformer_decoder.16} parent=5 // pred_fallthru
        _
    $region6: #{transformer_decoder.16} parent=1 // loop_footer
      %s20 = sadd.s32 1, %s16
    $region7: #{transformer_decoder.16} parent=1 // loop_footer_branch
      %15 = sbr.rel target = $region3
    $region8: #{transformer_decoder.16} parent=1 // loop_exit
      _
    %857 = vsyncpa [#allocation3], 1
    %s858 = scalar_lea.sflag [#allocation3], 1
    %859 = vsyncpa %s858, 1
    %860 = vsyncpa [#allocation5], 1
    %861 = vsyncpa [#allocation8], 1

// kernel: transformer_decoder.19
$region0: #{transformer_decoder.19}
  #allocation0 [shape = 'u32[]', space=smem, size = 0x4, offset = 0x4, fixed_abs, tag = 'smem constant byte address 0x4 - core index']
  #allocation1 [shape = 'u32[72,128]{1,0:T(1,128)}', space=vmem, size = 0x9000, scoped, tag = 'internal scratch']
  %s0 = inlined_call_operand.vmem [shape: bf16[2,8,32], index: 0, kind: input, shape index: {}]
  %s1 = inlined_call_operand.vmem [shape: bf16[2,8,64], index: 1, kind: input, shape index: {}]
  %s2 = inlined_call_operand.vmem [shape: f32[2,8,32], index: 2, kind: input, shape index: {}]
  %s3 = inlined_call_operand.vmem [shape: bf16[32,32], index: 3, kind: input, shape index: {}]
  %s4 = inlined_call_operand.hbm [shape: f32[1,32], index: 4, kind: input, shape index: {}]
  %s5 = inlined_call_operand.hbm [shape: f32[1,32], index: 5, kind: input, shape index: {}]
  %s6 = inlined_call_operand.hbm [shape: f32[1,32], index: 6, kind: input, shape index: {}]
  %s7 = inlined_call_operand.vmem [shape: f32[2,8,32], index: 7, kind: output, shape index: {}]
  %s8 = sld [smem:[#allocation0]]
  $region73: #{transformer_decoder.19} parent=0
    _
  %s10 = ssub.s32 1, %s8
  %s11 = scalar_select 0, %s10, %s8
  $region1: #{transformer_decoder.19} parent=0
    #allocation2 [shape = 'u8[512]{0}', space=vmem, size = 0x400, scoped, tag = 'input window, operand 4, single buffered']
    #allocation3 [shape = 's32[2]{0}', space=sflag, size = 0x8, scoped, tag = 'scoped memory for transformer_decoder.19']
    #allocation4 [shape = 'u8[512]{0}', space=vmem, size = 0x400, scoped, tag = 'input window, operand 5, single buffered']
    #allocation5 [shape = 's32[1]{0}', space=sflag, size = 0x4, scoped, tag = 'scoped memory for transformer_decoder.19']
    #allocation6 [shape = 'u8[512]{0}', space=vmem, size = 0x400, scoped, tag = 'input window, operand 6, single buffered']
    %12 = vsyncpa [#allocation3], 0
    %13 = vsyncpa [#allocation5], 0
    loop: start=0, step=1, limit=4
    $region2: #{transformer_decoder.19} parent=1 // loop_pre_header
      _
    $region3: #{transformer_decoder.19} parent=1 // loop_header
      %s15 = sphi 0, %s19
      %p16 = scmp.ge.s32.totalorder %s15, 4
      %s22 = sphi 0, %s34
      %s23 = sphi 0, %s30
      %s24 = sphi 0, %s22
      %s25 = sphi 0, %s23
      %s26 = sphi 0, %s24
      %s27 = sphi 0, %s25
      %s39 = sphi 0, %s41
      %s42 = sphi 0, %s39
      %s43 = sphi 0, %s42
      %s59 = sphi 0, %s43
      %s65 = sphi 0, %s67
      %s68 = sphi 0, %s65
      %s69 = sphi 0, %s68
      %s85 = sphi 0, %s69
      %s93 = sphi 0, %s95
      %s96 = sphi 0, %s93
      %s97 = sphi 0, %s96
      %s113 = sphi 0, %s97
      %s117 = sphi 0, %s117
      %s119 = sphi 0, %s117
      %s120 = sphi 0, %s119
      %s134 = sphi 0, %s120
      %s138 = sphi 0, %s138
      %s140 = sphi 0, %s138
      %s141 = sphi 0, %s140
      %s155 = sphi 0, %s141
      %s159 = sphi 0, %s159
      %s161 = sphi 0, %s159
      %s162 = sphi 0, %s161
      %s176 = sphi 0, %s162
      %s180 = sphi 0, %s180
      %s182 = sphi 0, %s180
      %s183 = sphi 0, %s182
      %s197 = sphi 0, %s183
      %s205 = sphi 0, %s207
      %s208 = sphi 0, %s205
      %s209 = sphi 0, %s208
      %s225 = sphi 0, %s209
    $region4: #{transformer_decoder.19} parent=1 // loop_header_branch
      %18 = sbr.rel (%p16) target = $region8
    $region5: #{transformer_decoder.19} parent=1 // loop_body
      %s20 = ssub.s32 %s15, 1
      %s21 = ssub.s32 %s15, 2
      %s28 = sadd.s32 1, %s23
      %p29 = scmp.ge.s32.totalorder %s28, 1
      %s30 = scalar_select %p29, 0, %s28
      %s31 = sadd.s32 1, %s22
      %s32 = scalar_select %p29, %s31, %s22
      %p33 = scmp.ge.s32.totalorder %s32, 2
      %s34 = scalar_select %p33, 0, %s32
      %s35 = ssub.s32 %s22, %s34
      %s36 = ssub.s32 %s23, %s30
      %s37 = sor.u32 %s35, %s36
      %p38 = scmp.eq.s32.totalorder %s37, 0
      %s40 = sadd.s32 %s39, 1
      %s41 = scalar_select %p38, %s39, %s40
      %p44 = pneg %p38
      %p45 = scmp.eq.s32.totalorder %s15, 1
      %p46 = por %p44, %p45
      %p47 = scmp.ne.s32.totalorder %s39, %s42
      %p48 = scmp.eq.s32.totalorder %s15, 0
      %p49 = por %p47, %p48
      %p50 = scmp.ne.s32.totalorder %s39, %s42
      %p51 = scmp.eq.s32.totalorder %s20, 1
      %p52 = por %p50, %p51
      %p53 = scmp.ne.s32.totalorder %s42, %s43
      %p54 = scmp.eq.s32.totalorder %s20, 0
      %p55 = por %p53, %p54
      %p56 = scmp.ne.s32.totalorder %s42, %s43
      %p57 = scmp.eq.s32.totalorder %s21, 1
      %p58 = por %p56, %p57
      %p60 = scmp.ne.s32.totalorder %s43, %s59
      %p61 = scmp.eq.s32.totalorder %s21, 0
      %p62 = por %p60, %p61
      %s63 = ssub.s32 %s22, %s34
      %p64 = scmp.eq.s32.totalorder %s63, 0
      %s66 = sadd.s32 %s65, 1
      %s67 = scalar_select %p64, %s65, %s66
      %p70 = pneg %p64
      %p71 = scmp.eq.s32.totalorder %s15, 1
      %p72 = por %p70, %p71
      %p73 = scmp.ne.s32.totalorder %s65, %s68
      %p74 = scmp.eq.s32.totalorder %s15, 0
      %p75 = por %p73, %p74
      %p76 = scmp.ne.s32.totalorder %s65, %s68
      %p77 = scmp.eq.s32.totalorder %s20, 1
      %p78 = por %p76, %p77
      %p79 = scmp.ne.s32.totalorder %s68, %s69
      %p80 = scmp.eq.s32.totalorder %s20, 0
      %p81 = por %p79, %p80
      %p82 = scmp.ne.s32.totalorder %s68, %s69
      %p83 = scmp.eq.s32.totalorder %s21, 1
      %p84 = por %p82, %p83
      %p86 = scmp.ne.s32.totalorder %s69, %s85
      %p87 = scmp.eq.s32.totalorder %s21, 0
      %p88 = por %p86, %p87
      %s89 = ssub.s32 %s22, %s34
      %s90 = ssub.s32 %s23, %s30
      %s91 = sor.u32 %s89, %s90
      %p92 = scmp.eq.s32.totalorder %s91, 0
      %s94 = sadd.s32 %s93, 1
      %s95 = scalar_select %p92, %s93, %s94
      %p98 = pneg %p92
      %p99 = scmp.eq.s32.totalorder %s15, 1
      %p100 = por %p98, %p99
      %p101 = scmp.ne.s32.totalorder %s93, %s96
      %p102 = scmp.eq.s32.totalorder %s15, 0
      %p103 = por %p101, %p102
      %p104 = scmp.ne.s32.totalorder %s93, %s96
      %p105 = scmp.eq.s32.totalorder %s20, 1
      %p106 = por %p104, %p105
      %p107 = scmp.ne.s32.totalorder %s96, %s97
      %p108 = scmp.eq.s32.totalorder %s20, 0
      %p109 = por %p107, %p108
      %p110 = scmp.ne.s32.totalorder %s96, %s97
      %p111 = scmp.eq.s32.totalorder %s21, 1
      %p112 = por %p110, %p111
      %p114 = scmp.ne.s32.totalorder %s97, %s113
      %p115 = scmp.eq.s32.totalorder %s21, 0
      %p116 = por %p114, %p115
      %s118 = sadd.s32 %s117, 1
      %p121 = scmp.eq.s32.totalorder %s15, 1
      %p122 = scmp.ne.s32.totalorder %s117, %s119
      %p123 = scmp.eq.s32.totalorder %s15, 0
      %p124 = por %p122, %p123
      %p125 = scmp.ne.s32.totalorder %s117, %s119
      %p126 = scmp.eq.s32.totalorder %s20, 1
      %p127 = por %p125, %p126
      %p128 = scmp.ne.s32.totalorder %s119, %s120
      %p129 = scmp.eq.s32.totalorder %s20, 0
      %p130 = por %p128, %p129
      %p131 = scmp.ne.s32.totalorder %s119, %s120
      %p132 = scmp.eq.s32.totalorder %s21, 1
      %p133 = por %p131, %p132
      %p135 = scmp.ne.s32.totalorder %s120, %s134
      %p136 = scmp.eq.s32.totalorder %s21, 0
      %p137 = por %p135, %p136
      %s139 = sadd.s32 %s138, 1
      %p142 = scmp.eq.s32.totalorder %s15, 1
      %p143 = scmp.ne.s32.totalorder %s138, %s140
      %p144 = scmp.eq.s32.totalorder %s15, 0
      %p145 = por %p143, %p144
      %p146 = scmp.ne.s32.totalorder %s138, %s140
      %p147 = scmp.eq.s32.totalorder %s20, 1
      %p148 = por %p146, %p147
      %p149 = scmp.ne.s32.totalorder %s140, %s141
      %p150 = scmp.eq.s32.totalorder %s20, 0
      %p151 = por %p149, %p150
      %p152 = scmp.ne.s32.totalorder %s140, %s141
      %p153 = scmp.eq.s32.totalorder %s21, 1
      %p154 = por %p152, %p153
      %p156 = scmp.ne.s32.totalorder %s141, %s155
      %p157 = scmp.eq.s32.totalorder %s21, 0
      %p158 = por %p156, %p157
      %s160 = sadd.s32 %s159, 1
      %p163 = scmp.eq.s32.totalorder %s15, 1
      %p164 = scmp.ne.s32.totalorder %s159, %s161
      %p165 = scmp.eq.s32.totalorder %s15, 0
      %p166 = por %p164, %p165
      %p167 = scmp.ne.s32.totalorder %s159, %s161
      %p168 = scmp.eq.s32.totalorder %s20, 1
      %p169 = por %p167, %p168
      %p170 = scmp.ne.s32.totalorder %s161, %s162
      %p171 = scmp.eq.s32.totalorder %s20, 0
      %p172 = por %p170, %p171
      %p173 = scmp.ne.s32.totalorder %s161, %s162
      %p174 = scmp.eq.s32.totalorder %s21, 1
      %p175 = por %p173, %p174
      %p177 = scmp.ne.s32.totalorder %s162, %s176
      %p178 = scmp.eq.s32.totalorder %s21, 0
      %p179 = por %p177, %p178
      %s181 = sadd.s32 %s180, 1
      %p184 = scmp.eq.s32.totalorder %s15, 1
      %p185 = scmp.ne.s32.totalorder %s180, %s182
      %p186 = scmp.eq.s32.totalorder %s15, 0
      %p187 = por %p185, %p186
      %p188 = scmp.ne.s32.totalorder %s180, %s182
      %p189 = scmp.eq.s32.totalorder %s20, 1
      %p190 = por %p188, %p189
      %p191 = scmp.ne.s32.totalorder %s182, %s183
      %p192 = scmp.eq.s32.totalorder %s20, 0
      %p193 = por %p191, %p192
      %p194 = scmp.ne.s32.totalorder %s182, %s183
      %p195 = scmp.eq.s32.totalorder %s21, 1
      %p196 = por %p194, %p195
      %p198 = scmp.ne.s32.totalorder %s183, %s197
      %p199 = scmp.eq.s32.totalorder %s21, 0
      %p200 = por %p198, %p199
      %s201 = ssub.s32 %s22, %s34
      %s202 = ssub.s32 %s23, %s30
      %s203 = sor.u32 %s201, %s202
      %p204 = scmp.eq.s32.totalorder %s203, 0
      %s206 = sadd.s32 %s205, 1
      %s207 = scalar_select %p204, %s205, %s206
      %p210 = pneg %p204
      %p211 = scmp.eq.s32.totalorder %s15, 1
      %p212 = por %p210, %p211
      %p213 = scmp.ne.s32.totalorder %s205, %s208
      %p214 = scmp.eq.s32.totalorder %s15, 0
      %p215 = por %p213, %p214
      %p216 = scmp.ne.s32.totalorder %s205, %s208
      %p217 = scmp.eq.s32.totalorder %s20, 1
      %p218 = por %p216, %p217
      %p219 = scmp.ne.s32.totalorder %s208, %s209
      %p220 = scmp.eq.s32.totalorder %s20, 0
      %p221 = por %p219, %p220
      %p222 = scmp.ne.s32.totalorder %s208, %s209
      %p223 = scmp.eq.s32.totalorder %s21, 1
      %p224 = por %p222, %p223
      %p226 = scmp.ne.s32.totalorder %s209, %s225
      %p227 = scmp.eq.s32.totalorder %s21, 0
      %p228 = por %p226, %p227
      %p229 = scmp.le.s32.totalorder 1, %s15
      %p230 = scmp.lt.s32.totalorder %s15, 3
      %p231 = pnand %p229, %p230
      %p232 = pneg %p231
      // Predicated region
      $region9: #{transformer_decoder.19} parent=5 // pred_check
        _
      $region10: #{transformer_decoder.19} parent=5 // pred_check_branch
        %234 = sbr.rel (%p231) target = $region12
      $region11: #{transformer_decoder.19} parent=5 // pred_region
        %s235 = ssub.s32 %s15, 1
        // Predicated region
        $region13: #{transformer_decoder.19} parent=11 // pred_check
          %p236 = pneg %p130
        $region14: #{transformer_decoder.19} parent=11 // pred_check_branch
          %238 = sbr.rel (%p236) target = $region16
        $region15: #{transformer_decoder.19} parent=11 // pred_region
          _
        $region16: #{transformer_decoder.19} parent=11 // pred_fallthru
          _
        // Predicated region
        $region17: #{transformer_decoder.19} parent=11 // pred_check
          %p239 = pneg %p151
        $region18: #{transformer_decoder.19} parent=11 // pred_check_branch
          %241 = sbr.rel (%p239) target = $region20
        $region19: #{transformer_decoder.19} parent=11 // pred_region
          %243 = vsyncadd [#allocation3], 0
          %s245 = sshll.u32 %s4, 4
          %s246 = int_to_ptr.hbm [resolvable:$true] %s245
          %s247 = sshll.u32 [#allocation2], 4
          %s248 = int_to_ptr.vmem [resolvable:$true] %s247
          %250 = dma.hbm_to_vmem [thread:$0]  %s246, 16, %s248, [#allocation3]
        $region20: #{transformer_decoder.19} parent=11 // pred_fallthru
          _
        // Predicated region
        $region21: #{transformer_decoder.19} parent=11 // pred_check
          %p251 = pneg %p172
        $region22: #{transformer_decoder.19} parent=11 // pred_check_branch
          %253 = sbr.rel (%p251) target = $region24
        $region23: #{transformer_decoder.19} parent=11 // pred_region
          %255 = vsyncadd [#allocation5], 0
          %s257 = sshll.u32 %s5, 4
          %s258 = int_to_ptr.hbm [resolvable:$true] %s257
          %s259 = sshll.u32 [#allocation4], 4
          %s260 = int_to_ptr.vmem [resolvable:$true] %s259
          %262 = dma.hbm_to_vmem [thread:$0]  %s258, 16, %s260, [#allocation5]
        $region24: #{transformer_decoder.19} parent=11 // pred_fallthru
          _
        // Predicated region
        $region25: #{transformer_decoder.19} parent=11 // pred_check
          %p263 = pneg %p193
        $region26: #{transformer_decoder.19} parent=11 // pred_check_branch
          %265 = sbr.rel (%p263) target = $region28
        $region27: #{transformer_decoder.19} parent=11 // pred_region
          %267 = vsyncadd [#allocation5], 0
          %s269 = sshll.u32 %s6, 4
          %s270 = int_to_ptr.hbm [resolvable:$true] %s269
          %s271 = sshll.u32 [#allocation6], 4
          %s272 = int_to_ptr.vmem [resolvable:$true] %s271
          %274 = dma.hbm_to_vmem [thread:$0]  %s270, 16, %s272, [#allocation5]
        $region28: #{transformer_decoder.19} parent=11 // pred_fallthru
          _
      $region12: #{transformer_decoder.19} parent=5 // pred_fallthru
        _
      %p275 = scmp.lt.s32.totalorder %s15, 2
      // Predicated region
      $region29: #{transformer_decoder.19} parent=5 // pred_check
        %p276 = pneg %p275
      $region30: #{transformer_decoder.19} parent=5 // pred_check_branch
        %278 = sbr.rel (%p276) target = $region32
      $region31: #{transformer_decoder.19} parent=5 // pred_region
        // Predicated region
        $region33: #{transformer_decoder.19} parent=31 // pred_check
          %p279 = pneg %p49
        $region34: #{transformer_decoder.19} parent=31 // pred_check_branch
          %281 = sbr.rel (%p279) target = $region36
        $region35: #{transformer_decoder.19} parent=31 // pred_region
          %p282 = scmp.lt.s32.totalorder %s22, 1
          %s283 = scalar_select %p282, %s22, 1
          %p284 = scmp.lt.s32.totalorder %s23, 0
          %s285 = scalar_select %p284, %s23, 0
          %s286 = sadd.s32 %s285, %s283
          %s287 = smul.addr %s286, 4
          %s288 = scalar_lea.vmem %s0, %s287
        $region36: #{transformer_decoder.19} parent=31 // pred_fallthru
          _
        // Predicated region
        $region37: #{transformer_decoder.19} parent=31 // pred_check
          %p289 = pneg %p75
        $region38: #{transformer_decoder.19} parent=31 // pred_check_branch
          %291 = sbr.rel (%p289) target = $region40
        $region39: #{transformer_decoder.19} parent=31 // pred_region
          %p292 = scmp.lt.s32.totalorder %s22, 1
          %s293 = scalar_select %p292, %s22, 1
          %s294 = smul.addr %s293, 4
          %s295 = scalar_lea.vmem %s1, %s294
        $region40: #{transformer_decoder.19} parent=31 // pred_fallthru
          _
        // Predicated region
        $region41: #{transformer_decoder.19} parent=31 // pred_check
          %p296 = pneg %p103
        $region42: #{transformer_decoder.19} parent=31 // pred_check_branch
          %298 = sbr.rel (%p296) target = $region44
        $region43: #{transformer_decoder.19} parent=31 // pred_region
          %p299 = scmp.lt.s32.totalorder %s22, 1
          %s300 = scalar_select %p299, %s22, 1
          %p301 = scmp.lt.s32.totalorder %s23, 0
          %s302 = scalar_select %p301, %s23, 0
          %s303 = sadd.s32 %s302, %s300
          %s304 = smul.addr %s303, 8
          %s305 = scalar_lea.vmem %s2, %s304
        $region44: #{transformer_decoder.19} parent=31 // pred_fallthru
          _
      $region32: #{transformer_decoder.19} parent=5 // pred_fallthru
        _
      %p306 = scmp.le.s32.totalorder 1, %s15
      %p307 = scmp.lt.s32.totalorder %s15, 3
      %p308 = pnand %p306, %p307
      %p309 = pneg %p308
      // Predicated region
      $region45: #{transformer_decoder.19} parent=5 // pred_check
        _
      $region46: #{transformer_decoder.19} parent=5 // pred_check_branch
        %311 = sbr.rel (%p308) target = $region48
      $region47: #{transformer_decoder.19} parent=5 // pred_region
        %s312 = ssub.s32 %s15, 1
        // Predicated region
        $region49: #{transformer_decoder.19} parent=47 // pred_check
          %p313 = pneg %p151
        $region50: #{transformer_decoder.19} parent=47 // pred_check_branch
          %315 = sbr.rel (%p313) target = $region52
        $region51: #{transformer_decoder.19} parent=47 // pred_region
          %317 = dma.done [#allocation3], 16
        $region52: #{transformer_decoder.19} parent=47 // pred_fallthru
          _
        // Predicated region
        $region53: #{transformer_decoder.19} parent=47 // pred_check
          %p318 = pneg %p172
        $region54: #{transformer_decoder.19} parent=47 // pred_check_branch
          %320 = sbr.rel (%p318) target = $region56
        $region55: #{transformer_decoder.19} parent=47 // pred_region
          %322 = dma.done [#allocation5], 16
        $region56: #{transformer_decoder.19} parent=47 // pred_fallthru
          _
        // Predicated region
        $region57: #{transformer_decoder.19} parent=47 // pred_check
          %p323 = pneg %p193
        $region58: #{transformer_decoder.19} parent=47 // pred_check_branch
          %325 = sbr.rel (%p323) target = $region60
        $region59: #{transformer_decoder.19} parent=47 // pred_region
          %327 = dma.done [#allocation5], 16
        $region60: #{transformer_decoder.19} parent=47 // pred_fallthru
          _
        %p328 = scmp.lt.s32.totalorder %s24, 1
        %s329 = scalar_select %p328, %s24, 1
        %p330 = scmp.lt.s32.totalorder %s25, 0
        %s331 = scalar_select %p330, %s25, 0
        %s332 = sadd.s32 %s331, %s329
        %s333 = smul.addr %s332, 4
        %s334 = scalar_lea.vmem %s0, %s333
        %p335 = pneg %p55
        %p336 = pneg %p52
        %p337 = scmp.lt.s32.totalorder %s24, 1
        %s338 = scalar_select %p337, %s24, 1
        %s339 = smul.addr %s338, 4
        %s340 = scalar_lea.vmem %s1, %s339
        %p341 = pneg %p81
        %p342 = pneg %p78
        %p343 = scmp.lt.s32.totalorder %s24, 1
        %s344 = scalar_select %p343, %s24, 1
        %p345 = scmp.lt.s32.totalorder %s25, 0
        %s346 = scalar_select %p345, %s25, 0
        %s347 = sadd.s32 %s346, %s344
        %s348 = smul.addr %s347, 8
        %s349 = scalar_lea.vmem %s2, %s348
        %p350 = pneg %p109
        %p351 = pneg %p106
        %p352 = pneg %p130
        %p353 = pneg %p127
        %p354 = pneg %p151
        %p355 = pneg %p148
        %p356 = pneg %p172
        %p357 = pneg %p169
        %p358 = pneg %p193
        %p359 = pneg %p190
        %p360 = pneg %p221
        %p361 = pneg %p218
        %p362 = scmp.lt.s32.totalorder %s24, 1
        %s363 = scalar_select %p362, %s24, 1
        %p364 = scmp.lt.s32.totalorder %s25, 0
        %s365 = scalar_select %p364, %s25, 0
        %s366 = sadd.s32 %s365, %s363
        %s367 = smul.addr %s366, 8
        %s368 = scalar_lea.vmem %s7, %s367
        %p369 = scmp.lt.s32.totalorder %s24, 1
        %s370 = scalar_select %p369, %s24, 1
        %p371 = scmp.lt.s32.totalorder %s25, 0
        %s372 = scalar_select %p371, %s25, 0
        %s373 = sadd.s32 %s372, %s370
        %s374 = smul.addr %s373, 4
        %s375 = scalar_lea.vmem %s0, %s374
        %p376 = scmp.lt.s32.totalorder %s24, 1
        %s377 = scalar_select %p376, %s24, 1
        %s378 = smul.addr %s377, 4
        %s379 = scalar_lea.vmem %s1, %s378
        %p380 = scmp.lt.s32.totalorder %s24, 1
        %s381 = scalar_select %p380, %s24, 1
        %p382 = scmp.lt.s32.totalorder %s25, 0
        %s383 = scalar_select %p382, %s25, 0
        %s384 = sadd.s32 %s383, %s381
        %s385 = smul.addr %s384, 8
        %s386 = scalar_lea.vmem %s2, %s385
        %p387 = scmp.lt.s32.totalorder %s24, 1
        %s388 = scalar_select %p387, %s24, 1
        %p389 = scmp.lt.s32.totalorder %s25, 0
        %s390 = scalar_select %p389, %s25, 0
        %s391 = sadd.s32 %s390, %s388
        %s392 = smul.addr %s391, 8
        %s393 = scalar_lea.vmem %s7, %s392
        %v395 = vld [vmem:[%s375] sm:$0xf]
        %v396 = vld [vmem:[%s379] sm:$0xf]
        %s397 = smul.u32 %s25, 8
        %v398 = vlaneseq
        %v399 = vshrl.u32 %v398, 7
        %v400 = vstv %s397
        %v401 = vadd.s32 %v400, %v399
        %v402 = vlaneseq
        %v403 = vand.u32 %v402, 127
        %vm404 = vcmp.le.s32.totalorder %v403, %v401
        %vm405 = vcmask 64512
        %v407 = vsel %vm405, %v395, 0
        %v410 = vsel %vm405, %v396, 0
        %412 = vmatpush.bf16.xpose.msra.mxu0 0
        %413 = vmatpush.bf16.xpose.msra.mxu0 0
        %414 = vmatpush.bf16.xpose.msra.mxu0 0
        %415 = vmatpush.bf16.xpose.msra.mxu0 0
        %416 = vmatpush.bf16.xpose.msra.mxu0 0
        %417 = vmatpush.bf16.xpose.msra.mxu0 0
        %418 = vmatpush.bf16.xpose.msra.mxu0 0
        %419 = vmatpush.bf16.xpose.msra.mxu0 %v410
        %420 = vmatmul.bf16.gmra.mxu0 %v407
        %v421 = vpop.f32.mrf.mxu0
        %v422 = vadd.f32 0.0, %v421
        %v423 = vpop.f32.mrf.mxu0
        %424 = vdwg.mxu0
        %v425 = vmul.f32 %v422, 0.35355338
        %v426 = vsel %vm404, %v425, -1e+30
        %v427 = vsel %vm405, %v426, -inf
        %428 = vmax.xlane.f32.xlu0 %v427
        %v429 = vpop.xlane.xlu0 %428
        %v430 = vsub.f32 %v426, %v429
        %v431 = vmul.f32 %v430, 1.442695
        %v432 = vpow.pop %v431
        %v433 = vsel %vm405, %v432, 0.0
        %434 = vadd.xlane.f32.xlu0 %v433
        %v435 = vpop.xlane.xlu0 %434
        %v436 = vpack.c.bf16 %v432, %v432
        %v438 = vunpack.c.l.b16 %v396
        %v439 = vpack.c.b16 %v438, %v438
        %440 = vrot.lane.b32.xlu0 %v439, 96
        %v441 = vpop.permute.xlu0 %440
        %v443 = vsel %vm405, %v436, 0
        %vm445 = vcmask 1043456
        %v447 = vsel %vm445, %v441, 0
        %449 = vmatpush.bf16.msra.mxu0 0
        %450 = vmatpush.bf16.msra.mxu0 0
        %451 = vmatpush.bf16.msra.mxu0 0
        %452 = vmatpush.bf16.msra.mxu0 0
        %453 = vmatpush.bf16.msra.mxu0 0
        %454 = vmatpush.bf16.msra.mxu0 0
        %455 = vmatpush.bf16.msra.mxu0 0
        %456 = vmatpush.bf16.msra.mxu0 %v447
        %457 = vmatmul.bf16.gmra.mxu0 %v443
        %v458 = vpop.f32.mrf.mxu0
        %v459 = vadd.f32 0.0, %v458
        %v460 = vpop.f32.mrf.mxu0
        %461 = vdwg.mxu0
        %v462 = vrcp.pop %v435
        %v463 = vmul.f32 %v435, %v462
        %v464 = vsub.f32 1.0, %v463
        %v465 = vmul.f32 %v462, %v464
        %v466 = vadd.f32 %v462, %v465
        %vm467 = vweird.f32 %v435
        %vm468 = vweird.f32 %v462
        %vm469 = vmor %vm467, %vm468
        %v470 = vsel %vm469, %v462, %v466
        %v471 = vand.u32 2147483647, %v435
        %vm472 = vcmp.eq.f32.partialorder %v471, 8.507059e+37
        %v473 = vand.u32 %v435, 2147483648
        %v474 = vor.u32 1.1754944e-38, %v473
        %v475 = vsel %vm472, %v474, %v470
        %v476 = vmul.f32 %v459, %v475
        %v477 = vpack.c.bf16 %v476, %v476
        %v478 = vld [vmem:[%s3] sm:$0xf]
        %v480 = vunpack.c.l.b16 %v395
        %v481 = vpack.c.b16 %v480, %v480
        %482 = vrot.lane.b32.xlu0 %v481, 120
        %v483 = vpop.permute.xlu0 %482
        %484 = vrot.lane.b32.xlu0 %v439, 120
        %v485 = vpop.permute.xlu0 %484
        %v487 = vsel %vm405, %v483, 0
        %v490 = vsel %vm405, %v485, 0
        %492 = vmatpush.bf16.xpose.msra.mxu0 0
        %493 = vmatpush.bf16.xpose.msra.mxu0 0
        %494 = vmatpush.bf16.xpose.msra.mxu0 0
        %495 = vmatpush.bf16.xpose.msra.mxu0 0
        %496 = vmatpush.bf16.xpose.msra.mxu0 0
        %497 = vmatpush.bf16.xpose.msra.mxu0 0
        %498 = vmatpush.bf16.xpose.msra.mxu0 0
        %499 = vmatpush.bf16.xpose.msra.mxu0 %v490
        %500 = vmatmul.bf16.gmra.mxu0 %v487
        %v501 = vpop.f32.mrf.mxu0
        %v502 = vadd.f32 0.0, %v501
        %v503 = vpop.f32.mrf.mxu0
        %504 = vdwg.mxu0
        %v505 = vmul.f32 %v502, 0.35355338
        %v506 = vsel %vm404, %v505, -1e+30
        %v507 = vsel %vm405, %v506, -inf
        %508 = vmax.xlane.f32.xlu0 %v507
        %v509 = vpop.xlane.xlu0 %508
        %v510 = vsub.f32 %v506, %v509
        %v511 = vmul.f32 %v510, 1.442695
        %v512 = vpow.pop %v511
        %v513 = vsel %vm405, %v512, 0.0
        %514 = vadd.xlane.f32.xlu0 %v513
        %v515 = vpop.xlane.xlu0 %514
        %v516 = vpack.c.bf16 %v512, %v512
        %517 = vrot.lane.b32.xlu0 %v439, 88
        %v518 = vpop.permute.xlu0 %517
        %v520 = vsel %vm405, %v516, 0
        %v523 = vsel %vm445, %v518, 0
        %525 = vmatpush.bf16.msra.mxu0 0
        %526 = vmatpush.bf16.msra.mxu0 0
        %527 = vmatpush.bf16.msra.mxu0 0
        %528 = vmatpush.bf16.msra.mxu0 0
        %529 = vmatpush.bf16.msra.mxu0 0
        %530 = vmatpush.bf16.msra.mxu0 0
        %531 = vmatpush.bf16.msra.mxu0 0
        %532 = vmatpush.bf16.msra.mxu0 %v523
        %533 = vmatmul.bf16.gmra.mxu0 %v520
        %v534 = vpop.f32.mrf.mxu0
        %v535 = vadd.f32 0.0, %v534
        %v536 = vpop.f32.mrf.mxu0
        %537 = vdwg.mxu0
        %v538 = vrcp.pop %v515
        %v539 = vmul.f32 %v515, %v538
        %v540 = vsub.f32 1.0, %v539
        %v541 = vmul.f32 %v538, %v540
        %v542 = vadd.f32 %v538, %v541
        %vm543 = vweird.f32 %v515
        %vm544 = vweird.f32 %v538
        %vm545 = vmor %vm543, %vm544
        %v546 = vsel %vm545, %v538, %v542
        %v547 = vand.u32 2147483647, %v515
        %vm548 = vcmp.eq.f32.partialorder %v547, 8.507059e+37
        %v549 = vand.u32 %v515, 2147483648
        %v550 = vor.u32 1.1754944e-38, %v549
        %v551 = vsel %vm548, %v550, %v546
        %v552 = vmul.f32 %v535, %v551
        %v553 = vpack.c.bf16 %v552, %v552
        %v554 = vld [vmem:[%s3 + $0x4] sm:$0xf]
        %v556 = vsel %vm405, %v553, 0
        %v559 = vsel %vm445, %v554, 0
        %561 = vmatpush.bf16.msra.mxu0 0
        %562 = vmatpush.bf16.msra.mxu0 0
        %563 = vmatpush.bf16.msra.mxu0 0
        %564 = vmatpush.bf16.msra.mxu0 0
        %565 = vmatpush.bf16.msra.mxu0 0
        %566 = vmatpush.bf16.msra.mxu0 0
        %567 = vmatpush.bf16.msra.mxu0 0
        %568 = vmatpush.bf16.msra.mxu0 %v559
        %569 = vmatmul.bf16.gmra.mxu0 %v556
        %v570 = vpop.f32.mrf.mxu0
        %v571 = vadd.f32 0.0, %v570
        %v572 = vpop.f32.mrf.mxu0
        %573 = vdwg.mxu0
        %v575 = vsel %vm405, %v477, 0
        %v578 = vsel %vm445, %v478, 0
        %580 = vmatpush.bf16.msra.mxu0 0
        %581 = vmatpush.bf16.msra.mxu0 0
        %582 = vmatpush.bf16.msra.mxu0 0
        %583 = vmatpush.bf16.msra.mxu0 0
        %584 = vmatpush.bf16.msra.mxu0 0
        %585 = vmatpush.bf16.msra.mxu0 0
        %586 = vmatpush.bf16.msra.mxu0 0
        %587 = vmatpush.bf16.msra.mxu0 %v578
        %588 = vmatmul.bf16.gmra.mxu0 %v575
        %v589 = vpop.f32.mrf.mxu0
        %v590 = vadd.f32 %v571, %v589
        %v591 = vpop.f32.mrf.mxu0
        %592 = vdwg.mxu0
        %593 = vrot.lane.b32.xlu0 %v481, 112
        %v594 = vpop.permute.xlu0 %593
        %595 = vrot.lane.b32.xlu0 %v439, 112
        %v596 = vpop.permute.xlu0 %595
        %v598 = vsel %vm405, %v594, 0
        %v601 = vsel %vm405, %v596, 0
        %603 = vmatpush.bf16.xpose.msra.mxu0 0
        %604 = vmatpush.bf16.xpose.msra.mxu0 0
        %605 = vmatpush.bf16.xpose.msra.mxu0 0
        %606 = vmatpush.bf16.xpose.msra.mxu0 0
        %607 = vmatpush.bf16.xpose.msra.mxu0 0
        %608 = vmatpush.bf16.xpose.msra.mxu0 0
        %609 = vmatpush.bf16.xpose.msra.mxu0 0
        %610 = vmatpush.bf16.xpose.msra.mxu0 %v601
        %611 = vmatmul.bf16.gmra.mxu0 %v598
        %v612 = vpop.f32.mrf.mxu0
        %v613 = vadd.f32 0.0, %v612
        %v614 = vpop.f32.mrf.mxu0
        %615 = vdwg.mxu0
        %v616 = vmul.f32 %v613, 0.35355338
        %v617 = vsel %vm404, %v616, -1e+30
        %v618 = vsel %vm405, %v617, -inf
        %619 = vmax.xlane.f32.xlu0 %v618
        %v620 = vpop.xlane.xlu0 %619
        %v621 = vsub.f32 %v617, %v620
        %v622 = vmul.f32 %v621, 1.442695
        %v623 = vpow.pop %v622
        %v624 = vsel %vm405, %v623, 0.0
        %625 = vadd.xlane.f32.xlu0 %v624
        %v626 = vpop.xlane.xlu0 %625
        %v627 = vpack.c.bf16 %v623, %v623
        %628 = vrot.lane.b32.xlu0 %v439, 80
        %v629 = vpop.permute.xlu0 %628
        %v631 = vsel %vm405, %v627, 0
        %v634 = vsel %vm445, %v629, 0
        %636 = vmatpush.bf16.msra.mxu0 0
        %637 = vmatpush.bf16.msra.mxu0 0
        %638 = vmatpush.bf16.msra.mxu0 0
        %639 = vmatpush.bf16.msra.mxu0 0
        %640 = vmatpush.bf16.msra.mxu0 0
        %641 = vmatpush.bf16.msra.mxu0 0
        %642 = vmatpush.bf16.msra.mxu0 0
        %643 = vmatpush.bf16.msra.mxu0 %v634
        %644 = vmatmul.bf16.gmra.mxu0 %v631
        %v645 = vpop.f32.mrf.mxu0
        %v646 = vadd.f32 0.0, %v645
        %v647 = vpop.f32.mrf.mxu0
        %648 = vdwg.mxu0
        %v649 = vrcp.pop %v626
        %v650 = vmul.f32 %v626, %v649
        %v651 = vsub.f32 1.0, %v650
        %v652 = vmul.f32 %v649, %v651
        %v653 = vadd.f32 %v649, %v652
        %vm654 = vweird.f32 %v626
        %vm655 = vweird.f32 %v649
        %vm656 = vmor %vm654, %vm655
        %v657 = vsel %vm656, %v649, %v653
        %v658 = vand.u32 2147483647, %v626
        %vm659 = vcmp.eq.f32.partialorder %v658, 8.507059e+37
        %v660 = vand.u32 %v626, 2147483648
        %v661 = vor.u32 1.1754944e-38, %v660
        %v662 = vsel %vm659, %v661, %v657
        %v663 = vmul.f32 %v646, %v662
        %v664 = vpack.c.bf16 %v663, %v663
        %v665 = vld [vmem:[%s3 + $0x8] sm:$0xf]
        %v667 = vsel %vm405, %v664, 0
        %v670 = vsel %vm445, %v665, 0
        %672 = vmatpush.bf16.msra.mxu0 0
        %673 = vmatpush.bf16.msra.mxu0 0
        %674 = vmatpush.bf16.msra.mxu0 0
        %675 = vmatpush.bf16.msra.mxu0 0
        %676 = vmatpush.bf16.msra.mxu0 0
        %677 = vmatpush.bf16.msra.mxu0 0
        %678 = vmatpush.bf16.msra.mxu0 0
        %679 = vmatpush.bf16.msra.mxu0 %v670
        %680 = vmatmul.bf16.gmra.mxu0 %v667
        %v681 = vpop.f32.mrf.mxu0
        %v682 = vadd.f32 0.0, %v681
        %v683 = vpop.f32.mrf.mxu0
        %684 = vdwg.mxu0
        %v685 = vadd.f32 %v590, %v682
        %686 = vrot.lane.b32.xlu0 %v481, 104
        %v687 = vpop.permute.xlu0 %686
        %688 = vrot.lane.b32.xlu0 %v439, 104
        %v689 = vpop.permute.xlu0 %688
        %v691 = vsel %vm405, %v687, 0
        %v694 = vsel %vm405, %v689, 0
        %696 = vmatpush.bf16.xpose.msra.mxu0 0
        %697 = vmatpush.bf16.xpose.msra.mxu0 0
        %698 = vmatpush.bf16.xpose.msra.mxu0 0
        %699 = vmatpush.bf16.xpose.msra.mxu0 0
        %700 = vmatpush.bf16.xpose.msra.mxu0 0
        %701 = vmatpush.bf16.xpose.msra.mxu0 0
        %702 = vmatpush.bf16.xpose.msra.mxu0 0
        %703 = vmatpush.bf16.xpose.msra.mxu0 %v694
        %704 = vmatmul.bf16.gmra.mxu0 %v691
        %v705 = vpop.f32.mrf.mxu0
        %v706 = vadd.f32 0.0, %v705
        %v707 = vpop.f32.mrf.mxu0
        %708 = vdwg.mxu0
        %v709 = vmul.f32 %v706, 0.35355338
        %v710 = vsel %vm404, %v709, -1e+30
        %v711 = vsel %vm405, %v710, -inf
        %712 = vmax.xlane.f32.xlu0 %v711
        %v713 = vpop.xlane.xlu0 %712
        %v714 = vsub.f32 %v710, %v713
        %v715 = vmul.f32 %v714, 1.442695
        %v716 = vpow.pop %v715
        %v717 = vsel %vm405, %v716, 0.0
        %718 = vadd.xlane.f32.xlu0 %v717
        %v719 = vpop.xlane.xlu0 %718
        %v720 = vpack.c.bf16 %v716, %v716
        %721 = vrot.lane.b32.xlu0 %v439, 72
        %v722 = vpop.permute.xlu0 %721
        %v724 = vsel %vm405, %v720, 0
        %v727 = vsel %vm445, %v722, 0
        %729 = vmatpush.bf16.msra.mxu0 0
        %730 = vmatpush.bf16.msra.mxu0 0
        %731 = vmatpush.bf16.msra.mxu0 0
        %732 = vmatpush.bf16.msra.mxu0 0
        %733 = vmatpush.bf16.msra.mxu0 0
        %734 = vmatpush.bf16.msra.mxu0 0
        %735 = vmatpush.bf16.msra.mxu0 0
        %736 = vmatpush.bf16.msra.mxu0 %v727
        %737 = vmatmul.bf16.gmra.mxu0 %v724
        %v738 = vpop.f32.mrf.mxu0
        %v739 = vadd.f32 0.0, %v738
        %v740 = vpop.f32.mrf.mxu0
        %741 = vdwg.mxu0
        %v742 = vrcp.pop %v719
        %v743 = vmul.f32 %v719, %v742
        %v744 = vsub.f32 1.0, %v743
        %v745 = vmul.f32 %v742, %v744
        %v746 = vadd.f32 %v742, %v745
        %vm747 = vweird.f32 %v719
        %vm748 = vweird.f32 %v742
        %vm749 = vmor %vm747, %vm748
        %v750 = vsel %vm749, %v742, %v746
        %v751 = vand.u32 2147483647, %v719
        %vm752 = vcmp.eq.f32.partialorder %v751, 8.507059e+37
        %v753 = vand.u32 %v719, 2147483648
        %v754 = vor.u32 1.1754944e-38, %v753
        %v755 = vsel %vm752, %v754, %v750
        %v756 = vmul.f32 %v739, %v755
        %v757 = vpack.c.bf16 %v756, %v756
        %v758 = vld [vmem:[%s3 + $0xc] sm:$0xf]
        %v760 = vsel %vm405, %v757, 0
        %v763 = vsel %vm445, %v758, 0
        %765 = vmatpush.bf16.msra.mxu0 0
        %766 = vmatpush.bf16.msra.mxu0 0
        %767 = vmatpush.bf16.msra.mxu0 0
        %768 = vmatpush.bf16.msra.mxu0 0
        %769 = vmatpush.bf16.msra.mxu0 0
        %770 = vmatpush.bf16.msra.mxu0 0
        %771 = vmatpush.bf16.msra.mxu0 0
        %772 = vmatpush.bf16.msra.mxu0 %v763
        %773 = vmatmul.bf16.gmra.mxu0 %v760
        %v774 = vpop.f32.mrf.mxu0
        %v775 = vadd.f32 0.0, %v774
        %v776 = vpop.f32.mrf.mxu0
        %777 = vdwg.mxu0
        %v778 = vadd.f32 %v685, %v775
        %v779 = vld [vmem:[%s386] sm:$0xff]
        %v780 = vadd.f32 %v779, %v778
        %v781 = vld [vmem:[#allocation2] sm:$0x1]
        %v783 = vperm.slane %v781, 0
        %v785 = vadd.f32 %v780, %v783
        %vm786 = vcmask 261120
        %v787 = vsel %vm786, %v785, 0.0
        %788 = vadd.xlane.f32.xlu0 %v787
        %v789 = vpop.xlane.xlu0 %788
        %v790 = vrcp.pop 32.0
        %v791 = vmul.f32 32.0, %v790
        %v792 = vsub.f32 1.0, %v791
        %v793 = vmul.f32 %v790, %v792
        %v794 = vadd.f32 %v790, %v793
        %vm795 = vweird.f32 %v790
        %v796 = vsel %vm795, %v790, %v794
        %v797 = vmul.f32 %v789, %v796
        %v798 = vsub.f32 %v785, %v797
        %v799 = vmul.f32 %v798, %v798
        %v800 = vsel %vm786, %v799, 0.0
        %801 = vadd.xlane.f32.xlu0 %v800
        %v802 = vpop.xlane.xlu0 %801
        %v803 = vmul.f32 %v802, %v796
        %v804 = vadd.f32 %v803, 1e-05
        %v805 = vrsqrt.pop %v804
        %v806 = vmul.f32 %v805, %v804
        %v807 = vmul.f32 %v806, %v805
        %v808 = vmul.f32 0.5, %v807
        %v809 = vsub.f32 1.5, %v808
        %v810 = vmul.f32 %v805, %v809
        %vm811 = vweird.f32 %v804
        %vm812 = vweird.f32 %v805
        %vm813 = vmor %vm811, %vm812
        %v814 = vsel %vm813, %v805, %v810
        %v815 = vmul.f32 %v798, %v814
        %v816 = vld [vmem:[#allocation4] sm:$0x1]
        %v818 = vperm.slane %v816, 0
        %v820 = vmul.f32 %v815, %v818
        %v821 = vld [vmem:[#allocation6] sm:$0x1]
        %v823 = vperm.slane %v821, 0
        %v825 = vadd.f32 %v820, %v823
        %826 = vst.msk [vmem:[%s393] sm:$0xff] %vm786, %v825
        %p827 = scmp.lt.s32.totalorder %s24, 1
        %s828 = scalar_select %p827, %s24, 1
        %p829 = scmp.lt.s32.totalorder %s25, 0
        %s830 = scalar_select %p829, %s25, 0
        %s831 = sadd.s32 %s830, %s828
        %s832 = smul.addr %s831, 8
        %s833 = scalar_lea.vmem %s7, %s832
        // Predicated region
        $region61: #{transformer_decoder.19} parent=47 // pred_check
          %p834 = pneg %p218
        $region62: #{transformer_decoder.19} parent=47 // pred_check_branch
          %836 = sbr.rel (%p834) target = $region64
        $region63: #{transformer_decoder.19} parent=47 // pred_region
          _
        $region64: #{transformer_decoder.19} parent=47 // pred_fallthru
          _
      $region48: #{transformer_decoder.19} parent=5 // pred_fallthru
        _
      %p837 = scmp.le.s32.totalorder 2, %s15
      // Predicated region
      $region65: #{transformer_decoder.19} parent=5 // pred_check
        %p838 = pneg %p837
      $region66: #{transformer_decoder.19} parent=5 // pred_check_branch
        %840 = sbr.rel (%p838) target = $region68
      $region67: #{transformer_decoder.19} parent=5 // pred_region
        %s841 = ssub.s32 %s15, 2
        // Predicated region
        $region69: #{transformer_decoder.19} parent=67 // pred_check
          %p842 = pneg %p224
        $region70: #{transformer_decoder.19} parent=67 // pred_check_branch
          %844 = sbr.rel (%p842) target = $region72
        $region71: #{transformer_decoder.19} parent=67 // pred_region
          %p845 = scmp.lt.s32.totalorder %s26, 1
          %s846 = scalar_select %p845, %s26, 1
          %p847 = scmp.lt.s32.totalorder %s27, 0
          %s848 = scalar_select %p847, %s27, 0
          %s849 = sadd.s32 %s848, %s846
          %s850 = smul.addr %s849, 8
          %s851 = scalar_lea.vmem %s7, %s850
        $region72: #{transformer_decoder.19} parent=67 // pred_fallthru
          _
      $region68: #{transformer_decoder.19} parent=5 // pred_fallthru
        _
    $region6: #{transformer_decoder.19} parent=1 // loop_footer
      %s19 = sadd.s32 1, %s15
    $region7: #{transformer_decoder.19} parent=1 // loop_footer_branch
      %14 = sbr.rel target = $region3
    $region8: #{transformer_decoder.19} parent=1 // loop_exit
      _
    %852 = vsyncpa [#allocation3], 1
    %s853 = scalar_lea.sflag [#allocation3], 1
    %854 = vsyncpa %s853, 1
    %855 = vsyncpa [#allocation5], 1

// kernel: transformer_decoder.20
$region0: #{transformer_decoder.20}
  #allocation0 [shape = 'u32[]', space=smem, size = 0x4, offset = 0x4, fixed_abs, tag = 'smem constant byte address 0x4 - core index']
  #allocation1 [shape = 'u32[72,128]{1,0:T(1,128)}', space=vmem, size = 0x9000, scoped, tag = 'internal scratch']
  %s0 = inlined_call_operand.vmem [shape: f32[16,32], index: 0, kind: input, shape index: {}]
  %s1 = inlined_call_operand.vmem [shape: bf16[32,32], index: 1, kind: input, shape index: {}]
  %s2 = inlined_call_operand.hbm [shape: f32[1,32], index: 2, kind: input, shape index: {}]
  %s3 = inlined_call_operand.vmem [shape: bf16[16,32], index: 3, kind: output, shape index: {}]
  %s4 = sld [smem:[#allocation0]]
  $region26: #{transformer_decoder.20} parent=0
    _
  %s6 = ssub.s32 1, %s4
  %s7 = scalar_select 0, %s6, %s4
  $region1: #{transformer_decoder.20} parent=0
    #allocation2 [shape = 'u8[512]{0}', space=vmem, size = 0x400, scoped, tag = 'input window, operand 2, single buffered']
    #allocation3 [shape = 's32[1]{0}', space=sflag, size = 0x4, scoped, tag = 'scoped memory for transformer_decoder.20']
    %8 = vsyncpa [#allocation3], 0
    // Predicated region
    $region2: #{transformer_decoder.20} parent=1 // pred_check
      _
    $region3: #{transformer_decoder.20} parent=1 // pred_check_branch
      %10 = sbr.rel (0) target = $region5
    $region4: #{transformer_decoder.20} parent=1 // pred_region
      _
    $region5: #{transformer_decoder.20} parent=1 // pred_fallthru
      _
    // Predicated region
    $region6: #{transformer_decoder.20} parent=1 // pred_check
      _
    $region7: #{transformer_decoder.20} parent=1 // pred_check_branch
      %12 = sbr.rel (0) target = $region9
    $region8: #{transformer_decoder.20} parent=1 // pred_region
      _
    $region9: #{transformer_decoder.20} parent=1 // pred_fallthru
      _
    // Predicated region
    $region10: #{transformer_decoder.20} parent=1 // pred_check
      _
    $region11: #{transformer_decoder.20} parent=1 // pred_check_branch
      %14 = sbr.rel (0) target = $region13
    $region12: #{transformer_decoder.20} parent=1 // pred_region
      %16 = vsyncadd [#allocation3], 0
      %s18 = sshll.u32 %s2, 4
      %s19 = int_to_ptr.hbm [resolvable:$true] %s18
      %s20 = sshll.u32 [#allocation2], 4
      %s21 = int_to_ptr.vmem [resolvable:$true] %s20
      %23 = dma.hbm_to_vmem [thread:$0]  %s19, 16, %s21, [#allocation3]
    $region13: #{transformer_decoder.20} parent=1 // pred_fallthru
      _
    // Predicated region
    $region14: #{transformer_decoder.20} parent=1 // pred_check
      _
    $region15: #{transformer_decoder.20} parent=1 // pred_check_branch
      %25 = sbr.rel (0) target = $region17
    $region16: #{transformer_decoder.20} parent=1 // pred_region
      %27 = dma.done [#allocation3], 16
    $region17: #{transformer_decoder.20} parent=1 // pred_fallthru
      _
    %v29 = vld [vmem:[%s0] sm:$0xff]
    %v30 = vld [vmem:[%s0 + $0x8] sm:$0xff]
    %v31 = vpack.c.bf16 %v30, %v29
    %v32 = vld [vmem:[%s1] sm:$0xf]
    %v33 = vld [vmem:[%s1 + $0x4] sm:$0xf]
    %v34 = vld [vmem:[%s1 + $0x8] sm:$0xf]
    %v35 = vld [vmem:[%s1 + $0xc] sm:$0xf]
    %v36 = vld [vmem:[#allocation2] sm:$0x1]
    %v38 = vperm.slane %v36, 0
    %v44 = vunpack.c.l.b16 %v32
    %v45 = vunpack.c.l.b16 %v33
    %v46 = vunpack.c.l.b16 %v34
    %v47 = vunpack.c.l.b16 %v35
    %v48 = vpack.c.b16 %v45, %v44
    %v49 = vpack.c.b16 %v47, %v46
    %vm52 = vcmask 261120
    %v54 = vsel %vm52, %v31, 0
    %56 = vmatpush.bf16.msra.mxu0 0
    %57 = vmatpush.bf16.msra.mxu0 0
    %58 = vmatpush.bf16.msra.mxu0 0
    %59 = vmatpush.bf16.msra.mxu0 0
    %60 = vmatpush.bf16.msra.mxu0 0
    %61 = vmatpush.bf16.msra.mxu0 0
    %62 = vmatpush.bf16.msra.mxu0 %v49
    %63 = vmatpush.bf16.msra.mxu0 %v48
    %64 = vmatmul.bf16.gmra.mxu0 %v54
    %v65 = vpop.f32.mrf.mxu0
    %v66 = vadd.f32 %v38, %v65
    %v67 = vpop.f32.mrf.mxu0
    %v68 = vadd.f32 %v38, %v67
    %69 = vdwg.mxu0
    %v70 = vpack.c.bf16 %v66, %v66
    %v71 = vpack.c.bf16 %v68, %v68
    %vm72 = vcmask 257024
    %73 = vst.msk [vmem:[%s3] sm:$0xf] %vm72, %v70
    %74 = vst.msk [vmem:[%s3 + $0x4] sm:$0xf] %vm72, %v71
    // Predicated region
    $region18: #{transformer_decoder.20} parent=1 // pred_check
      _
    $region19: #{transformer_decoder.20} parent=1 // pred_check_branch
      %76 = sbr.rel (0) target = $region21
    $region20: #{transformer_decoder.20} parent=1 // pred_region
      _
    $region21: #{transformer_decoder.20} parent=1 // pred_fallthru
      _
    // Predicated region
    $region22: #{transformer_decoder.20} parent=1 // pred_check
      _
    $region23: #{transformer_decoder.20} parent=1 // pred_check_branch
      %78 = sbr.rel (0) target = $region25
    $region24: #{transformer_decoder.20} parent=1 // pred_region
      _
    $region25: #{transformer_decoder.20} parent=1 // pred_fallthru
      _
    %79 = vsyncpa [#allocation3], 1

// kernel: transformer_decoder.23
$region0: #{transformer_decoder.23}
  #allocation0 [shape = 'u32[]', space=smem, size = 0x4, offset = 0x4, fixed_abs, tag = 'smem constant byte address 0x4 - core index']
  #allocation1 [shape = 'u32[72,128]{1,0:T(1,128)}', space=vmem, size = 0x9000, scoped, tag = 'internal scratch']
  %s0 = inlined_call_operand.vmem [shape: f32[16,32], index: 0, kind: input, shape index: {}]
  %s1 = inlined_call_operand.vmem [shape: bf16[32,64], index: 1, kind: input, shape index: {}]
  %s2 = inlined_call_operand.vmem [shape: f32[1,64], index: 2, kind: input, shape index: {}]
  %s3 = inlined_call_operand.vmem [shape: bf16[64,32], index: 3, kind: input, shape index: {}]
  %s4 = inlined_call_operand.vmem [shape: f32[1,32], index: 4, kind: input, shape index: {}]
  %s5 = inlined_call_operand.vmem [shape: f32[1,32], index: 5, kind: input, shape index: {}]
  %s6 = inlined_call_operand.vmem [shape: f32[1,32], index: 6, kind: input, shape index: {}]
  %s7 = inlined_call_operand.hbm [shape: f32[16,32], index: 7, kind: output, shape index: {}]
  %s8 = sld [smem:[#allocation0]]
  $region38: #{transformer_decoder.23} parent=0
    _
  %s10 = ssub.s32 1, %s8
  %s11 = scalar_select 0, %s10, %s8
  $region1: #{transformer_decoder.23} parent=0
    #allocation2 [shape = 'u8[8192]{0}', space=vmem, size = 0x2000, scoped, tag = 'output window, operand 0, single buffered']
    #allocation3 [shape = 's32[1]{0}', space=sflag, size = 0x4, scoped, tag = 'scoped memory for transformer_decoder.23']
    %12 = vsyncpa [#allocation3], 0
    // Predicated region
    $region2: #{transformer_decoder.23} parent=1 // pred_check
      _
    $region3: #{transformer_decoder.23} parent=1 // pred_check_branch
      %14 = sbr.rel (0) target = $region5
    $region4: #{transformer_decoder.23} parent=1 // pred_region
      _
    $region5: #{transformer_decoder.23} parent=1 // pred_fallthru
      _
    // Predicated region
    $region6: #{transformer_decoder.23} parent=1 // pred_check
      _
    $region7: #{transformer_decoder.23} parent=1 // pred_check_branch
      %16 = sbr.rel (0) target = $region9
    $region8: #{transformer_decoder.23} parent=1 // pred_region
      _
    $region9: #{transformer_decoder.23} parent=1 // pred_fallthru
      _
    // Predicated region
    $region10: #{transformer_decoder.23} parent=1 // pred_check
      _
    $region11: #{transformer_decoder.23} parent=1 // pred_check_branch
      %18 = sbr.rel (0) target = $region13
    $region12: #{transformer_decoder.23} parent=1 // pred_region
      _
    $region13: #{transformer_decoder.23} parent=1 // pred_fallthru
      _
    // Predicated region
    $region14: #{transformer_decoder.23} parent=1 // pred_check
      _
    $region15: #{transformer_decoder.23} parent=1 // pred_check_branch
      %20 = sbr.rel (0) target = $region17
    $region16: #{transformer_decoder.23} parent=1 // pred_region
      _
    $region17: #{transformer_decoder.23} parent=1 // pred_fallthru
      _
    // Predicated region
    $region18: #{transformer_decoder.23} parent=1 // pred_check
      _
    $region19: #{transformer_decoder.23} parent=1 // pred_check_branch
      %22 = sbr.rel (0) target = $region21
    $region20: #{transformer_decoder.23} parent=1 // pred_region
      _
    $region21: #{transformer_decoder.23} parent=1 // pred_fallthru
      _
    // Predicated region
    $region22: #{transformer_decoder.23} parent=1 // pred_check
      _
    $region23: #{transformer_decoder.23} parent=1 // pred_check_branch
      %24 = sbr.rel (0) target = $region25
    $region24: #{transformer_decoder.23} parent=1 // pred_region
      _
    $region25: #{transformer_decoder.23} parent=1 // pred_fallthru
      _
    // Predicated region
    $region26: #{transformer_decoder.23} parent=1 // pred_check
      _
    $region27: #{transformer_decoder.23} parent=1 // pred_check_branch
      %26 = sbr.rel (0) target = $region29
    $region28: #{transformer_decoder.23} parent=1 // pred_region
      _
    $region29: #{transformer_decoder.23} parent=1 // pred_fallthru
      _
    %v28 = vld [vmem:[%s0] sm:$0xff]
    %v29 = vld [vmem:[%s0 + $0x8] sm:$0xff]
    %v30 = vpack.c.bf16 %v29, %v28
    %v31 = vld [vmem:[%s1] sm:$0xf]
    %v32 = vld [vmem:[%s1 + $0x4] sm:$0xf]
    %v33 = vld [vmem:[%s1 + $0x8] sm:$0xf]
    %v34 = vld [vmem:[%s1 + $0xc] sm:$0xf]
    %v35 = vld [vmem:[%s2] sm:$0x1]
    %v37 = vperm.slane %v35, 0
    %v43 = vunpack.c.l.b16 %v31
    %v44 = vunpack.c.l.b16 %v32
    %v45 = vunpack.c.l.b16 %v33
    %v46 = vunpack.c.l.b16 %v34
    %v47 = vpack.c.b16 %v44, %v43
    %v48 = vpack.c.b16 %v46, %v45
    %vm51 = vcmask 261120
    %v53 = vsel %vm51, %v30, 0
    %55 = vmatpush.bf16.msra.mxu0 0
    %56 = vmatpush.bf16.msra.mxu0 0
    %57 = vmatpush.bf16.msra.mxu0 0
    %58 = vmatpush.bf16.msra.mxu0 0
    %59 = vmatpush.bf16.msra.mxu0 0
    %60 = vmatpush.bf16.msra.mxu0 0
    %61 = vmatpush.bf16.msra.mxu0 %v48
    %62 = vmatpush.bf16.msra.mxu0 %v47
    %63 = vmatmul.bf16.gmra.mxu0 %v53
    %v64 = vpop.f32.mrf.mxu0
    %v65 = vadd.f32 %v37, %v64
    %v66 = vpop.f32.mrf.mxu0
    %v67 = vadd.f32 %v37, %v66
    %68 = vdwg.mxu0
    %v69 = vmax.f32 %v65, 0.0
    %v70 = vmax.f32 %v67, 0.0
    %v71 = vpack.c.bf16 %v70, %v69
    %v72 = vld [vmem:[%s3] sm:$0xf]
    %v73 = vld [vmem:[%s3 + $0x4] sm:$0xf]
    %v74 = vld [vmem:[%s3 + $0x8] sm:$0xf]
    %v75 = vld [vmem:[%s3 + $0xc] sm:$0xf]
    %v76 = vld [vmem:[%s3 + $0x10] sm:$0xf]
    %v77 = vld [vmem:[%s3 + $0x14] sm:$0xf]
    %v78 = vld [vmem:[%s3 + $0x18] sm:$0xf]
    %v79 = vld [vmem:[%s3 + $0x1c] sm:$0xf]
    %v80 = vld [vmem:[%s4] sm:$0x1]
    %v82 = vperm.slane %v80, 0
    %v92 = vunpack.c.l.b16 %v72
    %v93 = vunpack.c.l.b16 %v73
    %v94 = vunpack.c.l.b16 %v74
    %v95 = vunpack.c.l.b16 %v75
    %v96 = vunpack.c.l.b16 %v76
    %v97 = vunpack.c.l.b16 %v77
    %v98 = vunpack.c.l.b16 %v78
    %v99 = vunpack.c.l.b16 %v79
    %v100 = vpack.c.b16 %v93, %v92
    %v101 = vpack.c.b16 %v95, %v94
    %v102 = vpack.c.b16 %v97, %v96
    %v103 = vpack.c.b16 %v99, %v98
    %vm108 = vcmask 523264
    %v110 = vsel %vm108, %v71, 0
    %112 = vmatpush.bf16.msra.mxu0 0
    %113 = vmatpush.bf16.msra.mxu0 0
    %114 = vmatpush.bf16.msra.mxu0 0
    %115 = vmatpush.bf16.msra.mxu0 0
    %116 = vmatpush.bf16.msra.mxu0 %v103
    %117 = vmatpush.bf16.msra.mxu0 %v102
    %118 = vmatpush.bf16.msra.mxu0 %v101
    %119 = vmatpush.bf16.msra.mxu0 %v100
    %120 = vmatmul.bf16.gmra.mxu0 %v110
    %v121 = vpop.f32.mrf.mxu0
    %v122 = vadd.f32 %v82, %v121
    %v123 = vpop.f32.mrf.mxu0
    %v124 = vadd.f32 %v82, %v123
    %125 = vdwg.mxu0
    %v126 = vadd.f32 %v28, %v122
    %v127 = vadd.f32 %v29, %v124
    %v128 = vsel %vm51, %v126, 0.0
    %129 = vadd.xlane.f32.xlu0 %v128
    %v130 = vpop.xlane.xlu0 %129
    %v131 = vsel %vm51, %v127, 0.0
    %132 = vadd.xlane.f32.xlu0 %v131
    %v133 = vpop.xlane.xlu0 %132
    %v134 = vrcp.pop 32.0
    %v135 = vmul.f32 32.0, %v134
    %v136 = vsub.f32 1.0, %v135
    %v137 = vmul.f32 %v134, %v136
    %v138 = vadd.f32 %v134, %v137
    %vm139 = vweird.f32 %v134
    %v140 = vsel %vm139, %v134, %v138
    %v141 = vmul.f32 %v130, %v140
    %v142 = vmul.f32 %v133, %v140
    %v143 = vsub.f32 %v126, %v141
    %v144 = vsub.f32 %v127, %v142
    %v145 = vmul.f32 %v143, %v143
    %v146 = vmul.f32 %v144, %v144
    %v147 = vsel %vm51, %v145, 0.0
    %148 = vadd.xlane.f32.xlu0 %v147
    %v149 = vpop.xlane.xlu0 %148
    %v150 = vsel %vm51, %v146, 0.0
    %151 = vadd.xlane.f32.xlu0 %v150
    %v152 = vpop.xlane.xlu0 %151
    %v153 = vmul.f32 %v149, %v140
    %v154 = vmul.f32 %v152, %v140
    %v155 = vadd.f32 %v153, 1e-05
    %v156 = vadd.f32 %v154, 1e-05
    %v157 = vrsqrt.pop %v155
    %v158 = vmul.f32 %v157, %v155
    %v159 = vmul.f32 %v158, %v157
    %v160 = vmul.f32 0.5, %v159
    %v161 = vsub.f32 1.5, %v160
    %v162 = vmul.f32 %v157, %v161
    %vm163 = vweird.f32 %v155
    %vm164 = vweird.f32 %v157
    %vm165 = vmor %vm163, %vm164
    %v166 = vsel %vm165, %v157, %v162
    %v167 = vrsqrt.pop %v156
    %v168 = vmul.f32 %v167, %v156
    %v169 = vmul.f32 %v168, %v167
    %v170 = vmul.f32 0.5, %v169
    %v171 = vsub.f32 1.5, %v170
    %v172 = vmul.f32 %v167, %v171
    %vm173 = vweird.f32 %v156
    %vm174 = vweird.f32 %v167
    %vm175 = vmor %vm173, %vm174
    %v176 = vsel %vm175, %v167, %v172
    %v177 = vmul.f32 %v143, %v166
    %v178 = vmul.f32 %v144, %v176
    %v179 = vld [vmem:[%s5] sm:$0x1]
    %v181 = vperm.slane %v179, 0
    %v183 = vmul.f32 %v177, %v181
    %v184 = vmul.f32 %v178, %v181
    %v185 = vld [vmem:[%s6] sm:$0x1]
    %v187 = vperm.slane %v185, 0
    %v189 = vadd.f32 %v183, %v187
    %v190 = vadd.f32 %v184, %v187
    %191 = vst.msk [vmem:[#allocation2] sm:$0xff] %vm51, %v189
    %192 = vst.msk [vmem:[#allocation2 + $0x8] sm:$0xff] %vm51, %v190
    // Predicated region
    $region30: #{transformer_decoder.23} parent=1 // pred_check
      _
    $region31: #{transformer_decoder.23} parent=1 // pred_check_branch
      %194 = sbr.rel (0) target = $region33
    $region32: #{transformer_decoder.23} parent=1 // pred_region
      %196 = vsyncadd [#allocation3], 0
      %s197 = sshll.u32 [#allocation2], 4
      %s198 = int_to_ptr.vmem [resolvable:$true] %s197
      %s199 = sshll.u32 %s7, 4
      %s200 = int_to_ptr.hbm [resolvable:$true] %s199
      %205 = dma.vmem_to_hbm [thread:$0]  %s198, 256, %s200, [#allocation3], 128, 128, 8
    $region33: #{transformer_decoder.23} parent=1 // pred_fallthru
      _
    // Predicated region
    $region34: #{transformer_decoder.23} parent=1 // pred_check
      _
    $region35: #{transformer_decoder.23} parent=1 // pred_check_branch
      %207 = sbr.rel (0) target = $region37
    $region36: #{transformer_decoder.23} parent=1 // pred_region
      %209 = dma.done [#allocation3], 256
    $region37: #{transformer_decoder.23} parent=1 // pred_fallthru
      _
    %210 = vsyncpa [#allocation3], 1

</llo_original>
